<compile_context>
chip_gen: v6e
topology: v6e:2x2x1
jax: 0.10.0
libtpu: 0.0.40
codegen_flags: <defaults>
</compile_context>

<pallas_src>
import functools
import math

import jax
import jax.numpy as jnp
from jax.experimental import pallas as pl
from jax.experimental.pallas import tpu as pltpu

# ----------------------------- config ---------------------------------------
NUM_LAYERS = 2
D_MODEL = 32
NHEAD = 4
HEAD_DIM = D_MODEL // NHEAD
N_CLASSES = 5
SEQ = 8
BATCH = 2
EPS_LN = 1e-5          # TransformerEncoderLayer layer_norm_eps
MODE = "global"        # Head mode -> mean over seq dim

# --- weight-slab block indices (each block = D_MODEL rows x D_MODEL lanes) ---
_WQ = 0                        # blocks 0..3  : per-head Wq^T (lanes 0:hd), *1/sqrt(hd)
_WK = NHEAD                    # blocks 4..7  : per-head Wk^T (lanes 0:hd)
_WV = 2 * NHEAD                # blocks 8..11 : per-head Wv^T (lanes 0:hd)
_WO = 3 * NHEAD                # blocks 12..15: per-head Wo^T rows (rows 0:hd)
_W1 = 4 * NHEAD                # block 16     : linear1 W^T
_W2 = 4 * NHEAD + 1            # block 17     : linear2 W^T
_WHEAD = 4 * NHEAD + 2         # block 18     : head W^T (lanes 0:n_classes)
_N_WBLOCKS = 4 * NHEAD + 3

# --- param-slab row indices (each row = 1 x D_MODEL, f32) --------------------
_BQ, _BK, _BV = 0, NHEAD, 2 * NHEAD            # per-head bias rows, lanes 0:hd
_BO = 3 * NHEAD
_G1, _BE1, _B1, _B2 = _BO + 1, _BO + 2, _BO + 3, _BO + 4
_G2, _BE2, _HB = _BO + 5, _BO + 6, _BO + 7
_N_PROWS = ((_HB + 1 + 7) // 8) * 8            # pad to a multiple of 8 sublanes


# --------------------------- kernel helpers ----------------------------------
def _layernorm(x, gamma, beta, eps):
    mu = jnp.mean(x, axis=-1, keepdims=True)
    xc = x - mu
    var = jnp.mean(xc * xc, axis=-1, keepdims=True)
    # rsqrt instead of /sqrt: keeps the divide off the VALU slot.
    return xc * jax.lax.rsqrt(var + eps) * gamma + beta


def _gelu_tanh(x):
    # tanh-form GELU (EUP); |deviation| from exact erf-GELU < ~1e-3.
    c = 0.7978845608028654  # sqrt(2/pi)
    return 0.5 * x * (1.0 + jnp.tanh(c * (x + 0.044715 * x * x * x)))


# ------------------------ fused transformer + head kernel --------------------
def fused_transformer_kernel(x_ref, w_ref, p_ref, x_out_ref, logits_ref,
                             *, nhead, num_layers, batch, seq):
    D = x_ref.shape[-1]
    hd = D // nhead
    BS = batch * seq
    f32 = jnp.float32
    bf16 = jnp.bfloat16

    def wblk(i, rows=D, cols=D):
        # bf16 weight block: 32-row-aligned start, lanes start at 0 (no shift).
        r0 = i * D
        return w_ref[r0:r0 + rows, 0:cols]

    def prow(r, cols=D):
        # f32 parameter row (1, cols), lanes start at 0.
        return p_ref[r:r + 1, 0:cols]

    # Shared-across-layers params (the deepcopy'd layers are identical).
    bo = prow(_BO)
    g1, be1 = prow(_G1), prow(_BE1)
    b1, b2 = prow(_B1), prow(_B2)
    g2, be2 = prow(_G2), prow(_BE2)
    w1, w2 = wblk(_W1), wblk(_W2)

    x2d = x_ref[...].astype(f32)                             # (B*S, D)

    for _ in range(num_layers):                              # static unroll
        xb = x2d.astype(bf16)                                # bf16 dot operand

        # ---- multi-head self-attention -------------------------------------
        # Per-head Q/K/V/out weights live in their own lane-0-aligned slab
        # blocks, so there are no lane-offset slices or head concats here.
        # 1/sqrt(hd) is already folded into Wq / bq (PyTorch scales q).
        attn = bo                                            # (1, D), broadcasts
        for h in range(nhead):                               # static head loop
            q = jnp.dot(xb, wblk(_WQ + h, D, hd),
                        preferred_element_type=f32) + prow(_BQ + h, hd)
            k = jnp.dot(xb, wblk(_WK + h, D, hd),
                        preferred_element_type=f32) + prow(_BK + h, hd)
            v = jnp.dot(xb, wblk(_WV + h, D, hd),
                        preferred_element_type=f32) + prow(_BV + h, hd)
            q3 = q.reshape(batch, seq, hd)                   # sublane-only split
            k3 = k.reshape(batch, seq, hd)
            v3 = v.reshape(batch, seq, hd)
            s = jnp.einsum("bqd,bkd->bqk", q3, k3,
                           preferred_element_type=f32)       # (B, S, S), f32
            s = s - jnp.max(s, axis=-1, keepdims=True)
            p = jnp.exp(s)
            p = p * pl.reciprocal(jnp.sum(p, axis=-1, keepdims=True),
                                  approx=True)               # EUP reciprocal
            o3 = jnp.einsum("bqk,bkd->bqd", p, v3,
                            preferred_element_type=f32)      # (B, S, hd), f32
            o2 = o3.reshape(BS, hd)
            # per-head slice of the out-projection: sublane rows 0:hd of its block
            attn = attn + jnp.dot(o2.astype(bf16), wblk(_WO + h, hd, D),
                                  preferred_element_type=f32)

        # ---- residual + norm1 ----
        x2d = _layernorm(x2d + attn, g1, be1, EPS_LN)

        # ---- MLP: linear1 -> GELU(tanh) -> linear2 (d_model -> d_model) ----
        h1 = _gelu_tanh(jnp.dot(x2d.astype(bf16), w1,
                                preferred_element_type=f32) + b1)
        h2 = jnp.dot(h1.astype(bf16), w2, preferred_element_type=f32) + b2

        # ---- residual + norm2 ----
        x2d = _layernorm(x2d + h2, g2, be2, EPS_LN)

    # encoder output, kept 2-D (wrapper reshapes for free)
    x_out_ref[...] = x2d.astype(x_out_ref.dtype)

    # classification head ('global'): mean over seq, then Linear.
    # head weight/bias are lane-padded to D; wrapper slices [:, :n_classes].
    pooled = jnp.mean(x2d.reshape(batch, seq, D), axis=1)    # (B, D)
    logits = jnp.dot(pooled.astype(bf16), wblk(_WHEAD),
                     preferred_element_type=f32) + prow(_HB)
    logits_ref[...] = logits.astype(logits_ref.dtype)


# --------------------------- host-side parameter packing ---------------------
def pack_params(params):
    """Pack all module parameters into two HBM slabs (one DMA each).

    w_slab : (_N_WBLOCKS*D, D) bf16 - every matmul weight, pre-transposed to
             x@W layout; Q/K/V/out split per head into 32-row, lane-0-aligned
             blocks; 1/sqrt(head_dim) folded into the Q projection.
    p_slab : (_N_PROWS, D) f32 - biases, LayerNorm gammas/betas, head bias.
    """
    D, H, hd = D_MODEL, NHEAD, HEAD_DIM
    lp = params["layer"]
    scale = 1.0 / math.sqrt(hd)

    wq_t = lp["wqkv"][0:D].T * scale              # (D, D), q-scale folded in
    wk_t = lp["wqkv"][D:2 * D].T
    wv_t = lp["wqkv"][2 * D:3 * D].T
    wo_t = lp["wo"].T
    head_wt = jnp.zeros((D, D), jnp.float32).at[:, :N_CLASSES].set(params["head_w"].T)

    def lane_block(cols):                          # (D, hd) -> (D, D), lanes [0:hd)
        return jnp.zeros((D, D), jnp.float32).at[:, :hd].set(cols)

    def row_block(rows):                           # (hd, D) -> (D, D), rows [0:hd)
        return jnp.zeros((D, D), jnp.float32).at[:hd, :].set(rows)

    blocks = (
        [lane_block(wq_t[:, h * hd:(h + 1) * hd]) for h in range(H)]
        + [lane_block(wk_t[:, h * hd:(h + 1) * hd]) for h in range(H)]
        + [lane_block(wv_t[:, h * hd:(h + 1) * hd]) for h in range(H)]
        + [row_block(wo_t[h * hd:(h + 1) * hd, :]) for h in range(H)]
        + [lp["w1"].T, lp["w2"].T, head_wt]
    )
    assert len(blocks) == _N_WBLOCKS
    w_slab = jnp.concatenate(blocks, axis=0).astype(jnp.bfloat16)

    def pad_row(vec):
        return jnp.zeros((D,), jnp.float32).at[:vec.shape[0]].set(vec)

    bq = lp["bqkv"][0, 0:D] * scale               # q-scale folded in
    bk = lp["bqkv"][0, D:2 * D]
    bv = lp["bqkv"][0, 2 * D:3 * D]
    rows = (
        [pad_row(bq[h * hd:(h + 1) * hd]) for h in range(H)]
        + [pad_row(bk[h * hd:(h + 1) * hd]) for h in range(H)]
        + [pad_row(bv[h * hd:(h + 1) * hd]) for h in range(H)]
        + [lp["bo"][0], lp["g1"][0], lp["be1"][0], lp["b1"][0], lp["b2"][0],
           lp["g2"][0], lp["be2"][0], pad_row(params["head_b"][0])]
    )
    rows += [jnp.zeros((D,), jnp.float32)] * (_N_PROWS - len(rows))
    p_slab = jnp.stack(rows).astype(jnp.float32)
    return w_slab, p_slab


# ------------------------------- JAX wrapper ----------------------------------
def low_level_transformer(tuples, params):
    x, b = tuples
    B, S, D = x.shape
    w_slab, p_slab = pack_params(params)

    vmem = pl.BlockSpec(memory_space=pltpu.MemorySpace.VMEM)
    x2d_out, logits_pad = pl.pallas_call(
        functools.partial(fused_transformer_kernel,
                          nhead=NHEAD, num_layers=NUM_LAYERS, batch=B, seq=S),
        out_shape=(jax.ShapeDtypeStruct((B * S, D), x.dtype),
                   jax.ShapeDtypeStruct((B, D), x.dtype)),
        in_specs=[vmem, vmem, vmem],
        out_specs=(vmem, vmem),
    )(x.reshape(B * S, D), w_slab, p_slab)

    # Wrapper-side reshape / lane slice are free XLA metadata ops.
    out = logits_pad[:, :N_CLASSES]
    x_out = x2d_out.reshape(B, S, D)
    return out, b, x_out


# ----------------------------- parameter init ---------------------------------
def _xavier_uniform(key, shape):
    fan_out, fan_in = shape
    limit = math.sqrt(6.0 / (fan_in + fan_out))
    return jax.random.uniform(key, shape, jnp.float32, -limit, limit)


def _linear_init(key, out_f, in_f):
    kw, kb = jax.random.split(key)
    bound = 1.0 / math.sqrt(in_f)
    w = jax.random.uniform(kw, (out_f, in_f), jnp.float32, -bound, bound)
    b = jax.random.uniform(kb, (1, out_f), jnp.float32, -bound, bound)
    return w, b


def init_params(key):
    keys = jax.random.split(key, 8)
    D = D_MODEL
    # MultiHeadAttention: xavier_uniform in_proj, zero in_proj/out_proj biases
    wqkv = _xavier_uniform(keys[0], (3 * D, D))
    bqkv = jnp.zeros((1, 3 * D), jnp.float32)
    wo, _ = _linear_init(keys[1], D, D)
    bo = jnp.zeros((1, D), jnp.float32)            # constant_(out_proj.bias, 0.)
    w1, b1 = _linear_init(keys[2], D, D)
    w2, b2 = _linear_init(keys[3], D, D)
    layer = dict(
        wqkv=wqkv, bqkv=bqkv, wo=wo, bo=bo,
        g1=jnp.ones((1, D), jnp.float32), be1=jnp.zeros((1, D), jnp.float32),
        w1=w1, b1=b1, w2=w2, b2=b2,
        g2=jnp.ones((1, D), jnp.float32), be2=jnp.zeros((1, D), jnp.float32),
    )
    head_w, head_b = _linear_init(keys[4], N_CLASSES, D)
    return dict(layer=layer, head_w=head_w, head_b=head_b)


# ----------------------------- pure-JAX reference ------------------------------
def _layernorm_ref(x, g, b):
    mu = jnp.mean(x, axis=-1, keepdims=True)
    var = jnp.mean((x - mu) ** 2, axis=-1, keepdims=True)
    return (x - mu) / jnp.sqrt(var + EPS_LN) * g + b


def reference_forward(tuples, params):
    x, b = tuples
    lp = params["layer"]
    B, S, D = x.shape
    hd = D // NHEAD
    for _ in range(NUM_LAYERS):
        qkv = x @ lp["wqkv"].T + lp["bqkv"][0]
        q, k, v = jnp.split(qkv, 3, axis=-1)
        sh = lambda t: t.reshape(B, S, NHEAD, hd).transpose(0, 2, 1, 3)
        qh, kh, vh = sh(q), sh(k), sh(v)
        s = jnp.einsum("bhqd,bhkd->bhqk", qh, kh) / math.sqrt(hd)
        p = jax.nn.softmax(s, axis=-1)
        o = jnp.einsum("bhqk,bhkd->bhqd", p, vh).transpose(0, 2, 1, 3).reshape(B, S, D)
        o = o @ lp["wo"].T + lp["bo"][0]
        x = _layernorm_ref(x + o, lp["g1"][0], lp["be1"][0])
        h = jax.nn.gelu(x @ lp["w1"].T + lp["b1"][0], approximate=False)
        h = h @ lp["w2"].T + lp["b2"][0]
        x = _layernorm_ref(x + h, lp["g2"][0], lp["be2"][0])
    out = jnp.mean(x, axis=1) @ params["head_w"].T + params["head_b"][0]
    return out, b, x


# ------------------------------------ main -------------------------------------
if __name__ == "__main__":
    key = jax.random.PRNGKey(0)
    k_x, k_b, k_p = jax.random.split(key, 3)

    x = jax.random.normal(k_x, (BATCH, SEQ, D_MODEL), jnp.float32)
    b = jax.random.normal(k_b, (BATCH,), jnp.float32)   # passthrough aux input
    params = init_params(k_p)

    out, b_out, x_out = low_level_transformer((x, b), params)
    out, b_out, x_out = jax.block_until_ready((out, b_out, x_out))

    ref_out, ref_b, ref_x = reference_forward((x, b), params)

    assert out.shape == (BATCH, N_CLASSES)
    assert x_out.shape == (BATCH, SEQ, D_MODEL)
    assert jnp.allclose(b_out, ref_b)
    # Tolerance 2e-2: the kernel uses bf16 weight-matmul operands (f32
    # accumulation), tanh-GELU and an EUP approx reciprocal, so it deviates
    # from the exact-f32 reference by O(1e-3..1e-2) in the worst element.
    assert jnp.allclose(out, ref_out, atol=2e-2, rtol=2e-2), \
        f"head mismatch: {jnp.max(jnp.abs(out - ref_out))}"
    assert jnp.allclose(x_out, ref_x, atol=2e-2, rtol=2e-2), \
        f"encoder mismatch: {jnp.max(jnp.abs(x_out - ref_x))}"

    print("KERNEL_OK")
</pallas_src>

<mosaic_0001>
module attributes {stable_mosaic.version = 11 : i64} {
  func.func @fused_transformer_kernel(%arg0: memref<16x32xf32, #tpu.memory_space<vmem>>, %arg1: memref<608x32xbf16, #tpu.memory_space<vmem>>, %arg2: memref<24x32xf32, #tpu.memory_space<vmem>>, %arg3: memref<16x32xf32, #tpu.memory_space<vmem>>, %arg4: memref<2x32xf32, #tpu.memory_space<vmem>>) attributes {dimension_semantics = [], scalar_prefetch = 0 : i64, scratch_operands = 0 : i64, tpu.core_type = #tpu.core_type<tc>} {
    %c12 = arith.constant 12 : index
    %c0 = arith.constant 0 : index
    %0 = vector.load %arg2[%c12, %c0] : memref<24x32xf32, #tpu.memory_space<vmem>>, vector<1x32xf32>
    %c13 = arith.constant 13 : index
    %c0_0 = arith.constant 0 : index
    %1 = vector.load %arg2[%c13, %c0_0] : memref<24x32xf32, #tpu.memory_space<vmem>>, vector<1x32xf32>
    %c14 = arith.constant 14 : index
    %c0_1 = arith.constant 0 : index
    %2 = vector.load %arg2[%c14, %c0_1] : memref<24x32xf32, #tpu.memory_space<vmem>>, vector<1x32xf32>
    %c15 = arith.constant 15 : index
    %c0_2 = arith.constant 0 : index
    %3 = vector.load %arg2[%c15, %c0_2] : memref<24x32xf32, #tpu.memory_space<vmem>>, vector<1x32xf32>
    %c16 = arith.constant 16 : index
    %c0_3 = arith.constant 0 : index
    %4 = vector.load %arg2[%c16, %c0_3] : memref<24x32xf32, #tpu.memory_space<vmem>>, vector<1x32xf32>
    %c17 = arith.constant 17 : index
    %c0_4 = arith.constant 0 : index
    %5 = vector.load %arg2[%c17, %c0_4] : memref<24x32xf32, #tpu.memory_space<vmem>>, vector<1x32xf32>
    %c18 = arith.constant 18 : index
    %c0_5 = arith.constant 0 : index
    %6 = vector.load %arg2[%c18, %c0_5] : memref<24x32xf32, #tpu.memory_space<vmem>>, vector<1x32xf32>
    %c512 = arith.constant 512 : index
    %c0_6 = arith.constant 0 : index
    %7 = vector.load %arg1[%c512, %c0_6] : memref<608x32xbf16, #tpu.memory_space<vmem>>, vector<32x32xbf16>
    %c544 = arith.constant 544 : index
    %c0_7 = arith.constant 0 : index
    %8 = vector.load %arg1[%c544, %c0_7] : memref<608x32xbf16, #tpu.memory_space<vmem>>, vector<32x32xbf16>
    %c0_8 = arith.constant 0 : index
    %c0_9 = arith.constant 0 : index
    %9 = vector.load %arg0[%c0_8, %c0_9] : memref<16x32xf32, #tpu.memory_space<vmem>>, vector<16x32xf32>
    %10 = arith.truncf %9 : vector<16x32xf32> to vector<16x32xbf16>
    %c0_10 = arith.constant 0 : index
    %c0_11 = arith.constant 0 : index
    %11 = vector.load %arg1[%c0_10, %c0_11] : memref<608x32xbf16, #tpu.memory_space<vmem>>, vector<32x8xbf16>
    %cst = arith.constant dense<0.000000e+00> : vector<16x8xf32>
    %12 = tpu.matmul %10, %11, %cst {dimension_numbers = #tpu.dot_dimension_numbers<[1], [0], [0], [1], [0, 0, 1, 1], [], []>} : vector<16x32xbf16>, vector<32x8xbf16>, vector<16x8xf32> -> vector<16x8xf32>
    %c0_12 = arith.constant 0 : index
    %c0_13 = arith.constant 0 : index
    %13 = vector.load %arg2[%c0_12, %c0_13] : memref<24x32xf32, #tpu.memory_space<vmem>>, vector<1x8xf32>
    %14 = vector.broadcast %13 : vector<1x8xf32> to vector<16x8xf32>
    %15 = arith.addf %12, %14 : vector<16x8xf32>
    %c128 = arith.constant 128 : index
    %c0_14 = arith.constant 0 : index
    %16 = vector.load %arg1[%c128, %c0_14] : memref<608x32xbf16, #tpu.memory_space<vmem>>, vector<32x8xbf16>
    %cst_15 = arith.constant dense<0.000000e+00> : vector<16x8xf32>
    %17 = tpu.matmul %10, %16, %cst_15 {dimension_numbers = #tpu.dot_dimension_numbers<[1], [0], [0], [1], [0, 0, 1, 1], [], []>} : vector<16x32xbf16>, vector<32x8xbf16>, vector<16x8xf32> -> vector<16x8xf32>
    %c4 = arith.constant 4 : index
    %c0_16 = arith.constant 0 : index
    %18 = vector.load %arg2[%c4, %c0_16] : memref<24x32xf32, #tpu.memory_space<vmem>>, vector<1x8xf32>
    %19 = vector.broadcast %18 : vector<1x8xf32> to vector<16x8xf32>
    %20 = arith.addf %17, %19 : vector<16x8xf32>
    %c256 = arith.constant 256 : index
    %c0_17 = arith.constant 0 : index
    %21 = vector.load %arg1[%c256, %c0_17] : memref<608x32xbf16, #tpu.memory_space<vmem>>, vector<32x8xbf16>
    %cst_18 = arith.constant dense<0.000000e+00> : vector<16x8xf32>
    %22 = tpu.matmul %10, %21, %cst_18 {dimension_numbers = #tpu.dot_dimension_numbers<[1], [0], [0], [1], [0, 0, 1, 1], [], []>} : vector<16x32xbf16>, vector<32x8xbf16>, vector<16x8xf32> -> vector<16x8xf32>
    %c8 = arith.constant 8 : index
    %c0_19 = arith.constant 0 : index
    %23 = vector.load %arg2[%c8, %c0_19] : memref<24x32xf32, #tpu.memory_space<vmem>>, vector<1x8xf32>
    %24 = vector.broadcast %23 : vector<1x8xf32> to vector<16x8xf32>
    %25 = arith.addf %22, %24 : vector<16x8xf32>
    %26 = vector.shape_cast %15 : vector<16x8xf32> to vector<2x8x8xf32>
    %27 = vector.shape_cast %20 : vector<16x8xf32> to vector<2x8x8xf32>
    %28 = vector.shape_cast %25 : vector<16x8xf32> to vector<2x8x8xf32>
    "tpu.trace_start"() <{level = 10 : i32, message = "bqd,bkd->bqk"}> : () -> ()
    %cst_20 = arith.constant dense<0.000000e+00> : vector<2x8x8xf32>
    %29 = tpu.matmul %26, %27, %cst_20 {dimension_numbers = #tpu.dot_dimension_numbers<[2], [2], [1], [1], [0, 0, 0, 1, 1, 1], [0], [0]>} : vector<2x8x8xf32>, vector<2x8x8xf32>, vector<2x8x8xf32> -> vector<2x8x8xf32>
    "tpu.trace_stop"() : () -> ()
    %cst_21 = arith.constant dense<0xFF800000> : vector<2x8xf32>
    %30 = vector.multi_reduction <maximumf>, %29, %cst_21 [2] : vector<2x8x8xf32> to vector<2x8xf32>
    %31 = vector.shape_cast %30 : vector<2x8xf32> to vector<2x8x1xf32>
    %32 = vector.broadcast %31 : vector<2x8x1xf32> to vector<2x8x8xf32>
    %33 = arith.subf %29, %32 : vector<2x8x8xf32>
    %34 = math.exp %33 : vector<2x8x8xf32>
    %cst_22 = arith.constant dense<0.000000e+00> : vector<2x8xf32>
    %35 = vector.multi_reduction <add>, %34, %cst_22 [2] : vector<2x8x8xf32> to vector<2x8xf32>
    %36 = vector.shape_cast %35 : vector<2x8xf32> to vector<2x8x1xf32>
    %37 = tpu.reciprocal %36 {approx = true} : vector<2x8x1xf32> -> vector<2x8x1xf32>
    %38 = vector.broadcast %37 : vector<2x8x1xf32> to vector<2x8x8xf32>
    %39 = arith.mulf %34, %38 : vector<2x8x8xf32>
    "tpu.trace_start"() <{level = 10 : i32, message = "bqk,bkd->bqd"}> : () -> ()
    %cst_23 = arith.constant dense<0.000000e+00> : vector<2x8x8xf32>
    %40 = tpu.matmul %39, %28, %cst_23 {dimension_numbers = #tpu.dot_dimension_numbers<[2], [1], [1], [2], [0, 0, 0, 1, 1, 2], [0], [0]>} : vector<2x8x8xf32>, vector<2x8x8xf32>, vector<2x8x8xf32> -> vector<2x8x8xf32>
    "tpu.trace_stop"() : () -> ()
    %41 = vector.shape_cast %40 : vector<2x8x8xf32> to vector<16x8xf32>
    %42 = arith.truncf %41 : vector<16x8xf32> to vector<16x8xbf16>
    %c384 = arith.constant 384 : index
    %c0_24 = arith.constant 0 : index
    %43 = vector.load %arg1[%c384, %c0_24] : memref<608x32xbf16, #tpu.memory_space<vmem>>, vector<8x32xbf16>
    %cst_25 = arith.constant dense<0.000000e+00> : vector<16x32xf32>
    %44 = tpu.matmul %42, %43, %cst_25 {dimension_numbers = #tpu.dot_dimension_numbers<[1], [0], [0], [1], [0, 0, 1, 1], [], []>} : vector<16x8xbf16>, vector<8x32xbf16>, vector<16x32xf32> -> vector<16x32xf32>
    %45 = vector.broadcast %0 : vector<1x32xf32> to vector<16x32xf32>
    %46 = arith.addf %45, %44 : vector<16x32xf32>
    %c32 = arith.constant 32 : index
    %c0_26 = arith.constant 0 : index
    %47 = vector.load %arg1[%c32, %c0_26] : memref<608x32xbf16, #tpu.memory_space<vmem>>, vector<32x8xbf16>
    %cst_27 = arith.constant dense<0.000000e+00> : vector<16x8xf32>
    %48 = tpu.matmul %10, %47, %cst_27 {dimension_numbers = #tpu.dot_dimension_numbers<[1], [0], [0], [1], [0, 0, 1, 1], [], []>} : vector<16x32xbf16>, vector<32x8xbf16>, vector<16x8xf32> -> vector<16x8xf32>
    %c1 = arith.constant 1 : index
    %c0_28 = arith.constant 0 : index
    %49 = vector.load %arg2[%c1, %c0_28] : memref<24x32xf32, #tpu.memory_space<vmem>>, vector<1x8xf32>
    %50 = vector.broadcast %49 : vector<1x8xf32> to vector<16x8xf32>
    %51 = arith.addf %48, %50 : vector<16x8xf32>
    %c160 = arith.constant 160 : index
    %c0_29 = arith.constant 0 : index
    %52 = vector.load %arg1[%c160, %c0_29] : memref<608x32xbf16, #tpu.memory_space<vmem>>, vector<32x8xbf16>
    %cst_30 = arith.constant dense<0.000000e+00> : vector<16x8xf32>
    %53 = tpu.matmul %10, %52, %cst_30 {dimension_numbers = #tpu.dot_dimension_numbers<[1], [0], [0], [1], [0, 0, 1, 1], [], []>} : vector<16x32xbf16>, vector<32x8xbf16>, vector<16x8xf32> -> vector<16x8xf32>
    %c5 = arith.constant 5 : index
    %c0_31 = arith.constant 0 : index
    %54 = vector.load %arg2[%c5, %c0_31] : memref<24x32xf32, #tpu.memory_space<vmem>>, vector<1x8xf32>
    %55 = vector.broadcast %54 : vector<1x8xf32> to vector<16x8xf32>
    %56 = arith.addf %53, %55 : vector<16x8xf32>
    %c288 = arith.constant 288 : index
    %c0_32 = arith.constant 0 : index
    %57 = vector.load %arg1[%c288, %c0_32] : memref<608x32xbf16, #tpu.memory_space<vmem>>, vector<32x8xbf16>
    %cst_33 = arith.constant dense<0.000000e+00> : vector<16x8xf32>
    %58 = tpu.matmul %10, %57, %cst_33 {dimension_numbers = #tpu.dot_dimension_numbers<[1], [0], [0], [1], [0, 0, 1, 1], [], []>} : vector<16x32xbf16>, vector<32x8xbf16>, vector<16x8xf32> -> vector<16x8xf32>
    %c9 = arith.constant 9 : index
    %c0_34 = arith.constant 0 : index
    %59 = vector.load %arg2[%c9, %c0_34] : memref<24x32xf32, #tpu.memory_space<vmem>>, vector<1x8xf32>
    %60 = vector.broadcast %59 : vector<1x8xf32> to vector<16x8xf32>
    %61 = arith.addf %58, %60 : vector<16x8xf32>
    %62 = vector.shape_cast %51 : vector<16x8xf32> to vector<2x8x8xf32>
    %63 = vector.shape_cast %56 : vector<16x8xf32> to vector<2x8x8xf32>
    %64 = vector.shape_cast %61 : vector<16x8xf32> to vector<2x8x8xf32>
    "tpu.trace_start"() <{level = 10 : i32, message = "bqd,bkd->bqk"}> : () -> ()
    %cst_35 = arith.constant dense<0.000000e+00> : vector<2x8x8xf32>
    %65 = tpu.matmul %62, %63, %cst_35 {dimension_numbers = #tpu.dot_dimension_numbers<[2], [2], [1], [1], [0, 0, 0, 1, 1, 1], [0], [0]>} : vector<2x8x8xf32>, vector<2x8x8xf32>, vector<2x8x8xf32> -> vector<2x8x8xf32>
    "tpu.trace_stop"() : () -> ()
    %cst_36 = arith.constant dense<0xFF800000> : vector<2x8xf32>
    %66 = vector.multi_reduction <maximumf>, %65, %cst_36 [2] : vector<2x8x8xf32> to vector<2x8xf32>
    %67 = vector.shape_cast %66 : vector<2x8xf32> to vector<2x8x1xf32>
    %68 = vector.broadcast %67 : vector<2x8x1xf32> to vector<2x8x8xf32>
    %69 = arith.subf %65, %68 : vector<2x8x8xf32>
    %70 = math.exp %69 : vector<2x8x8xf32>
    %cst_37 = arith.constant dense<0.000000e+00> : vector<2x8xf32>
    %71 = vector.multi_reduction <add>, %70, %cst_37 [2] : vector<2x8x8xf32> to vector<2x8xf32>
    %72 = vector.shape_cast %71 : vector<2x8xf32> to vector<2x8x1xf32>
    %73 = tpu.reciprocal %72 {approx = true} : vector<2x8x1xf32> -> vector<2x8x1xf32>
    %74 = vector.broadcast %73 : vector<2x8x1xf32> to vector<2x8x8xf32>
    %75 = arith.mulf %70, %74 : vector<2x8x8xf32>
    "tpu.trace_start"() <{level = 10 : i32, message = "bqk,bkd->bqd"}> : () -> ()
    %cst_38 = arith.constant dense<0.000000e+00> : vector<2x8x8xf32>
    %76 = tpu.matmul %75, %64, %cst_38 {dimension_numbers = #tpu.dot_dimension_numbers<[2], [1], [1], [2], [0, 0, 0, 1, 1, 2], [0], [0]>} : vector<2x8x8xf32>, vector<2x8x8xf32>, vector<2x8x8xf32> -> vector<2x8x8xf32>
    "tpu.trace_stop"() : () -> ()
    %77 = vector.shape_cast %76 : vector<2x8x8xf32> to vector<16x8xf32>
    %78 = arith.truncf %77 : vector<16x8xf32> to vector<16x8xbf16>
    %c416 = arith.constant 416 : index
    %c0_39 = arith.constant 0 : index
    %79 = vector.load %arg1[%c416, %c0_39] : memref<608x32xbf16, #tpu.memory_space<vmem>>, vector<8x32xbf16>
    %cst_40 = arith.constant dense<0.000000e+00> : vector<16x32xf32>
    %80 = tpu.matmul %78, %79, %cst_40 {dimension_numbers = #tpu.dot_dimension_numbers<[1], [0], [0], [1], [0, 0, 1, 1], [], []>} : vector<16x8xbf16>, vector<8x32xbf16>, vector<16x32xf32> -> vector<16x32xf32>
    %81 = arith.addf %46, %80 : vector<16x32xf32>
    %c64 = arith.constant 64 : index
    %c0_41 = arith.constant 0 : index
    %82 = vector.load %arg1[%c64, %c0_41] : memref<608x32xbf16, #tpu.memory_space<vmem>>, vector<32x8xbf16>
    %cst_42 = arith.constant dense<0.000000e+00> : vector<16x8xf32>
    %83 = tpu.matmul %10, %82, %cst_42 {dimension_numbers = #tpu.dot_dimension_numbers<[1], [0], [0], [1], [0, 0, 1, 1], [], []>} : vector<16x32xbf16>, vector<32x8xbf16>, vector<16x8xf32> -> vector<16x8xf32>
    %c2 = arith.constant 2 : index
    %c0_43 = arith.constant 0 : index
    %84 = vector.load %arg2[%c2, %c0_43] : memref<24x32xf32, #tpu.memory_space<vmem>>, vector<1x8xf32>
    %85 = vector.broadcast %84 : vector<1x8xf32> to vector<16x8xf32>
    %86 = arith.addf %83, %85 : vector<16x8xf32>
    %c192 = arith.constant 192 : index
    %c0_44 = arith.constant 0 : index
    %87 = vector.load %arg1[%c192, %c0_44] : memref<608x32xbf16, #tpu.memory_space<vmem>>, vector<32x8xbf16>
    %cst_45 = arith.constant dense<0.000000e+00> : vector<16x8xf32>
    %88 = tpu.matmul %10, %87, %cst_45 {dimension_numbers = #tpu.dot_dimension_numbers<[1], [0], [0], [1], [0, 0, 1, 1], [], []>} : vector<16x32xbf16>, vector<32x8xbf16>, vector<16x8xf32> -> vector<16x8xf32>
    %c6 = arith.constant 6 : index
    %c0_46 = arith.constant 0 : index
    %89 = vector.load %arg2[%c6, %c0_46] : memref<24x32xf32, #tpu.memory_space<vmem>>, vector<1x8xf32>
    %90 = vector.broadcast %89 : vector<1x8xf32> to vector<16x8xf32>
    %91 = arith.addf %88, %90 : vector<16x8xf32>
    %c320 = arith.constant 320 : index
    %c0_47 = arith.constant 0 : index
    %92 = vector.load %arg1[%c320, %c0_47] : memref<608x32xbf16, #tpu.memory_space<vmem>>, vector<32x8xbf16>
    %cst_48 = arith.constant dense<0.000000e+00> : vector<16x8xf32>
    %93 = tpu.matmul %10, %92, %cst_48 {dimension_numbers = #tpu.dot_dimension_numbers<[1], [0], [0], [1], [0, 0, 1, 1], [], []>} : vector<16x32xbf16>, vector<32x8xbf16>, vector<16x8xf32> -> vector<16x8xf32>
    %c10 = arith.constant 10 : index
    %c0_49 = arith.constant 0 : index
    %94 = vector.load %arg2[%c10, %c0_49] : memref<24x32xf32, #tpu.memory_space<vmem>>, vector<1x8xf32>
    %95 = vector.broadcast %94 : vector<1x8xf32> to vector<16x8xf32>
    %96 = arith.addf %93, %95 : vector<16x8xf32>
    %97 = vector.shape_cast %86 : vector<16x8xf32> to vector<2x8x8xf32>
    %98 = vector.shape_cast %91 : vector<16x8xf32> to vector<2x8x8xf32>
    %99 = vector.shape_cast %96 : vector<16x8xf32> to vector<2x8x8xf32>
    "tpu.trace_start"() <{level = 10 : i32, message = "bqd,bkd->bqk"}> : () -> ()
    %cst_50 = arith.constant dense<0.000000e+00> : vector<2x8x8xf32>
    %100 = tpu.matmul %97, %98, %cst_50 {dimension_numbers = #tpu.dot_dimension_numbers<[2], [2], [1], [1], [0, 0, 0, 1, 1, 1], [0], [0]>} : vector<2x8x8xf32>, vector<2x8x8xf32>, vector<2x8x8xf32> -> vector<2x8x8xf32>
    "tpu.trace_stop"() : () -> ()
    %cst_51 = arith.constant dense<0xFF800000> : vector<2x8xf32>
    %101 = vector.multi_reduction <maximumf>, %100, %cst_51 [2] : vector<2x8x8xf32> to vector<2x8xf32>
    %102 = vector.shape_cast %101 : vector<2x8xf32> to vector<2x8x1xf32>
    %103 = vector.broadcast %102 : vector<2x8x1xf32> to vector<2x8x8xf32>
    %104 = arith.subf %100, %103 : vector<2x8x8xf32>
    %105 = math.exp %104 : vector<2x8x8xf32>
    %cst_52 = arith.constant dense<0.000000e+00> : vector<2x8xf32>
    %106 = vector.multi_reduction <add>, %105, %cst_52 [2] : vector<2x8x8xf32> to vector<2x8xf32>
    %107 = vector.shape_cast %106 : vector<2x8xf32> to vector<2x8x1xf32>
    %108 = tpu.reciprocal %107 {approx = true} : vector<2x8x1xf32> -> vector<2x8x1xf32>
    %109 = vector.broadcast %108 : vector<2x8x1xf32> to vector<2x8x8xf32>
    %110 = arith.mulf %105, %109 : vector<2x8x8xf32>
    "tpu.trace_start"() <{level = 10 : i32, message = "bqk,bkd->bqd"}> : () -> ()
    %cst_53 = arith.constant dense<0.000000e+00> : vector<2x8x8xf32>
    %111 = tpu.matmul %110, %99, %cst_53 {dimension_numbers = #tpu.dot_dimension_numbers<[2], [1], [1], [2], [0, 0, 0, 1, 1, 2], [0], [0]>} : vector<2x8x8xf32>, vector<2x8x8xf32>, vector<2x8x8xf32> -> vector<2x8x8xf32>
    "tpu.trace_stop"() : () -> ()
    %112 = vector.shape_cast %111 : vector<2x8x8xf32> to vector<16x8xf32>
    %113 = arith.truncf %112 : vector<16x8xf32> to vector<16x8xbf16>
    %c448 = arith.constant 448 : index
    %c0_54 = arith.constant 0 : index
    %114 = vector.load %arg1[%c448, %c0_54] : memref<608x32xbf16, #tpu.memory_space<vmem>>, vector<8x32xbf16>
    %cst_55 = arith.constant dense<0.000000e+00> : vector<16x32xf32>
    %115 = tpu.matmul %113, %114, %cst_55 {dimension_numbers = #tpu.dot_dimension_numbers<[1], [0], [0], [1], [0, 0, 1, 1], [], []>} : vector<16x8xbf16>, vector<8x32xbf16>, vector<16x32xf32> -> vector<16x32xf32>
    %116 = arith.addf %81, %115 : vector<16x32xf32>
    %c96 = arith.constant 96 : index
    %c0_56 = arith.constant 0 : index
    %117 = vector.load %arg1[%c96, %c0_56] : memref<608x32xbf16, #tpu.memory_space<vmem>>, vector<32x8xbf16>
    %cst_57 = arith.constant dense<0.000000e+00> : vector<16x8xf32>
    %118 = tpu.matmul %10, %117, %cst_57 {dimension_numbers = #tpu.dot_dimension_numbers<[1], [0], [0], [1], [0, 0, 1, 1], [], []>} : vector<16x32xbf16>, vector<32x8xbf16>, vector<16x8xf32> -> vector<16x8xf32>
    %c3 = arith.constant 3 : index
    %c0_58 = arith.constant 0 : index
    %119 = vector.load %arg2[%c3, %c0_58] : memref<24x32xf32, #tpu.memory_space<vmem>>, vector<1x8xf32>
    %120 = vector.broadcast %119 : vector<1x8xf32> to vector<16x8xf32>
    %121 = arith.addf %118, %120 : vector<16x8xf32>
    %c224 = arith.constant 224 : index
    %c0_59 = arith.constant 0 : index
    %122 = vector.load %arg1[%c224, %c0_59] : memref<608x32xbf16, #tpu.memory_space<vmem>>, vector<32x8xbf16>
    %cst_60 = arith.constant dense<0.000000e+00> : vector<16x8xf32>
    %123 = tpu.matmul %10, %122, %cst_60 {dimension_numbers = #tpu.dot_dimension_numbers<[1], [0], [0], [1], [0, 0, 1, 1], [], []>} : vector<16x32xbf16>, vector<32x8xbf16>, vector<16x8xf32> -> vector<16x8xf32>
    %c7 = arith.constant 7 : index
    %c0_61 = arith.constant 0 : index
    %124 = vector.load %arg2[%c7, %c0_61] : memref<24x32xf32, #tpu.memory_space<vmem>>, vector<1x8xf32>
    %125 = vector.broadcast %124 : vector<1x8xf32> to vector<16x8xf32>
    %126 = arith.addf %123, %125 : vector<16x8xf32>
    %c352 = arith.constant 352 : index
    %c0_62 = arith.constant 0 : index
    %127 = vector.load %arg1[%c352, %c0_62] : memref<608x32xbf16, #tpu.memory_space<vmem>>, vector<32x8xbf16>
    %cst_63 = arith.constant dense<0.000000e+00> : vector<16x8xf32>
    %128 = tpu.matmul %10, %127, %cst_63 {dimension_numbers = #tpu.dot_dimension_numbers<[1], [0], [0], [1], [0, 0, 1, 1], [], []>} : vector<16x32xbf16>, vector<32x8xbf16>, vector<16x8xf32> -> vector<16x8xf32>
    %c11 = arith.constant 11 : index
    %c0_64 = arith.constant 0 : index
    %129 = vector.load %arg2[%c11, %c0_64] : memref<24x32xf32, #tpu.memory_space<vmem>>, vector<1x8xf32>
    %130 = vector.broadcast %129 : vector<1x8xf32> to vector<16x8xf32>
    %131 = arith.addf %128, %130 : vector<16x8xf32>
    %132 = vector.shape_cast %121 : vector<16x8xf32> to vector<2x8x8xf32>
    %133 = vector.shape_cast %126 : vector<16x8xf32> to vector<2x8x8xf32>
    %134 = vector.shape_cast %131 : vector<16x8xf32> to vector<2x8x8xf32>
    "tpu.trace_start"() <{level = 10 : i32, message = "bqd,bkd->bqk"}> : () -> ()
    %cst_65 = arith.constant dense<0.000000e+00> : vector<2x8x8xf32>
    %135 = tpu.matmul %132, %133, %cst_65 {dimension_numbers = #tpu.dot_dimension_numbers<[2], [2], [1], [1], [0, 0, 0, 1, 1, 1], [0], [0]>} : vector<2x8x8xf32>, vector<2x8x8xf32>, vector<2x8x8xf32> -> vector<2x8x8xf32>
    "tpu.trace_stop"() : () -> ()
    %cst_66 = arith.constant dense<0xFF800000> : vector<2x8xf32>
    %136 = vector.multi_reduction <maximumf>, %135, %cst_66 [2] : vector<2x8x8xf32> to vector<2x8xf32>
    %137 = vector.shape_cast %136 : vector<2x8xf32> to vector<2x8x1xf32>
    %138 = vector.broadcast %137 : vector<2x8x1xf32> to vector<2x8x8xf32>
    %139 = arith.subf %135, %138 : vector<2x8x8xf32>
    %140 = math.exp %139 : vector<2x8x8xf32>
    %cst_67 = arith.constant dense<0.000000e+00> : vector<2x8xf32>
    %141 = vector.multi_reduction <add>, %140, %cst_67 [2] : vector<2x8x8xf32> to vector<2x8xf32>
    %142 = vector.shape_cast %141 : vector<2x8xf32> to vector<2x8x1xf32>
    %143 = tpu.reciprocal %142 {approx = true} : vector<2x8x1xf32> -> vector<2x8x1xf32>
    %144 = vector.broadcast %143 : vector<2x8x1xf32> to vector<2x8x8xf32>
    %145 = arith.mulf %140, %144 : vector<2x8x8xf32>
    "tpu.trace_start"() <{level = 10 : i32, message = "bqk,bkd->bqd"}> : () -> ()
    %cst_68 = arith.constant dense<0.000000e+00> : vector<2x8x8xf32>
    %146 = tpu.matmul %145, %134, %cst_68 {dimension_numbers = #tpu.dot_dimension_numbers<[2], [1], [1], [2], [0, 0, 0, 1, 1, 2], [0], [0]>} : vector<2x8x8xf32>, vector<2x8x8xf32>, vector<2x8x8xf32> -> vector<2x8x8xf32>
    "tpu.trace_stop"() : () -> ()
    %147 = vector.shape_cast %146 : vector<2x8x8xf32> to vector<16x8xf32>
    %148 = arith.truncf %147 : vector<16x8xf32> to vector<16x8xbf16>
    %c480 = arith.constant 480 : index
    %c0_69 = arith.constant 0 : index
    %149 = vector.load %arg1[%c480, %c0_69] : memref<608x32xbf16, #tpu.memory_space<vmem>>, vector<8x32xbf16>
    %cst_70 = arith.constant dense<0.000000e+00> : vector<16x32xf32>
    %150 = tpu.matmul %148, %149, %cst_70 {dimension_numbers = #tpu.dot_dimension_numbers<[1], [0], [0], [1], [0, 0, 1, 1], [], []>} : vector<16x8xbf16>, vector<8x32xbf16>, vector<16x32xf32> -> vector<16x32xf32>
    %151 = arith.addf %116, %150 : vector<16x32xf32>
    %152 = arith.addf %9, %151 : vector<16x32xf32>
    %cst_71 = arith.constant dense<0.000000e+00> : vector<16xf32>
    %153 = vector.multi_reduction <add>, %152, %cst_71 [1] : vector<16x32xf32> to vector<16xf32>
    %154 = vector.shape_cast %153 : vector<16xf32> to vector<16x1xf32>
    %cst_72 = arith.constant 3.200000e+01 : f32
    %155 = vector.broadcast %cst_72 : f32 to vector<16x1xf32>
    %156 = arith.divf %154, %155 : vector<16x1xf32>
    %157 = vector.broadcast %156 : vector<16x1xf32> to vector<16x32xf32>
    %158 = arith.subf %152, %157 : vector<16x32xf32>
    %159 = arith.mulf %158, %158 : vector<16x32xf32>
    %cst_73 = arith.constant dense<0.000000e+00> : vector<16xf32>
    %160 = vector.multi_reduction <add>, %159, %cst_73 [1] : vector<16x32xf32> to vector<16xf32>
    %161 = vector.shape_cast %160 : vector<16xf32> to vector<16x1xf32>
    %cst_74 = arith.constant 3.200000e+01 : f32
    %162 = vector.broadcast %cst_74 : f32 to vector<16x1xf32>
    %163 = arith.divf %161, %162 : vector<16x1xf32>
    %cst_75 = arith.constant 9.99999974E-6 : f32
    %164 = vector.broadcast %cst_75 : f32 to vector<16x1xf32>
    %165 = arith.addf %163, %164 : vector<16x1xf32>
    %166 = math.rsqrt %165 : vector<16x1xf32>
    %167 = vector.broadcast %166 : vector<16x1xf32> to vector<16x32xf32>
    %168 = arith.mulf %158, %167 : vector<16x32xf32>
    %169 = vector.broadcast %1 : vector<1x32xf32> to vector<16x32xf32>
    %170 = arith.mulf %168, %169 : vector<16x32xf32>
    %171 = vector.broadcast %2 : vector<1x32xf32> to vector<16x32xf32>
    %172 = arith.addf %170, %171 : vector<16x32xf32>
    %173 = arith.truncf %172 : vector<16x32xf32> to vector<16x32xbf16>
    %cst_76 = arith.constant dense<0.000000e+00> : vector<16x32xf32>
    %174 = tpu.matmul %173, %7, %cst_76 {dimension_numbers = #tpu.dot_dimension_numbers<[1], [0], [0], [1], [0, 0, 1, 1], [], []>} : vector<16x32xbf16>, vector<32x32xbf16>, vector<16x32xf32> -> vector<16x32xf32>
    %175 = vector.broadcast %3 : vector<1x32xf32> to vector<16x32xf32>
    %176 = arith.addf %174, %175 : vector<16x32xf32>
    %cst_77 = arith.constant 5.000000e-01 : f32
    %177 = vector.broadcast %cst_77 : f32 to vector<16x32xf32>
    %178 = arith.mulf %177, %176 : vector<16x32xf32>
    %cst_78 = arith.constant 4.471500e-02 : f32
    %179 = vector.broadcast %cst_78 : f32 to vector<16x32xf32>
    %180 = arith.mulf %179, %176 : vector<16x32xf32>
    %181 = arith.mulf %180, %176 : vector<16x32xf32>
    %182 = arith.mulf %181, %176 : vector<16x32xf32>
    %183 = arith.addf %176, %182 : vector<16x32xf32>
    %cst_79 = arith.constant 0.797884583 : f32
    %184 = vector.broadcast %cst_79 : f32 to vector<16x32xf32>
    %185 = arith.mulf %184, %183 : vector<16x32xf32>
    %186 = math.tanh %185 : vector<16x32xf32>
    %cst_80 = arith.constant 1.000000e+00 : f32
    %187 = vector.broadcast %cst_80 : f32 to vector<16x32xf32>
    %188 = arith.addf %187, %186 : vector<16x32xf32>
    %189 = arith.mulf %178, %188 : vector<16x32xf32>
    %190 = arith.truncf %189 : vector<16x32xf32> to vector<16x32xbf16>
    %cst_81 = arith.constant dense<0.000000e+00> : vector<16x32xf32>
    %191 = tpu.matmul %190, %8, %cst_81 {dimension_numbers = #tpu.dot_dimension_numbers<[1], [0], [0], [1], [0, 0, 1, 1], [], []>} : vector<16x32xbf16>, vector<32x32xbf16>, vector<16x32xf32> -> vector<16x32xf32>
    %192 = vector.broadcast %4 : vector<1x32xf32> to vector<16x32xf32>
    %193 = arith.addf %191, %192 : vector<16x32xf32>
    %194 = arith.addf %172, %193 : vector<16x32xf32>
    %cst_82 = arith.constant dense<0.000000e+00> : vector<16xf32>
    %195 = vector.multi_reduction <add>, %194, %cst_82 [1] : vector<16x32xf32> to vector<16xf32>
    %196 = vector.shape_cast %195 : vector<16xf32> to vector<16x1xf32>
    %cst_83 = arith.constant 3.200000e+01 : f32
    %197 = vector.broadcast %cst_83 : f32 to vector<16x1xf32>
    %198 = arith.divf %196, %197 : vector<16x1xf32>
    %199 = vector.broadcast %198 : vector<16x1xf32> to vector<16x32xf32>
    %200 = arith.subf %194, %199 : vector<16x32xf32>
    %201 = arith.mulf %200, %200 : vector<16x32xf32>
    %cst_84 = arith.constant dense<0.000000e+00> : vector<16xf32>
    %202 = vector.multi_reduction <add>, %201, %cst_84 [1] : vector<16x32xf32> to vector<16xf32>
    %203 = vector.shape_cast %202 : vector<16xf32> to vector<16x1xf32>
    %cst_85 = arith.constant 3.200000e+01 : f32
    %204 = vector.broadcast %cst_85 : f32 to vector<16x1xf32>
    %205 = arith.divf %203, %204 : vector<16x1xf32>
    %cst_86 = arith.constant 9.99999974E-6 : f32
    %206 = vector.broadcast %cst_86 : f32 to vector<16x1xf32>
    %207 = arith.addf %205, %206 : vector<16x1xf32>
    %208 = math.rsqrt %207 : vector<16x1xf32>
    %209 = vector.broadcast %208 : vector<16x1xf32> to vector<16x32xf32>
    %210 = arith.mulf %200, %209 : vector<16x32xf32>
    %211 = vector.broadcast %5 : vector<1x32xf32> to vector<16x32xf32>
    %212 = arith.mulf %210, %211 : vector<16x32xf32>
    %213 = vector.broadcast %6 : vector<1x32xf32> to vector<16x32xf32>
    %214 = arith.addf %212, %213 : vector<16x32xf32>
    %215 = arith.truncf %214 : vector<16x32xf32> to vector<16x32xbf16>
    %c0_87 = arith.constant 0 : index
    %c0_88 = arith.constant 0 : index
    %216 = vector.load %arg1[%c0_87, %c0_88] : memref<608x32xbf16, #tpu.memory_space<vmem>>, vector<32x8xbf16>
    %cst_89 = arith.constant dense<0.000000e+00> : vector<16x8xf32>
    %217 = tpu.matmul %215, %216, %cst_89 {dimension_numbers = #tpu.dot_dimension_numbers<[1], [0], [0], [1], [0, 0, 1, 1], [], []>} : vector<16x32xbf16>, vector<32x8xbf16>, vector<16x8xf32> -> vector<16x8xf32>
    %c0_90 = arith.constant 0 : index
    %c0_91 = arith.constant 0 : index
    %218 = vector.load %arg2[%c0_90, %c0_91] : memref<24x32xf32, #tpu.memory_space<vmem>>, vector<1x8xf32>
    %219 = vector.broadcast %218 : vector<1x8xf32> to vector<16x8xf32>
    %220 = arith.addf %217, %219 : vector<16x8xf32>
    %c128_92 = arith.constant 128 : index
    %c0_93 = arith.constant 0 : index
    %221 = vector.load %arg1[%c128_92, %c0_93] : memref<608x32xbf16, #tpu.memory_space<vmem>>, vector<32x8xbf16>
    %cst_94 = arith.constant dense<0.000000e+00> : vector<16x8xf32>
    %222 = tpu.matmul %215, %221, %cst_94 {dimension_numbers = #tpu.dot_dimension_numbers<[1], [0], [0], [1], [0, 0, 1, 1], [], []>} : vector<16x32xbf16>, vector<32x8xbf16>, vector<16x8xf32> -> vector<16x8xf32>
    %c4_95 = arith.constant 4 : index
    %c0_96 = arith.constant 0 : index
    %223 = vector.load %arg2[%c4_95, %c0_96] : memref<24x32xf32, #tpu.memory_space<vmem>>, vector<1x8xf32>
    %224 = vector.broadcast %223 : vector<1x8xf32> to vector<16x8xf32>
    %225 = arith.addf %222, %224 : vector<16x8xf32>
    %c256_97 = arith.constant 256 : index
    %c0_98 = arith.constant 0 : index
    %226 = vector.load %arg1[%c256_97, %c0_98] : memref<608x32xbf16, #tpu.memory_space<vmem>>, vector<32x8xbf16>
    %cst_99 = arith.constant dense<0.000000e+00> : vector<16x8xf32>
    %227 = tpu.matmul %215, %226, %cst_99 {dimension_numbers = #tpu.dot_dimension_numbers<[1], [0], [0], [1], [0, 0, 1, 1], [], []>} : vector<16x32xbf16>, vector<32x8xbf16>, vector<16x8xf32> -> vector<16x8xf32>
    %c8_100 = arith.constant 8 : index
    %c0_101 = arith.constant 0 : index
    %228 = vector.load %arg2[%c8_100, %c0_101] : memref<24x32xf32, #tpu.memory_space<vmem>>, vector<1x8xf32>
    %229 = vector.broadcast %228 : vector<1x8xf32> to vector<16x8xf32>
    %230 = arith.addf %227, %229 : vector<16x8xf32>
    %231 = vector.shape_cast %220 : vector<16x8xf32> to vector<2x8x8xf32>
    %232 = vector.shape_cast %225 : vector<16x8xf32> to vector<2x8x8xf32>
    %233 = vector.shape_cast %230 : vector<16x8xf32> to vector<2x8x8xf32>
    "tpu.trace_start"() <{level = 10 : i32, message = "bqd,bkd->bqk"}> : () -> ()
    %cst_102 = arith.constant dense<0.000000e+00> : vector<2x8x8xf32>
    %234 = tpu.matmul %231, %232, %cst_102 {dimension_numbers = #tpu.dot_dimension_numbers<[2], [2], [1], [1], [0, 0, 0, 1, 1, 1], [0], [0]>} : vector<2x8x8xf32>, vector<2x8x8xf32>, vector<2x8x8xf32> -> vector<2x8x8xf32>
    "tpu.trace_stop"() : () -> ()
    %cst_103 = arith.constant dense<0xFF800000> : vector<2x8xf32>
    %235 = vector.multi_reduction <maximumf>, %234, %cst_103 [2] : vector<2x8x8xf32> to vector<2x8xf32>
    %236 = vector.shape_cast %235 : vector<2x8xf32> to vector<2x8x1xf32>
    %237 = vector.broadcast %236 : vector<2x8x1xf32> to vector<2x8x8xf32>
    %238 = arith.subf %234, %237 : vector<2x8x8xf32>
    %239 = math.exp %238 : vector<2x8x8xf32>
    %cst_104 = arith.constant dense<0.000000e+00> : vector<2x8xf32>
    %240 = vector.multi_reduction <add>, %239, %cst_104 [2] : vector<2x8x8xf32> to vector<2x8xf32>
    %241 = vector.shape_cast %240 : vector<2x8xf32> to vector<2x8x1xf32>
    %242 = tpu.reciprocal %241 {approx = true} : vector<2x8x1xf32> -> vector<2x8x1xf32>
    %243 = vector.broadcast %242 : vector<2x8x1xf32> to vector<2x8x8xf32>
    %244 = arith.mulf %239, %243 : vector<2x8x8xf32>
    "tpu.trace_start"() <{level = 10 : i32, message = "bqk,bkd->bqd"}> : () -> ()
    %cst_105 = arith.constant dense<0.000000e+00> : vector<2x8x8xf32>
    %245 = tpu.matmul %244, %233, %cst_105 {dimension_numbers = #tpu.dot_dimension_numbers<[2], [1], [1], [2], [0, 0, 0, 1, 1, 2], [0], [0]>} : vector<2x8x8xf32>, vector<2x8x8xf32>, vector<2x8x8xf32> -> vector<2x8x8xf32>
    "tpu.trace_stop"() : () -> ()
    %246 = vector.shape_cast %245 : vector<2x8x8xf32> to vector<16x8xf32>
    %247 = arith.truncf %246 : vector<16x8xf32> to vector<16x8xbf16>
    %c384_106 = arith.constant 384 : index
    %c0_107 = arith.constant 0 : index
    %248 = vector.load %arg1[%c384_106, %c0_107] : memref<608x32xbf16, #tpu.memory_space<vmem>>, vector<8x32xbf16>
    %cst_108 = arith.constant dense<0.000000e+00> : vector<16x32xf32>
    %249 = tpu.matmul %247, %248, %cst_108 {dimension_numbers = #tpu.dot_dimension_numbers<[1], [0], [0], [1], [0, 0, 1, 1], [], []>} : vector<16x8xbf16>, vector<8x32xbf16>, vector<16x32xf32> -> vector<16x32xf32>
    %250 = vector.broadcast %0 : vector<1x32xf32> to vector<16x32xf32>
    %251 = arith.addf %250, %249 : vector<16x32xf32>
    %c32_109 = arith.constant 32 : index
    %c0_110 = arith.constant 0 : index
    %252 = vector.load %arg1[%c32_109, %c0_110] : memref<608x32xbf16, #tpu.memory_space<vmem>>, vector<32x8xbf16>
    %cst_111 = arith.constant dense<0.000000e+00> : vector<16x8xf32>
    %253 = tpu.matmul %215, %252, %cst_111 {dimension_numbers = #tpu.dot_dimension_numbers<[1], [0], [0], [1], [0, 0, 1, 1], [], []>} : vector<16x32xbf16>, vector<32x8xbf16>, vector<16x8xf32> -> vector<16x8xf32>
    %c1_112 = arith.constant 1 : index
    %c0_113 = arith.constant 0 : index
    %254 = vector.load %arg2[%c1_112, %c0_113] : memref<24x32xf32, #tpu.memory_space<vmem>>, vector<1x8xf32>
    %255 = vector.broadcast %254 : vector<1x8xf32> to vector<16x8xf32>
    %256 = arith.addf %253, %255 : vector<16x8xf32>
    %c160_114 = arith.constant 160 : index
    %c0_115 = arith.constant 0 : index
    %257 = vector.load %arg1[%c160_114, %c0_115] : memref<608x32xbf16, #tpu.memory_space<vmem>>, vector<32x8xbf16>
    %cst_116 = arith.constant dense<0.000000e+00> : vector<16x8xf32>
    %258 = tpu.matmul %215, %257, %cst_116 {dimension_numbers = #tpu.dot_dimension_numbers<[1], [0], [0], [1], [0, 0, 1, 1], [], []>} : vector<16x32xbf16>, vector<32x8xbf16>, vector<16x8xf32> -> vector<16x8xf32>
    %c5_117 = arith.constant 5 : index
    %c0_118 = arith.constant 0 : index
    %259 = vector.load %arg2[%c5_117, %c0_118] : memref<24x32xf32, #tpu.memory_space<vmem>>, vector<1x8xf32>
    %260 = vector.broadcast %259 : vector<1x8xf32> to vector<16x8xf32>
    %261 = arith.addf %258, %260 : vector<16x8xf32>
    %c288_119 = arith.constant 288 : index
    %c0_120 = arith.constant 0 : index
    %262 = vector.load %arg1[%c288_119, %c0_120] : memref<608x32xbf16, #tpu.memory_space<vmem>>, vector<32x8xbf16>
    %cst_121 = arith.constant dense<0.000000e+00> : vector<16x8xf32>
    %263 = tpu.matmul %215, %262, %cst_121 {dimension_numbers = #tpu.dot_dimension_numbers<[1], [0], [0], [1], [0, 0, 1, 1], [], []>} : vector<16x32xbf16>, vector<32x8xbf16>, vector<16x8xf32> -> vector<16x8xf32>
    %c9_122 = arith.constant 9 : index
    %c0_123 = arith.constant 0 : index
    %264 = vector.load %arg2[%c9_122, %c0_123] : memref<24x32xf32, #tpu.memory_space<vmem>>, vector<1x8xf32>
    %265 = vector.broadcast %264 : vector<1x8xf32> to vector<16x8xf32>
    %266 = arith.addf %263, %265 : vector<16x8xf32>
    %267 = vector.shape_cast %256 : vector<16x8xf32> to vector<2x8x8xf32>
    %268 = vector.shape_cast %261 : vector<16x8xf32> to vector<2x8x8xf32>
    %269 = vector.shape_cast %266 : vector<16x8xf32> to vector<2x8x8xf32>
    "tpu.trace_start"() <{level = 10 : i32, message = "bqd,bkd->bqk"}> : () -> ()
    %cst_124 = arith.constant dense<0.000000e+00> : vector<2x8x8xf32>
    %270 = tpu.matmul %267, %268, %cst_124 {dimension_numbers = #tpu.dot_dimension_numbers<[2], [2], [1], [1], [0, 0, 0, 1, 1, 1], [0], [0]>} : vector<2x8x8xf32>, vector<2x8x8xf32>, vector<2x8x8xf32> -> vector<2x8x8xf32>
    "tpu.trace_stop"() : () -> ()
    %cst_125 = arith.constant dense<0xFF800000> : vector<2x8xf32>
    %271 = vector.multi_reduction <maximumf>, %270, %cst_125 [2] : vector<2x8x8xf32> to vector<2x8xf32>
    %272 = vector.shape_cast %271 : vector<2x8xf32> to vector<2x8x1xf32>
    %273 = vector.broadcast %272 : vector<2x8x1xf32> to vector<2x8x8xf32>
    %274 = arith.subf %270, %273 : vector<2x8x8xf32>
    %275 = math.exp %274 : vector<2x8x8xf32>
    %cst_126 = arith.constant dense<0.000000e+00> : vector<2x8xf32>
    %276 = vector.multi_reduction <add>, %275, %cst_126 [2] : vector<2x8x8xf32> to vector<2x8xf32>
    %277 = vector.shape_cast %276 : vector<2x8xf32> to vector<2x8x1xf32>
    %278 = tpu.reciprocal %277 {approx = true} : vector<2x8x1xf32> -> vector<2x8x1xf32>
    %279 = vector.broadcast %278 : vector<2x8x1xf32> to vector<2x8x8xf32>
    %280 = arith.mulf %275, %279 : vector<2x8x8xf32>
    "tpu.trace_start"() <{level = 10 : i32, message = "bqk,bkd->bqd"}> : () -> ()
    %cst_127 = arith.constant dense<0.000000e+00> : vector<2x8x8xf32>
    %281 = tpu.matmul %280, %269, %cst_127 {dimension_numbers = #tpu.dot_dimension_numbers<[2], [1], [1], [2], [0, 0, 0, 1, 1, 2], [0], [0]>} : vector<2x8x8xf32>, vector<2x8x8xf32>, vector<2x8x8xf32> -> vector<2x8x8xf32>
    "tpu.trace_stop"() : () -> ()
    %282 = vector.shape_cast %281 : vector<2x8x8xf32> to vector<16x8xf32>
    %283 = arith.truncf %282 : vector<16x8xf32> to vector<16x8xbf16>
    %c416_128 = arith.constant 416 : index
    %c0_129 = arith.constant 0 : index
    %284 = vector.load %arg1[%c416_128, %c0_129] : memref<608x32xbf16, #tpu.memory_space<vmem>>, vector<8x32xbf16>
    %cst_130 = arith.constant dense<0.000000e+00> : vector<16x32xf32>
    %285 = tpu.matmul %283, %284, %cst_130 {dimension_numbers = #tpu.dot_dimension_numbers<[1], [0], [0], [1], [0, 0, 1, 1], [], []>} : vector<16x8xbf16>, vector<8x32xbf16>, vector<16x32xf32> -> vector<16x32xf32>
    %286 = arith.addf %251, %285 : vector<16x32xf32>
    %c64_131 = arith.constant 64 : index
    %c0_132 = arith.constant 0 : index
    %287 = vector.load %arg1[%c64_131, %c0_132] : memref<608x32xbf16, #tpu.memory_space<vmem>>, vector<32x8xbf16>
    %cst_133 = arith.constant dense<0.000000e+00> : vector<16x8xf32>
    %288 = tpu.matmul %215, %287, %cst_133 {dimension_numbers = #tpu.dot_dimension_numbers<[1], [0], [0], [1], [0, 0, 1, 1], [], []>} : vector<16x32xbf16>, vector<32x8xbf16>, vector<16x8xf32> -> vector<16x8xf32>
    %c2_134 = arith.constant 2 : index
    %c0_135 = arith.constant 0 : index
    %289 = vector.load %arg2[%c2_134, %c0_135] : memref<24x32xf32, #tpu.memory_space<vmem>>, vector<1x8xf32>
    %290 = vector.broadcast %289 : vector<1x8xf32> to vector<16x8xf32>
    %291 = arith.addf %288, %290 : vector<16x8xf32>
    %c192_136 = arith.constant 192 : index
    %c0_137 = arith.constant 0 : index
    %292 = vector.load %arg1[%c192_136, %c0_137] : memref<608x32xbf16, #tpu.memory_space<vmem>>, vector<32x8xbf16>
    %cst_138 = arith.constant dense<0.000000e+00> : vector<16x8xf32>
    %293 = tpu.matmul %215, %292, %cst_138 {dimension_numbers = #tpu.dot_dimension_numbers<[1], [0], [0], [1], [0, 0, 1, 1], [], []>} : vector<16x32xbf16>, vector<32x8xbf16>, vector<16x8xf32> -> vector<16x8xf32>
    %c6_139 = arith.constant 6 : index
    %c0_140 = arith.constant 0 : index
    %294 = vector.load %arg2[%c6_139, %c0_140] : memref<24x32xf32, #tpu.memory_space<vmem>>, vector<1x8xf32>
    %295 = vector.broadcast %294 : vector<1x8xf32> to vector<16x8xf32>
    %296 = arith.addf %293, %295 : vector<16x8xf32>
    %c320_141 = arith.constant 320 : index
    %c0_142 = arith.constant 0 : index
    %297 = vector.load %arg1[%c320_141, %c0_142] : memref<608x32xbf16, #tpu.memory_space<vmem>>, vector<32x8xbf16>
    %cst_143 = arith.constant dense<0.000000e+00> : vector<16x8xf32>
    %298 = tpu.matmul %215, %297, %cst_143 {dimension_numbers = #tpu.dot_dimension_numbers<[1], [0], [0], [1], [0, 0, 1, 1], [], []>} : vector<16x32xbf16>, vector<32x8xbf16>, vector<16x8xf32> -> vector<16x8xf32>
    %c10_144 = arith.constant 10 : index
    %c0_145 = arith.constant 0 : index
    %299 = vector.load %arg2[%c10_144, %c0_145] : memref<24x32xf32, #tpu.memory_space<vmem>>, vector<1x8xf32>
    %300 = vector.broadcast %299 : vector<1x8xf32> to vector<16x8xf32>
    %301 = arith.addf %298, %300 : vector<16x8xf32>
    %302 = vector.shape_cast %291 : vector<16x8xf32> to vector<2x8x8xf32>
    %303 = vector.shape_cast %296 : vector<16x8xf32> to vector<2x8x8xf32>
    %304 = vector.shape_cast %301 : vector<16x8xf32> to vector<2x8x8xf32>
    "tpu.trace_start"() <{level = 10 : i32, message = "bqd,bkd->bqk"}> : () -> ()
    %cst_146 = arith.constant dense<0.000000e+00> : vector<2x8x8xf32>
    %305 = tpu.matmul %302, %303, %cst_146 {dimension_numbers = #tpu.dot_dimension_numbers<[2], [2], [1], [1], [0, 0, 0, 1, 1, 1], [0], [0]>} : vector<2x8x8xf32>, vector<2x8x8xf32>, vector<2x8x8xf32> -> vector<2x8x8xf32>
    "tpu.trace_stop"() : () -> ()
    %cst_147 = arith.constant dense<0xFF800000> : vector<2x8xf32>
    %306 = vector.multi_reduction <maximumf>, %305, %cst_147 [2] : vector<2x8x8xf32> to vector<2x8xf32>
    %307 = vector.shape_cast %306 : vector<2x8xf32> to vector<2x8x1xf32>
    %308 = vector.broadcast %307 : vector<2x8x1xf32> to vector<2x8x8xf32>
    %309 = arith.subf %305, %308 : vector<2x8x8xf32>
    %310 = math.exp %309 : vector<2x8x8xf32>
    %cst_148 = arith.constant dense<0.000000e+00> : vector<2x8xf32>
    %311 = vector.multi_reduction <add>, %310, %cst_148 [2] : vector<2x8x8xf32> to vector<2x8xf32>
    %312 = vector.shape_cast %311 : vector<2x8xf32> to vector<2x8x1xf32>
    %313 = tpu.reciprocal %312 {approx = true} : vector<2x8x1xf32> -> vector<2x8x1xf32>
    %314 = vector.broadcast %313 : vector<2x8x1xf32> to vector<2x8x8xf32>
    %315 = arith.mulf %310, %314 : vector<2x8x8xf32>
    "tpu.trace_start"() <{level = 10 : i32, message = "bqk,bkd->bqd"}> : () -> ()
    %cst_149 = arith.constant dense<0.000000e+00> : vector<2x8x8xf32>
    %316 = tpu.matmul %315, %304, %cst_149 {dimension_numbers = #tpu.dot_dimension_numbers<[2], [1], [1], [2], [0, 0, 0, 1, 1, 2], [0], [0]>} : vector<2x8x8xf32>, vector<2x8x8xf32>, vector<2x8x8xf32> -> vector<2x8x8xf32>
    "tpu.trace_stop"() : () -> ()
    %317 = vector.shape_cast %316 : vector<2x8x8xf32> to vector<16x8xf32>
    %318 = arith.truncf %317 : vector<16x8xf32> to vector<16x8xbf16>
    %c448_150 = arith.constant 448 : index
    %c0_151 = arith.constant 0 : index
    %319 = vector.load %arg1[%c448_150, %c0_151] : memref<608x32xbf16, #tpu.memory_space<vmem>>, vector<8x32xbf16>
    %cst_152 = arith.constant dense<0.000000e+00> : vector<16x32xf32>
    %320 = tpu.matmul %318, %319, %cst_152 {dimension_numbers = #tpu.dot_dimension_numbers<[1], [0], [0], [1], [0, 0, 1, 1], [], []>} : vector<16x8xbf16>, vector<8x32xbf16>, vector<16x32xf32> -> vector<16x32xf32>
    %321 = arith.addf %286, %320 : vector<16x32xf32>
    %c96_153 = arith.constant 96 : index
    %c0_154 = arith.constant 0 : index
    %322 = vector.load %arg1[%c96_153, %c0_154] : memref<608x32xbf16, #tpu.memory_space<vmem>>, vector<32x8xbf16>
    %cst_155 = arith.constant dense<0.000000e+00> : vector<16x8xf32>
    %323 = tpu.matmul %215, %322, %cst_155 {dimension_numbers = #tpu.dot_dimension_numbers<[1], [0], [0], [1], [0, 0, 1, 1], [], []>} : vector<16x32xbf16>, vector<32x8xbf16>, vector<16x8xf32> -> vector<16x8xf32>
    %c3_156 = arith.constant 3 : index
    %c0_157 = arith.constant 0 : index
    %324 = vector.load %arg2[%c3_156, %c0_157] : memref<24x32xf32, #tpu.memory_space<vmem>>, vector<1x8xf32>
    %325 = vector.broadcast %324 : vector<1x8xf32> to vector<16x8xf32>
    %326 = arith.addf %323, %325 : vector<16x8xf32>
    %c224_158 = arith.constant 224 : index
    %c0_159 = arith.constant 0 : index
    %327 = vector.load %arg1[%c224_158, %c0_159] : memref<608x32xbf16, #tpu.memory_space<vmem>>, vector<32x8xbf16>
    %cst_160 = arith.constant dense<0.000000e+00> : vector<16x8xf32>
    %328 = tpu.matmul %215, %327, %cst_160 {dimension_numbers = #tpu.dot_dimension_numbers<[1], [0], [0], [1], [0, 0, 1, 1], [], []>} : vector<16x32xbf16>, vector<32x8xbf16>, vector<16x8xf32> -> vector<16x8xf32>
    %c7_161 = arith.constant 7 : index
    %c0_162 = arith.constant 0 : index
    %329 = vector.load %arg2[%c7_161, %c0_162] : memref<24x32xf32, #tpu.memory_space<vmem>>, vector<1x8xf32>
    %330 = vector.broadcast %329 : vector<1x8xf32> to vector<16x8xf32>
    %331 = arith.addf %328, %330 : vector<16x8xf32>
    %c352_163 = arith.constant 352 : index
    %c0_164 = arith.constant 0 : index
    %332 = vector.load %arg1[%c352_163, %c0_164] : memref<608x32xbf16, #tpu.memory_space<vmem>>, vector<32x8xbf16>
    %cst_165 = arith.constant dense<0.000000e+00> : vector<16x8xf32>
    %333 = tpu.matmul %215, %332, %cst_165 {dimension_numbers = #tpu.dot_dimension_numbers<[1], [0], [0], [1], [0, 0, 1, 1], [], []>} : vector<16x32xbf16>, vector<32x8xbf16>, vector<16x8xf32> -> vector<16x8xf32>
    %c11_166 = arith.constant 11 : index
    %c0_167 = arith.constant 0 : index
    %334 = vector.load %arg2[%c11_166, %c0_167] : memref<24x32xf32, #tpu.memory_space<vmem>>, vector<1x8xf32>
    %335 = vector.broadcast %334 : vector<1x8xf32> to vector<16x8xf32>
    %336 = arith.addf %333, %335 : vector<16x8xf32>
    %337 = vector.shape_cast %326 : vector<16x8xf32> to vector<2x8x8xf32>
    %338 = vector.shape_cast %331 : vector<16x8xf32> to vector<2x8x8xf32>
    %339 = vector.shape_cast %336 : vector<16x8xf32> to vector<2x8x8xf32>
    "tpu.trace_start"() <{level = 10 : i32, message = "bqd,bkd->bqk"}> : () -> ()
    %cst_168 = arith.constant dense<0.000000e+00> : vector<2x8x8xf32>
    %340 = tpu.matmul %337, %338, %cst_168 {dimension_numbers = #tpu.dot_dimension_numbers<[2], [2], [1], [1], [0, 0, 0, 1, 1, 1], [0], [0]>} : vector<2x8x8xf32>, vector<2x8x8xf32>, vector<2x8x8xf32> -> vector<2x8x8xf32>
    "tpu.trace_stop"() : () -> ()
    %cst_169 = arith.constant dense<0xFF800000> : vector<2x8xf32>
    %341 = vector.multi_reduction <maximumf>, %340, %cst_169 [2] : vector<2x8x8xf32> to vector<2x8xf32>
    %342 = vector.shape_cast %341 : vector<2x8xf32> to vector<2x8x1xf32>
    %343 = vector.broadcast %342 : vector<2x8x1xf32> to vector<2x8x8xf32>
    %344 = arith.subf %340, %343 : vector<2x8x8xf32>
    %345 = math.exp %344 : vector<2x8x8xf32>
    %cst_170 = arith.constant dense<0.000000e+00> : vector<2x8xf32>
    %346 = vector.multi_reduction <add>, %345, %cst_170 [2] : vector<2x8x8xf32> to vector<2x8xf32>
    %347 = vector.shape_cast %346 : vector<2x8xf32> to vector<2x8x1xf32>
    %348 = tpu.reciprocal %347 {approx = true} : vector<2x8x1xf32> -> vector<2x8x1xf32>
    %349 = vector.broadcast %348 : vector<2x8x1xf32> to vector<2x8x8xf32>
    %350 = arith.mulf %345, %349 : vector<2x8x8xf32>
    "tpu.trace_start"() <{level = 10 : i32, message = "bqk,bkd->bqd"}> : () -> ()
    %cst_171 = arith.constant dense<0.000000e+00> : vector<2x8x8xf32>
    %351 = tpu.matmul %350, %339, %cst_171 {dimension_numbers = #tpu.dot_dimension_numbers<[2], [1], [1], [2], [0, 0, 0, 1, 1, 2], [0], [0]>} : vector<2x8x8xf32>, vector<2x8x8xf32>, vector<2x8x8xf32> -> vector<2x8x8xf32>
    "tpu.trace_stop"() : () -> ()
    %352 = vector.shape_cast %351 : vector<2x8x8xf32> to vector<16x8xf32>
    %353 = arith.truncf %352 : vector<16x8xf32> to vector<16x8xbf16>
    %c480_172 = arith.constant 480 : index
    %c0_173 = arith.constant 0 : index
    %354 = vector.load %arg1[%c480_172, %c0_173] : memref<608x32xbf16, #tpu.memory_space<vmem>>, vector<8x32xbf16>
    %cst_174 = arith.constant dense<0.000000e+00> : vector<16x32xf32>
    %355 = tpu.matmul %353, %354, %cst_174 {dimension_numbers = #tpu.dot_dimension_numbers<[1], [0], [0], [1], [0, 0, 1, 1], [], []>} : vector<16x8xbf16>, vector<8x32xbf16>, vector<16x32xf32> -> vector<16x32xf32>
    %356 = arith.addf %321, %355 : vector<16x32xf32>
    %357 = arith.addf %214, %356 : vector<16x32xf32>
    %cst_175 = arith.constant dense<0.000000e+00> : vector<16xf32>
    %358 = vector.multi_reduction <add>, %357, %cst_175 [1] : vector<16x32xf32> to vector<16xf32>
    %359 = vector.shape_cast %358 : vector<16xf32> to vector<16x1xf32>
    %cst_176 = arith.constant 3.200000e+01 : f32
    %360 = vector.broadcast %cst_176 : f32 to vector<16x1xf32>
    %361 = arith.divf %359, %360 : vector<16x1xf32>
    %362 = vector.broadcast %361 : vector<16x1xf32> to vector<16x32xf32>
    %363 = arith.subf %357, %362 : vector<16x32xf32>
    %364 = arith.mulf %363, %363 : vector<16x32xf32>
    %cst_177 = arith.constant dense<0.000000e+00> : vector<16xf32>
    %365 = vector.multi_reduction <add>, %364, %cst_177 [1] : vector<16x32xf32> to vector<16xf32>
    %366 = vector.shape_cast %365 : vector<16xf32> to vector<16x1xf32>
    %cst_178 = arith.constant 3.200000e+01 : f32
    %367 = vector.broadcast %cst_178 : f32 to vector<16x1xf32>
    %368 = arith.divf %366, %367 : vector<16x1xf32>
    %cst_179 = arith.constant 9.99999974E-6 : f32
    %369 = vector.broadcast %cst_179 : f32 to vector<16x1xf32>
    %370 = arith.addf %368, %369 : vector<16x1xf32>
    %371 = math.rsqrt %370 : vector<16x1xf32>
    %372 = vector.broadcast %371 : vector<16x1xf32> to vector<16x32xf32>
    %373 = arith.mulf %363, %372 : vector<16x32xf32>
    %374 = vector.broadcast %1 : vector<1x32xf32> to vector<16x32xf32>
    %375 = arith.mulf %373, %374 : vector<16x32xf32>
    %376 = vector.broadcast %2 : vector<1x32xf32> to vector<16x32xf32>
    %377 = arith.addf %375, %376 : vector<16x32xf32>
    %378 = arith.truncf %377 : vector<16x32xf32> to vector<16x32xbf16>
    %cst_180 = arith.constant dense<0.000000e+00> : vector<16x32xf32>
    %379 = tpu.matmul %378, %7, %cst_180 {dimension_numbers = #tpu.dot_dimension_numbers<[1], [0], [0], [1], [0, 0, 1, 1], [], []>} : vector<16x32xbf16>, vector<32x32xbf16>, vector<16x32xf32> -> vector<16x32xf32>
    %380 = vector.broadcast %3 : vector<1x32xf32> to vector<16x32xf32>
    %381 = arith.addf %379, %380 : vector<16x32xf32>
    %cst_181 = arith.constant 5.000000e-01 : f32
    %382 = vector.broadcast %cst_181 : f32 to vector<16x32xf32>
    %383 = arith.mulf %382, %381 : vector<16x32xf32>
    %cst_182 = arith.constant 4.471500e-02 : f32
    %384 = vector.broadcast %cst_182 : f32 to vector<16x32xf32>
    %385 = arith.mulf %384, %381 : vector<16x32xf32>
    %386 = arith.mulf %385, %381 : vector<16x32xf32>
    %387 = arith.mulf %386, %381 : vector<16x32xf32>
    %388 = arith.addf %381, %387 : vector<16x32xf32>
    %cst_183 = arith.constant 0.797884583 : f32
    %389 = vector.broadcast %cst_183 : f32 to vector<16x32xf32>
    %390 = arith.mulf %389, %388 : vector<16x32xf32>
    %391 = math.tanh %390 : vector<16x32xf32>
    %cst_184 = arith.constant 1.000000e+00 : f32
    %392 = vector.broadcast %cst_184 : f32 to vector<16x32xf32>
    %393 = arith.addf %392, %391 : vector<16x32xf32>
    %394 = arith.mulf %383, %393 : vector<16x32xf32>
    %395 = arith.truncf %394 : vector<16x32xf32> to vector<16x32xbf16>
    %cst_185 = arith.constant dense<0.000000e+00> : vector<16x32xf32>
    %396 = tpu.matmul %395, %8, %cst_185 {dimension_numbers = #tpu.dot_dimension_numbers<[1], [0], [0], [1], [0, 0, 1, 1], [], []>} : vector<16x32xbf16>, vector<32x32xbf16>, vector<16x32xf32> -> vector<16x32xf32>
    %397 = vector.broadcast %4 : vector<1x32xf32> to vector<16x32xf32>
    %398 = arith.addf %396, %397 : vector<16x32xf32>
    %399 = arith.addf %377, %398 : vector<16x32xf32>
    %cst_186 = arith.constant dense<0.000000e+00> : vector<16xf32>
    %400 = vector.multi_reduction <add>, %399, %cst_186 [1] : vector<16x32xf32> to vector<16xf32>
    %401 = vector.shape_cast %400 : vector<16xf32> to vector<16x1xf32>
    %cst_187 = arith.constant 3.200000e+01 : f32
    %402 = vector.broadcast %cst_187 : f32 to vector<16x1xf32>
    %403 = arith.divf %401, %402 : vector<16x1xf32>
    %404 = vector.broadcast %403 : vector<16x1xf32> to vector<16x32xf32>
    %405 = arith.subf %399, %404 : vector<16x32xf32>
    %406 = arith.mulf %405, %405 : vector<16x32xf32>
    %cst_188 = arith.constant dense<0.000000e+00> : vector<16xf32>
    %407 = vector.multi_reduction <add>, %406, %cst_188 [1] : vector<16x32xf32> to vector<16xf32>
    %408 = vector.shape_cast %407 : vector<16xf32> to vector<16x1xf32>
    %cst_189 = arith.constant 3.200000e+01 : f32
    %409 = vector.broadcast %cst_189 : f32 to vector<16x1xf32>
    %410 = arith.divf %408, %409 : vector<16x1xf32>
    %cst_190 = arith.constant 9.99999974E-6 : f32
    %411 = vector.broadcast %cst_190 : f32 to vector<16x1xf32>
    %412 = arith.addf %410, %411 : vector<16x1xf32>
    %413 = math.rsqrt %412 : vector<16x1xf32>
    %414 = vector.broadcast %413 : vector<16x1xf32> to vector<16x32xf32>
    %415 = arith.mulf %405, %414 : vector<16x32xf32>
    %416 = vector.broadcast %5 : vector<1x32xf32> to vector<16x32xf32>
    %417 = arith.mulf %415, %416 : vector<16x32xf32>
    %418 = vector.broadcast %6 : vector<1x32xf32> to vector<16x32xf32>
    %419 = arith.addf %417, %418 : vector<16x32xf32>
    %c0_191 = arith.constant 0 : index
    %c0_192 = arith.constant 0 : index
    %420 = vector.load %arg3[%c0_191, %c0_192] : memref<16x32xf32, #tpu.memory_space<vmem>>, vector<16x32xf32>
    tpu.vector_store %arg3[%c0_191, %c0_192], %419 {strides = array<i32>} : memref<16x32xf32, #tpu.memory_space<vmem>>, vector<16x32xf32>,
    %421 = vector.shape_cast %419 : vector<16x32xf32> to vector<2x8x32xf32>
    %cst_193 = arith.constant dense<0.000000e+00> : vector<2x32xf32>
    %422 = vector.multi_reduction <add>, %421, %cst_193 [1] : vector<2x8x32xf32> to vector<2x32xf32>
    %cst_194 = arith.constant 8.000000e+00 : f32
    %423 = vector.broadcast %cst_194 : f32 to vector<2x32xf32>
    %424 = arith.divf %422, %423 : vector<2x32xf32>
    %425 = arith.truncf %424 : vector<2x32xf32> to vector<2x32xbf16>
    %c576 = arith.constant 576 : index
    %c0_195 = arith.constant 0 : index
    %426 = vector.load %arg1[%c576, %c0_195] : memref<608x32xbf16, #tpu.memory_space<vmem>>, vector<32x32xbf16>
    %cst_196 = arith.constant dense<0.000000e+00> : vector<2x32xf32>
    %427 = tpu.matmul %425, %426, %cst_196 {dimension_numbers = #tpu.dot_dimension_numbers<[1], [0], [0], [1], [0, 0, 1, 1], [], []>} : vector<2x32xbf16>, vector<32x32xbf16>, vector<2x32xf32> -> vector<2x32xf32>
    %c19 = arith.constant 19 : index
    %c0_197 = arith.constant 0 : index
    %428 = vector.load %arg2[%c19, %c0_197] : memref<24x32xf32, #tpu.memory_space<vmem>>, vector<1x32xf32>
    %429 = vector.broadcast %428 : vector<1x32xf32> to vector<2x32xf32>
    %430 = arith.addf %427, %429 : vector<2x32xf32>
    %c0_198 = arith.constant 0 : index
    %c0_199 = arith.constant 0 : index
    %431 = vector.load %arg4[%c0_198, %c0_199] : memref<2x32xf32, #tpu.memory_space<vmem>>, vector<2x32xf32>
    tpu.vector_store %arg4[%c0_198, %c0_199], %430 {strides = array<i32>} : memref<2x32xf32, #tpu.memory_space<vmem>>, vector<2x32xf32>,
    return
  }
}

</mosaic_0001>

<llo_original>
// kernel: tpu_custom_call.1
$region0: #{tpu_custom_call.1}
  #allocation0 [shape = 'u32[]', space=smem, size = 0x4, offset = 0x4, fixed_abs, tag = 'smem constant byte address 0x4 - core index']
  #allocation1 [shape = 'u32[144,128]{1,0:T(1,128)}', space=vmem, size = 0x12000, scoped, tag = 'internal scratch']
  %s0 = inlined_call_operand.vmem [shape: f32[16,32], index: 0, kind: input, shape index: {}]
  %s1 = inlined_call_operand.vmem [shape: bf16[608,32], index: 1, kind: input, shape index: {}]
  %s2 = inlined_call_operand.vmem [shape: f32[24,32], index: 2, kind: input, shape index: {}]
  %s3 = inlined_call_operand.hbm [shape: f32[16,32], index: 3, kind: output, shape index: {0}]
  %s4 = inlined_call_operand.hbm [shape: f32[2,32], index: 4, kind: output, shape index: {1}]
  %5 = xla_tuple %s3, %s4
  %s6 = sld [smem:[#allocation0]]
  $region30: #{tpu_custom_call.1} parent=0
    _
  %s8 = ssub.s32 1, %s6
  %s9 = scalar_select 0, %s8, %s6
  $region1: #{tpu_custom_call.1} parent=0
    #allocation2 [shape = 'u8[8192]{0}', space=vmem, size = 0x2000, scoped, tag = 'output window, operand 0, single buffered']
    #allocation3 [shape = 's32[1]{0}', space=sflag, size = 0x4, scoped, tag = 'scoped memory for tpu_custom_call.1']
    #allocation4 [shape = 'u8[1024]{0}', space=vmem, size = 0x400, scoped, tag = 'output window, operand 1, single buffered']
    #allocation5 [shape = 's32[1]{0}', space=sflag, size = 0x4, scoped, tag = 'scoped memory for tpu_custom_call.1']
    %10 = vsyncpa [#allocation3], 0
    %11 = vsyncpa [#allocation5], 0
    // Predicated region
    $region2: #{tpu_custom_call.1} parent=1 // pred_check
      _
    $region3: #{tpu_custom_call.1} parent=1 // pred_check_branch
      %13 = sbr.rel (0) target = $region5
    $region4: #{tpu_custom_call.1} parent=1 // pred_region
      _
    $region5: #{tpu_custom_call.1} parent=1 // pred_fallthru
      _
    // Predicated region
    $region6: #{tpu_custom_call.1} parent=1 // pred_check
      _
    $region7: #{tpu_custom_call.1} parent=1 // pred_check_branch
      %15 = sbr.rel (0) target = $region9
    $region8: #{tpu_custom_call.1} parent=1 // pred_region
      _
    $region9: #{tpu_custom_call.1} parent=1 // pred_fallthru
      _
    // Predicated region
    $region10: #{tpu_custom_call.1} parent=1 // pred_check
      _
    $region11: #{tpu_custom_call.1} parent=1 // pred_check_branch
      %17 = sbr.rel (0) target = $region13
    $region12: #{tpu_custom_call.1} parent=1 // pred_region
      _
    $region13: #{tpu_custom_call.1} parent=1 // pred_fallthru
      _
    %v19 = vld [vmem:[%s2 + $0xc] sm:$0x1]
    %v20 = vld [vmem:[%s2 + $0xd] sm:$0x1]
    %v21 = vld [vmem:[%s2 + $0xe] sm:$0x1]
    %v22 = vld [vmem:[%s2 + $0xf] sm:$0x1]
    %v23 = vld [vmem:[%s2 + $0x10] sm:$0x1]
    %v24 = vld [vmem:[%s2 + $0x11] sm:$0x1]
    %v25 = vld [vmem:[%s2 + $0x12] sm:$0x1]
    %v26 = vld [vmem:[%s1 + $0x100] sm:$0xf]
    %v27 = vld [vmem:[%s1 + $0x104] sm:$0xf]
    %v28 = vld [vmem:[%s1 + $0x108] sm:$0xf]
    %v29 = vld [vmem:[%s1 + $0x10c] sm:$0xf]
    %v30 = vld [vmem:[%s1 + $0x110] sm:$0xf]
    %v31 = vld [vmem:[%s1 + $0x114] sm:$0xf]
    %v32 = vld [vmem:[%s1 + $0x118] sm:$0xf]
    %v33 = vld [vmem:[%s1 + $0x11c] sm:$0xf]
    %v34 = vld [vmem:[%s0] sm:$0xff]
    %v35 = vld [vmem:[%s0 + $0x8] sm:$0xff]
    %v36 = vpack.c.bf16 %v35, %v34
    %v37 = vld [vmem:[%s1] sm:$0xf]
    %v38 = vld [vmem:[%s1 + $0x4] sm:$0xf]
    %v39 = vld [vmem:[%s1 + $0x8] sm:$0xf]
    %v40 = vld [vmem:[%s1 + $0xc] sm:$0xf]
    %v41 = vld [vmem:[%s2] sm:$0x1]
    %v42 = vlaneseq
    %v43 = vshrl.u32 %v42, 7
    %v44 = vsub.s32 0, %v43
    %v45 = vrot.slane %v41, %v44
    %v50 = vunpack.c.l.b16 %v37
    %v51 = vunpack.c.l.b16 %v38
    %v52 = vunpack.c.l.b16 %v39
    %v53 = vunpack.c.l.b16 %v40
    %v54 = vpack.c.b16 %v51, %v50
    %v55 = vpack.c.b16 %v53, %v52
    %vm58 = vcmask 261120
    %v60 = vsel %vm58, %v36, 0
    %62 = vmatprep.subr.bf16.mxu0 0
    %63 = vmatpush1.bf16.msra.mxu0 0
    %64 = vmatprep.subr.bf16.mxu0 0
    %65 = vmatpush1.bf16.msra.mxu0 0
    %66 = vmatprep.subr.bf16.mxu0 0
    %67 = vmatpush1.bf16.msra.mxu0 0
    %68 = vmatprep.subr.bf16.mxu0 0
    %69 = vmatpush1.bf16.msra.mxu0 0
    %70 = vmatprep.subr.bf16.mxu0 0
    %71 = vmatpush1.bf16.msra.mxu0 0
    %72 = vmatprep.subr.bf16.mxu0 0
    %73 = vmatpush1.bf16.msra.mxu0 0
    %74 = vmatprep.subr.bf16.mxu0 0
    %75 = vmatpush1.bf16.msra.mxu0 %v55
    %76 = vmatprep.subr.bf16.mxu0 0
    %77 = vmatpush1.bf16.msra.mxu0 %v54
    %78 = vmatprep.subr.bf16.mxu0 0
    %79 = vmatpush2.bf16.msra.mxu0 0
    %80 = vmatprep.subr.bf16.mxu0 0
    %81 = vmatpush2.bf16.msra.mxu0 0
    %82 = vmatprep.subr.bf16.mxu0 0
    %83 = vmatpush2.bf16.msra.mxu0 0
    %84 = vmatprep.subr.bf16.mxu0 0
    %85 = vmatpush2.bf16.msra.mxu0 0
    %86 = vmatprep.subr.bf16.mxu0 0
    %87 = vmatpush2.bf16.msra.mxu0 0
    %88 = vmatprep.subr.bf16.mxu0 0
    %89 = vmatpush2.bf16.msra.mxu0 0
    %90 = vmatprep.subr.bf16.mxu0 0
    %91 = vmatpush2.bf16.msra.mxu0 0
    %92 = vmatprep.subr.bf16.mxu0 0
    %93 = vmatpush2.bf16.msra.mxu0 0
    %94 = vmatprep.mubr.bf16.mxu0 0
    %95 = vmatmul.mubr.bf16.gmra.mxu0 %v60
    %v96 = vpop.f32.mrf.mxu0
    %v97 = vadd.f32 %v45, %v96
    %v98 = vpop.f32.mrf.mxu0
    %v99 = vpop.f32.mrf.mxu0
    %v100 = vadd.f32 %v45, %v99
    %v101 = vpop.f32.mrf.mxu0
    %102 = vdwg.mxu0
    %v103 = vld [vmem:[%s1 + $0x40] sm:$0xf]
    %v104 = vld [vmem:[%s1 + $0x44] sm:$0xf]
    %v105 = vld [vmem:[%s1 + $0x48] sm:$0xf]
    %v106 = vld [vmem:[%s1 + $0x4c] sm:$0xf]
    %v107 = vld [vmem:[%s2 + $0x4] sm:$0x1]
    %v108 = vlaneseq
    %v109 = vshrl.u32 %v108, 7
    %v110 = vsub.s32 0, %v109
    %v111 = vrot.slane %v107, %v110
    %v116 = vunpack.c.l.b16 %v103
    %v117 = vunpack.c.l.b16 %v104
    %v118 = vunpack.c.l.b16 %v105
    %v119 = vunpack.c.l.b16 %v106
    %v120 = vpack.c.b16 %v117, %v116
    %v121 = vpack.c.b16 %v119, %v118
    %124 = vmatprep.subr.bf16.mxu0 0
    %125 = vmatpush1.bf16.msra.mxu0 0
    %126 = vmatprep.subr.bf16.mxu0 0
    %127 = vmatpush1.bf16.msra.mxu0 0
    %128 = vmatprep.subr.bf16.mxu0 0
    %129 = vmatpush1.bf16.msra.mxu0 0
    %130 = vmatprep.subr.bf16.mxu0 0
    %131 = vmatpush1.bf16.msra.mxu0 0
    %132 = vmatprep.subr.bf16.mxu0 0
    %133 = vmatpush1.bf16.msra.mxu0 0
    %134 = vmatprep.subr.bf16.mxu0 0
    %135 = vmatpush1.bf16.msra.mxu0 0
    %136 = vmatprep.subr.bf16.mxu0 0
    %137 = vmatpush1.bf16.msra.mxu0 %v121
    %138 = vmatprep.subr.bf16.mxu0 0
    %139 = vmatpush1.bf16.msra.mxu0 %v120
    %140 = vmatprep.subr.bf16.mxu0 0
    %141 = vmatpush2.bf16.msra.mxu0 0
    %142 = vmatprep.subr.bf16.mxu0 0
    %143 = vmatpush2.bf16.msra.mxu0 0
    %144 = vmatprep.subr.bf16.mxu0 0
    %145 = vmatpush2.bf16.msra.mxu0 0
    %146 = vmatprep.subr.bf16.mxu0 0
    %147 = vmatpush2.bf16.msra.mxu0 0
    %148 = vmatprep.subr.bf16.mxu0 0
    %149 = vmatpush2.bf16.msra.mxu0 0
    %150 = vmatprep.subr.bf16.mxu0 0
    %151 = vmatpush2.bf16.msra.mxu0 0
    %152 = vmatprep.subr.bf16.mxu0 0
    %153 = vmatpush2.bf16.msra.mxu0 0
    %154 = vmatprep.subr.bf16.mxu0 0
    %155 = vmatpush2.bf16.msra.mxu0 0
    %156 = vmatprep.mubr.bf16.mxu0 0
    %157 = vmatmul.mubr.bf16.gmra.mxu0 %v60
    %v158 = vpop.f32.mrf.mxu0
    %v159 = vadd.f32 %v111, %v158
    %v160 = vpop.f32.mrf.mxu0
    %v161 = vpop.f32.mrf.mxu0
    %v162 = vadd.f32 %v111, %v161
    %v163 = vpop.f32.mrf.mxu0
    %164 = vdwg.mxu0
    %v165 = vld [vmem:[%s1 + $0x80] sm:$0xf]
    %v166 = vld [vmem:[%s1 + $0x84] sm:$0xf]
    %v167 = vld [vmem:[%s1 + $0x88] sm:$0xf]
    %v168 = vld [vmem:[%s1 + $0x8c] sm:$0xf]
    %v169 = vld [vmem:[%s2 + $0x8] sm:$0x1]
    %v170 = vlaneseq
    %v171 = vshrl.u32 %v170, 7
    %v172 = vsub.s32 0, %v171
    %v173 = vrot.slane %v169, %v172
    %v178 = vunpack.c.l.b16 %v165
    %v179 = vunpack.c.l.b16 %v166
    %v180 = vunpack.c.l.b16 %v167
    %v181 = vunpack.c.l.b16 %v168
    %v182 = vpack.c.b16 %v179, %v178
    %v183 = vpack.c.b16 %v181, %v180
    %186 = vmatprep.subr.bf16.mxu0 0
    %187 = vmatpush1.bf16.msra.mxu0 0
    %188 = vmatprep.subr.bf16.mxu0 0
    %189 = vmatpush1.bf16.msra.mxu0 0
    %190 = vmatprep.subr.bf16.mxu0 0
    %191 = vmatpush1.bf16.msra.mxu0 0
    %192 = vmatprep.subr.bf16.mxu0 0
    %193 = vmatpush1.bf16.msra.mxu0 0
    %194 = vmatprep.subr.bf16.mxu0 0
    %195 = vmatpush1.bf16.msra.mxu0 0
    %196 = vmatprep.subr.bf16.mxu0 0
    %197 = vmatpush1.bf16.msra.mxu0 0
    %198 = vmatprep.subr.bf16.mxu0 0
    %199 = vmatpush1.bf16.msra.mxu0 %v183
    %200 = vmatprep.subr.bf16.mxu0 0
    %201 = vmatpush1.bf16.msra.mxu0 %v182
    %202 = vmatprep.subr.bf16.mxu0 0
    %203 = vmatpush2.bf16.msra.mxu0 0
    %204 = vmatprep.subr.bf16.mxu0 0
    %205 = vmatpush2.bf16.msra.mxu0 0
    %206 = vmatprep.subr.bf16.mxu0 0
    %207 = vmatpush2.bf16.msra.mxu0 0
    %208 = vmatprep.subr.bf16.mxu0 0
    %209 = vmatpush2.bf16.msra.mxu0 0
    %210 = vmatprep.subr.bf16.mxu0 0
    %211 = vmatpush2.bf16.msra.mxu0 0
    %212 = vmatprep.subr.bf16.mxu0 0
    %213 = vmatpush2.bf16.msra.mxu0 0
    %214 = vmatprep.subr.bf16.mxu0 0
    %215 = vmatpush2.bf16.msra.mxu0 0
    %216 = vmatprep.subr.bf16.mxu0 0
    %217 = vmatpush2.bf16.msra.mxu0 0
    %218 = vmatprep.mubr.bf16.mxu0 0
    %219 = vmatmul.mubr.bf16.gmra.mxu0 %v60
    %v220 = vpop.f32.mrf.mxu0
    %v221 = vadd.f32 %v173, %v220
    %v222 = vpop.f32.mrf.mxu0
    %v223 = vpop.f32.mrf.mxu0
    %v224 = vadd.f32 %v173, %v223
    %v225 = vpop.f32.mrf.mxu0
    %226 = vdwg.mxu0
    %vm227 = vcmask 64512
    %v229 = vsel %vm227, %v97, 0
    %v232 = vsel %vm227, %v159, 0
    %234 = vmatprep.subr.mxu0 0.0
    %235 = vmatpush1.xpose.msra.mxu0 0.0
    %236 = vmatprep.subr.mxu0 0.0
    %237 = vmatpush1.xpose.msra.mxu0 0.0
    %238 = vmatprep.subr.mxu0 0.0
    %239 = vmatpush1.xpose.msra.mxu0 0.0
    %240 = vmatprep.subr.mxu0 0.0
    %241 = vmatpush1.xpose.msra.mxu0 0.0
    %242 = vmatprep.subr.mxu0 0.0
    %243 = vmatpush1.xpose.msra.mxu0 0.0
    %244 = vmatprep.subr.mxu0 0.0
    %245 = vmatpush1.xpose.msra.mxu0 0.0
    %246 = vmatprep.subr.mxu0 0.0
    %247 = vmatpush1.xpose.msra.mxu0 0.0
    %248 = vmatprep.subr.mxu0 0.0
    %249 = vmatpush1.xpose.msra.mxu0 0.0
    %250 = vmatprep.subr.mxu0 0.0
    %251 = vmatpush1.xpose.msra.mxu0 0.0
    %252 = vmatprep.subr.mxu0 0.0
    %253 = vmatpush1.xpose.msra.mxu0 0.0
    %254 = vmatprep.subr.mxu0 0.0
    %255 = vmatpush1.xpose.msra.mxu0 0.0
    %256 = vmatprep.subr.mxu0 0.0
    %257 = vmatpush1.xpose.msra.mxu0 0.0
    %258 = vmatprep.subr.mxu0 0.0
    %259 = vmatpush1.xpose.msra.mxu0 0.0
    %260 = vmatprep.subr.mxu0 0.0
    %261 = vmatpush1.xpose.msra.mxu0 0.0
    %262 = vmatprep.subr.mxu0 0.0
    %263 = vmatpush1.xpose.msra.mxu0 0.0
    %264 = vmatprep.subr.mxu0 0.0
    %265 = vmatpush1.xpose.msra.mxu0 %v232
    %266 = vmatprep.subr.mxu0 0.0
    %267 = vmatpush2.xpose.msra.mxu0 0.0
    %268 = vmatprep.subr.mxu0 0.0
    %269 = vmatpush2.xpose.msra.mxu0 0.0
    %270 = vmatprep.subr.mxu0 0.0
    %271 = vmatpush2.xpose.msra.mxu0 0.0
    %272 = vmatprep.subr.mxu0 0.0
    %273 = vmatpush2.xpose.msra.mxu0 0.0
    %274 = vmatprep.subr.mxu0 0.0
    %275 = vmatpush2.xpose.msra.mxu0 0.0
    %276 = vmatprep.subr.mxu0 0.0
    %277 = vmatpush2.xpose.msra.mxu0 0.0
    %278 = vmatprep.subr.mxu0 0.0
    %279 = vmatpush2.xpose.msra.mxu0 0.0
    %280 = vmatprep.subr.mxu0 0.0
    %281 = vmatpush2.xpose.msra.mxu0 0.0
    %282 = vmatprep.subr.mxu0 0.0
    %283 = vmatpush2.xpose.msra.mxu0 0.0
    %284 = vmatprep.subr.mxu0 0.0
    %285 = vmatpush2.xpose.msra.mxu0 0.0
    %286 = vmatprep.subr.mxu0 0.0
    %287 = vmatpush2.xpose.msra.mxu0 0.0
    %288 = vmatprep.subr.mxu0 0.0
    %289 = vmatpush2.xpose.msra.mxu0 0.0
    %290 = vmatprep.subr.mxu0 0.0
    %291 = vmatpush2.xpose.msra.mxu0 0.0
    %292 = vmatprep.subr.mxu0 0.0
    %293 = vmatpush2.xpose.msra.mxu0 0.0
    %294 = vmatprep.subr.mxu0 0.0
    %295 = vmatpush2.xpose.msra.mxu0 0.0
    %296 = vmatprep.subr.mxu0 0.0
    %297 = vmatpush2.xpose.msra.mxu0 0.0
    %298 = vmatprep.mubr.f32.mxu0 0.0
    %299 = vmatmul.mubr.f32.gmra.mxu0 %v229
    %v300 = vpop.f32.mrf.mxu0
    %v301 = vadd.f32 0.0, %v300
    %v302 = vpop.f32.mrf.mxu0
    %303 = vdwg.mxu0
    %v305 = vsel %vm227, %v100, 0
    %v308 = vsel %vm227, %v162, 0
    %310 = vmatprep.subr.mxu0 0.0
    %311 = vmatpush1.xpose.msra.mxu0 0.0
    %312 = vmatprep.subr.mxu0 0.0
    %313 = vmatpush1.xpose.msra.mxu0 0.0
    %314 = vmatprep.subr.mxu0 0.0
    %315 = vmatpush1.xpose.msra.mxu0 0.0
    %316 = vmatprep.subr.mxu0 0.0
    %317 = vmatpush1.xpose.msra.mxu0 0.0
    %318 = vmatprep.subr.mxu0 0.0
    %319 = vmatpush1.xpose.msra.mxu0 0.0
    %320 = vmatprep.subr.mxu0 0.0
    %321 = vmatpush1.xpose.msra.mxu0 0.0
    %322 = vmatprep.subr.mxu0 0.0
    %323 = vmatpush1.xpose.msra.mxu0 0.0
    %324 = vmatprep.subr.mxu0 0.0
    %325 = vmatpush1.xpose.msra.mxu0 0.0
    %326 = vmatprep.subr.mxu0 0.0
    %327 = vmatpush1.xpose.msra.mxu0 0.0
    %328 = vmatprep.subr.mxu0 0.0
    %329 = vmatpush1.xpose.msra.mxu0 0.0
    %330 = vmatprep.subr.mxu0 0.0
    %331 = vmatpush1.xpose.msra.mxu0 0.0
    %332 = vmatprep.subr.mxu0 0.0
    %333 = vmatpush1.xpose.msra.mxu0 0.0
    %334 = vmatprep.subr.mxu0 0.0
    %335 = vmatpush1.xpose.msra.mxu0 0.0
    %336 = vmatprep.subr.mxu0 0.0
    %337 = vmatpush1.xpose.msra.mxu0 0.0
    %338 = vmatprep.subr.mxu0 0.0
    %339 = vmatpush1.xpose.msra.mxu0 0.0
    %340 = vmatprep.subr.mxu0 0.0
    %341 = vmatpush1.xpose.msra.mxu0 %v308
    %342 = vmatprep.subr.mxu0 0.0
    %343 = vmatpush2.xpose.msra.mxu0 0.0
    %344 = vmatprep.subr.mxu0 0.0
    %345 = vmatpush2.xpose.msra.mxu0 0.0
    %346 = vmatprep.subr.mxu0 0.0
    %347 = vmatpush2.xpose.msra.mxu0 0.0
    %348 = vmatprep.subr.mxu0 0.0
    %349 = vmatpush2.xpose.msra.mxu0 0.0
    %350 = vmatprep.subr.mxu0 0.0
    %351 = vmatpush2.xpose.msra.mxu0 0.0
    %352 = vmatprep.subr.mxu0 0.0
    %353 = vmatpush2.xpose.msra.mxu0 0.0
    %354 = vmatprep.subr.mxu0 0.0
    %355 = vmatpush2.xpose.msra.mxu0 0.0
    %356 = vmatprep.subr.mxu0 0.0
    %357 = vmatpush2.xpose.msra.mxu0 0.0
    %358 = vmatprep.subr.mxu0 0.0
    %359 = vmatpush2.xpose.msra.mxu0 0.0
    %360 = vmatprep.subr.mxu0 0.0
    %361 = vmatpush2.xpose.msra.mxu0 0.0
    %362 = vmatprep.subr.mxu0 0.0
    %363 = vmatpush2.xpose.msra.mxu0 0.0
    %364 = vmatprep.subr.mxu0 0.0
    %365 = vmatpush2.xpose.msra.mxu0 0.0
    %366 = vmatprep.subr.mxu0 0.0
    %367 = vmatpush2.xpose.msra.mxu0 0.0
    %368 = vmatprep.subr.mxu0 0.0
    %369 = vmatpush2.xpose.msra.mxu0 0.0
    %370 = vmatprep.subr.mxu0 0.0
    %371 = vmatpush2.xpose.msra.mxu0 0.0
    %372 = vmatprep.subr.mxu0 0.0
    %373 = vmatpush2.xpose.msra.mxu0 0.0
    %374 = vmatprep.mubr.f32.mxu0 0.0
    %375 = vmatmul.mubr.f32.gmra.mxu0 %v305
    %v376 = vpop.f32.mrf.mxu0
    %v377 = vadd.f32 0.0, %v376
    %v378 = vpop.f32.mrf.mxu0
    %379 = vdwg.mxu0
    %v380 = vsel %vm227, %v301, -inf
    %381 = vmax.xlane.f32.xlu0 %v380
    %v382 = vpop.xlane.xlu0 %381
    %v383 = vsel %vm227, %v377, -inf
    %384 = vmax.xlane.f32.xlu0 %v383
    %v385 = vpop.xlane.xlu0 %384
    %v386 = vsub.f32 %v301, %v382
    %v387 = vsub.f32 %v377, %v385
    %v388 = vmul.f32 %v386, 1.442695
    %v389 = vpow.pop %v388
    %v390 = vmul.f32 %v387, 1.442695
    %v391 = vpow.pop %v390
    %v392 = vsel %vm227, %v389, 0.0
    %393 = vadd.xlane.f32.xlu0 %v392
    %v394 = vpop.xlane.xlu0 %393
    %v395 = vsel %vm227, %v391, 0.0
    %396 = vadd.xlane.f32.xlu0 %v395
    %v397 = vpop.xlane.xlu0 %396
    %v398 = vrcp.pop %v394
    %v399 = vrcp.pop %v397
    %v400 = vmul.f32 %v389, %v398
    %v401 = vmul.f32 %v391, %v399
    %v403 = vsel %vm227, %v400, 0
    %405 = vmatprep.subr.mxu0 0.0
    %406 = vmatpush1.msra.mxu0 0.0
    %407 = vmatprep.subr.mxu0 0.0
    %408 = vmatpush1.msra.mxu0 0.0
    %409 = vmatprep.subr.mxu0 0.0
    %410 = vmatpush1.msra.mxu0 0.0
    %411 = vmatprep.subr.mxu0 0.0
    %412 = vmatpush1.msra.mxu0 0.0
    %413 = vmatprep.subr.mxu0 0.0
    %414 = vmatpush1.msra.mxu0 0.0
    %415 = vmatprep.subr.mxu0 0.0
    %416 = vmatpush1.msra.mxu0 0.0
    %417 = vmatprep.subr.mxu0 0.0
    %418 = vmatpush1.msra.mxu0 0.0
    %419 = vmatprep.subr.mxu0 0.0
    %420 = vmatpush1.msra.mxu0 0.0
    %421 = vmatprep.subr.mxu0 0.0
    %422 = vmatpush1.msra.mxu0 0.0
    %423 = vmatprep.subr.mxu0 0.0
    %424 = vmatpush1.msra.mxu0 0.0
    %425 = vmatprep.subr.mxu0 0.0
    %426 = vmatpush1.msra.mxu0 0.0
    %427 = vmatprep.subr.mxu0 0.0
    %428 = vmatpush1.msra.mxu0 0.0
    %429 = vmatprep.subr.mxu0 0.0
    %430 = vmatpush1.msra.mxu0 0.0
    %431 = vmatprep.subr.mxu0 0.0
    %432 = vmatpush1.msra.mxu0 0.0
    %433 = vmatprep.subr.mxu0 0.0
    %434 = vmatpush1.msra.mxu0 0.0
    %435 = vmatprep.subr.mxu0 0.0
    %436 = vmatpush1.msra.mxu0 %v221
    %437 = vmatprep.subr.mxu0 0.0
    %438 = vmatpush2.msra.mxu0 0.0
    %439 = vmatprep.subr.mxu0 0.0
    %440 = vmatpush2.msra.mxu0 0.0
    %441 = vmatprep.subr.mxu0 0.0
    %442 = vmatpush2.msra.mxu0 0.0
    %443 = vmatprep.subr.mxu0 0.0
    %444 = vmatpush2.msra.mxu0 0.0
    %445 = vmatprep.subr.mxu0 0.0
    %446 = vmatpush2.msra.mxu0 0.0
    %447 = vmatprep.subr.mxu0 0.0
    %448 = vmatpush2.msra.mxu0 0.0
    %449 = vmatprep.subr.mxu0 0.0
    %450 = vmatpush2.msra.mxu0 0.0
    %451 = vmatprep.subr.mxu0 0.0
    %452 = vmatpush2.msra.mxu0 0.0
    %453 = vmatprep.subr.mxu0 0.0
    %454 = vmatpush2.msra.mxu0 0.0
    %455 = vmatprep.subr.mxu0 0.0
    %456 = vmatpush2.msra.mxu0 0.0
    %457 = vmatprep.subr.mxu0 0.0
    %458 = vmatpush2.msra.mxu0 0.0
    %459 = vmatprep.subr.mxu0 0.0
    %460 = vmatpush2.msra.mxu0 0.0
    %461 = vmatprep.subr.mxu0 0.0
    %462 = vmatpush2.msra.mxu0 0.0
    %463 = vmatprep.subr.mxu0 0.0
    %464 = vmatpush2.msra.mxu0 0.0
    %465 = vmatprep.subr.mxu0 0.0
    %466 = vmatpush2.msra.mxu0 0.0
    %467 = vmatprep.subr.mxu0 0.0
    %468 = vmatpush2.msra.mxu0 0.0
    %469 = vmatprep.mubr.f32.mxu0 0.0
    %470 = vmatmul.mubr.f32.gmra.mxu0 %v403
    %v471 = vpop.f32.mrf.mxu0
    %v472 = vadd.f32 0.0, %v471
    %v473 = vpop.f32.mrf.mxu0
    %474 = vdwg.mxu0
    %v476 = vsel %vm227, %v401, 0
    %478 = vmatprep.subr.mxu0 0.0
    %479 = vmatpush1.msra.mxu0 0.0
    %480 = vmatprep.subr.mxu0 0.0
    %481 = vmatpush1.msra.mxu0 0.0
    %482 = vmatprep.subr.mxu0 0.0
    %483 = vmatpush1.msra.mxu0 0.0
    %484 = vmatprep.subr.mxu0 0.0
    %485 = vmatpush1.msra.mxu0 0.0
    %486 = vmatprep.subr.mxu0 0.0
    %487 = vmatpush1.msra.mxu0 0.0
    %488 = vmatprep.subr.mxu0 0.0
    %489 = vmatpush1.msra.mxu0 0.0
    %490 = vmatprep.subr.mxu0 0.0
    %491 = vmatpush1.msra.mxu0 0.0
    %492 = vmatprep.subr.mxu0 0.0
    %493 = vmatpush1.msra.mxu0 0.0
    %494 = vmatprep.subr.mxu0 0.0
    %495 = vmatpush1.msra.mxu0 0.0
    %496 = vmatprep.subr.mxu0 0.0
    %497 = vmatpush1.msra.mxu0 0.0
    %498 = vmatprep.subr.mxu0 0.0
    %499 = vmatpush1.msra.mxu0 0.0
    %500 = vmatprep.subr.mxu0 0.0
    %501 = vmatpush1.msra.mxu0 0.0
    %502 = vmatprep.subr.mxu0 0.0
    %503 = vmatpush1.msra.mxu0 0.0
    %504 = vmatprep.subr.mxu0 0.0
    %505 = vmatpush1.msra.mxu0 0.0
    %506 = vmatprep.subr.mxu0 0.0
    %507 = vmatpush1.msra.mxu0 0.0
    %508 = vmatprep.subr.mxu0 0.0
    %509 = vmatpush1.msra.mxu0 %v224
    %510 = vmatprep.subr.mxu0 0.0
    %511 = vmatpush2.msra.mxu0 0.0
    %512 = vmatprep.subr.mxu0 0.0
    %513 = vmatpush2.msra.mxu0 0.0
    %514 = vmatprep.subr.mxu0 0.0
    %515 = vmatpush2.msra.mxu0 0.0
    %516 = vmatprep.subr.mxu0 0.0
    %517 = vmatpush2.msra.mxu0 0.0
    %518 = vmatprep.subr.mxu0 0.0
    %519 = vmatpush2.msra.mxu0 0.0
    %520 = vmatprep.subr.mxu0 0.0
    %521 = vmatpush2.msra.mxu0 0.0
    %522 = vmatprep.subr.mxu0 0.0
    %523 = vmatpush2.msra.mxu0 0.0
    %524 = vmatprep.subr.mxu0 0.0
    %525 = vmatpush2.msra.mxu0 0.0
    %526 = vmatprep.subr.mxu0 0.0
    %527 = vmatpush2.msra.mxu0 0.0
    %528 = vmatprep.subr.mxu0 0.0
    %529 = vmatpush2.msra.mxu0 0.0
    %530 = vmatprep.subr.mxu0 0.0
    %531 = vmatpush2.msra.mxu0 0.0
    %532 = vmatprep.subr.mxu0 0.0
    %533 = vmatpush2.msra.mxu0 0.0
    %534 = vmatprep.subr.mxu0 0.0
    %535 = vmatpush2.msra.mxu0 0.0
    %536 = vmatprep.subr.mxu0 0.0
    %537 = vmatpush2.msra.mxu0 0.0
    %538 = vmatprep.subr.mxu0 0.0
    %539 = vmatpush2.msra.mxu0 0.0
    %540 = vmatprep.subr.mxu0 0.0
    %541 = vmatpush2.msra.mxu0 0.0
    %542 = vmatprep.mubr.f32.mxu0 0.0
    %543 = vmatmul.mubr.f32.gmra.mxu0 %v476
    %v544 = vpop.f32.mrf.mxu0
    %v545 = vadd.f32 0.0, %v544
    %v546 = vpop.f32.mrf.mxu0
    %547 = vdwg.mxu0
    %v548 = vpack.c.bf16 %v545, %v472
    %v549 = vld [vmem:[%s1 + $0xc0] sm:$0xf]
    %v551 = vsel %vm227, %v548, 0
    %vm553 = vcmask 1043456
    %v555 = vsel %vm553, %v549, 0
    %557 = vmatprep.subr.bf16.mxu0 0
    %558 = vmatpush1.bf16.msra.mxu0 0
    %559 = vmatprep.subr.bf16.mxu0 0
    %560 = vmatpush1.bf16.msra.mxu0 0
    %561 = vmatprep.subr.bf16.mxu0 0
    %562 = vmatpush1.bf16.msra.mxu0 0
    %563 = vmatprep.subr.bf16.mxu0 0
    %564 = vmatpush1.bf16.msra.mxu0 0
    %565 = vmatprep.subr.bf16.mxu0 0
    %566 = vmatpush1.bf16.msra.mxu0 0
    %567 = vmatprep.subr.bf16.mxu0 0
    %568 = vmatpush1.bf16.msra.mxu0 0
    %569 = vmatprep.subr.bf16.mxu0 0
    %570 = vmatpush1.bf16.msra.mxu0 0
    %571 = vmatprep.subr.bf16.mxu0 0
    %572 = vmatpush1.bf16.msra.mxu0 %v555
    %573 = vmatprep.subr.bf16.mxu0 0
    %574 = vmatpush2.bf16.msra.mxu0 0
    %575 = vmatprep.subr.bf16.mxu0 0
    %576 = vmatpush2.bf16.msra.mxu0 0
    %577 = vmatprep.subr.bf16.mxu0 0
    %578 = vmatpush2.bf16.msra.mxu0 0
    %579 = vmatprep.subr.bf16.mxu0 0
    %580 = vmatpush2.bf16.msra.mxu0 0
    %581 = vmatprep.subr.bf16.mxu0 0
    %582 = vmatpush2.bf16.msra.mxu0 0
    %583 = vmatprep.subr.bf16.mxu0 0
    %584 = vmatpush2.bf16.msra.mxu0 0
    %585 = vmatprep.subr.bf16.mxu0 0
    %586 = vmatpush2.bf16.msra.mxu0 0
    %587 = vmatprep.subr.bf16.mxu0 0
    %588 = vmatpush2.bf16.msra.mxu0 0
    %589 = vmatprep.mubr.bf16.mxu0 0
    %590 = vmatmul.mubr.bf16.gmra.mxu0 %v551
    %v591 = vpop.f32.mrf.mxu0
    %v592 = vadd.f32 0.0, %v591
    %v593 = vpop.f32.mrf.mxu0
    %v594 = vpop.f32.mrf.mxu0
    %v595 = vadd.f32 0.0, %v594
    %v596 = vpop.f32.mrf.mxu0
    %597 = vdwg.mxu0
    %v598 = vlaneseq
    %v599 = vshrl.u32 %v598, 7
    %v600 = vsub.s32 0, %v599
    %v601 = vrot.slane %v19, %v600
    %v602 = vadd.f32 %v601, %v592
    %v603 = vadd.f32 %v601, %v595
    %v604 = vld [vmem:[%s1 + $0x10] sm:$0xf]
    %v605 = vld [vmem:[%s1 + $0x14] sm:$0xf]
    %v606 = vld [vmem:[%s1 + $0x18] sm:$0xf]
    %v607 = vld [vmem:[%s1 + $0x1c] sm:$0xf]
    %v608 = vld [vmem:[%s2 + $0x1] sm:$0x1]
    %v609 = vlaneseq
    %v610 = vshrl.u32 %v609, 7
    %v611 = vsub.s32 0, %v610
    %v612 = vrot.slane %v608, %v611
    %v617 = vunpack.c.l.b16 %v604
    %v618 = vunpack.c.l.b16 %v605
    %v619 = vunpack.c.l.b16 %v606
    %v620 = vunpack.c.l.b16 %v607
    %v621 = vpack.c.b16 %v618, %v617
    %v622 = vpack.c.b16 %v620, %v619
    %625 = vmatprep.subr.bf16.mxu0 0
    %626 = vmatpush1.bf16.msra.mxu0 0
    %627 = vmatprep.subr.bf16.mxu0 0
    %628 = vmatpush1.bf16.msra.mxu0 0
    %629 = vmatprep.subr.bf16.mxu0 0
    %630 = vmatpush1.bf16.msra.mxu0 0
    %631 = vmatprep.subr.bf16.mxu0 0
    %632 = vmatpush1.bf16.msra.mxu0 0
    %633 = vmatprep.subr.bf16.mxu0 0
    %634 = vmatpush1.bf16.msra.mxu0 0
    %635 = vmatprep.subr.bf16.mxu0 0
    %636 = vmatpush1.bf16.msra.mxu0 0
    %637 = vmatprep.subr.bf16.mxu0 0
    %638 = vmatpush1.bf16.msra.mxu0 %v622
    %639 = vmatprep.subr.bf16.mxu0 0
    %640 = vmatpush1.bf16.msra.mxu0 %v621
    %641 = vmatprep.subr.bf16.mxu0 0
    %642 = vmatpush2.bf16.msra.mxu0 0
    %643 = vmatprep.subr.bf16.mxu0 0
    %644 = vmatpush2.bf16.msra.mxu0 0
    %645 = vmatprep.subr.bf16.mxu0 0
    %646 = vmatpush2.bf16.msra.mxu0 0
    %647 = vmatprep.subr.bf16.mxu0 0
    %648 = vmatpush2.bf16.msra.mxu0 0
    %649 = vmatprep.subr.bf16.mxu0 0
    %650 = vmatpush2.bf16.msra.mxu0 0
    %651 = vmatprep.subr.bf16.mxu0 0
    %652 = vmatpush2.bf16.msra.mxu0 0
    %653 = vmatprep.subr.bf16.mxu0 0
    %654 = vmatpush2.bf16.msra.mxu0 0
    %655 = vmatprep.subr.bf16.mxu0 0
    %656 = vmatpush2.bf16.msra.mxu0 0
    %657 = vmatprep.mubr.bf16.mxu0 0
    %658 = vmatmul.mubr.bf16.gmra.mxu0 %v60
    %v659 = vpop.f32.mrf.mxu0
    %v660 = vadd.f32 %v612, %v659
    %v661 = vpop.f32.mrf.mxu0
    %v662 = vpop.f32.mrf.mxu0
    %v663 = vadd.f32 %v612, %v662
    %v664 = vpop.f32.mrf.mxu0
    %665 = vdwg.mxu0
    %v666 = vld [vmem:[%s1 + $0x50] sm:$0xf]
    %v667 = vld [vmem:[%s1 + $0x54] sm:$0xf]
    %v668 = vld [vmem:[%s1 + $0x58] sm:$0xf]
    %v669 = vld [vmem:[%s1 + $0x5c] sm:$0xf]
    %v670 = vld [vmem:[%s2 + $0x5] sm:$0x1]
    %v671 = vlaneseq
    %v672 = vshrl.u32 %v671, 7
    %v673 = vsub.s32 0, %v672
    %v674 = vrot.slane %v670, %v673
    %v679 = vunpack.c.l.b16 %v666
    %v680 = vunpack.c.l.b16 %v667
    %v681 = vunpack.c.l.b16 %v668
    %v682 = vunpack.c.l.b16 %v669
    %v683 = vpack.c.b16 %v680, %v679
    %v684 = vpack.c.b16 %v682, %v681
    %687 = vmatprep.subr.bf16.mxu0 0
    %688 = vmatpush1.bf16.msra.mxu0 0
    %689 = vmatprep.subr.bf16.mxu0 0
    %690 = vmatpush1.bf16.msra.mxu0 0
    %691 = vmatprep.subr.bf16.mxu0 0
    %692 = vmatpush1.bf16.msra.mxu0 0
    %693 = vmatprep.subr.bf16.mxu0 0
    %694 = vmatpush1.bf16.msra.mxu0 0
    %695 = vmatprep.subr.bf16.mxu0 0
    %696 = vmatpush1.bf16.msra.mxu0 0
    %697 = vmatprep.subr.bf16.mxu0 0
    %698 = vmatpush1.bf16.msra.mxu0 0
    %699 = vmatprep.subr.bf16.mxu0 0
    %700 = vmatpush1.bf16.msra.mxu0 %v684
    %701 = vmatprep.subr.bf16.mxu0 0
    %702 = vmatpush1.bf16.msra.mxu0 %v683
    %703 = vmatprep.subr.bf16.mxu0 0
    %704 = vmatpush2.bf16.msra.mxu0 0
    %705 = vmatprep.subr.bf16.mxu0 0
    %706 = vmatpush2.bf16.msra.mxu0 0
    %707 = vmatprep.subr.bf16.mxu0 0
    %708 = vmatpush2.bf16.msra.mxu0 0
    %709 = vmatprep.subr.bf16.mxu0 0
    %710 = vmatpush2.bf16.msra.mxu0 0
    %711 = vmatprep.subr.bf16.mxu0 0
    %712 = vmatpush2.bf16.msra.mxu0 0
    %713 = vmatprep.subr.bf16.mxu0 0
    %714 = vmatpush2.bf16.msra.mxu0 0
    %715 = vmatprep.subr.bf16.mxu0 0
    %716 = vmatpush2.bf16.msra.mxu0 0
    %717 = vmatprep.subr.bf16.mxu0 0
    %718 = vmatpush2.bf16.msra.mxu0 0
    %719 = vmatprep.mubr.bf16.mxu0 0
    %720 = vmatmul.mubr.bf16.gmra.mxu0 %v60
    %v721 = vpop.f32.mrf.mxu0
    %v722 = vadd.f32 %v674, %v721
    %v723 = vpop.f32.mrf.mxu0
    %v724 = vpop.f32.mrf.mxu0
    %v725 = vadd.f32 %v674, %v724
    %v726 = vpop.f32.mrf.mxu0
    %727 = vdwg.mxu0
    %v728 = vld [vmem:[%s1 + $0x90] sm:$0xf]
    %v729 = vld [vmem:[%s1 + $0x94] sm:$0xf]
    %v730 = vld [vmem:[%s1 + $0x98] sm:$0xf]
    %v731 = vld [vmem:[%s1 + $0x9c] sm:$0xf]
    %v732 = vld [vmem:[%s2 + $0x9] sm:$0x1]
    %v733 = vlaneseq
    %v734 = vshrl.u32 %v733, 7
    %v735 = vsub.s32 0, %v734
    %v736 = vrot.slane %v732, %v735
    %v741 = vunpack.c.l.b16 %v728
    %v742 = vunpack.c.l.b16 %v729
    %v743 = vunpack.c.l.b16 %v730
    %v744 = vunpack.c.l.b16 %v731
    %v745 = vpack.c.b16 %v742, %v741
    %v746 = vpack.c.b16 %v744, %v743
    %749 = vmatprep.subr.bf16.mxu0 0
    %750 = vmatpush1.bf16.msra.mxu0 0
    %751 = vmatprep.subr.bf16.mxu0 0
    %752 = vmatpush1.bf16.msra.mxu0 0
    %753 = vmatprep.subr.bf16.mxu0 0
    %754 = vmatpush1.bf16.msra.mxu0 0
    %755 = vmatprep.subr.bf16.mxu0 0
    %756 = vmatpush1.bf16.msra.mxu0 0
    %757 = vmatprep.subr.bf16.mxu0 0
    %758 = vmatpush1.bf16.msra.mxu0 0
    %759 = vmatprep.subr.bf16.mxu0 0
    %760 = vmatpush1.bf16.msra.mxu0 0
    %761 = vmatprep.subr.bf16.mxu0 0
    %762 = vmatpush1.bf16.msra.mxu0 %v746
    %763 = vmatprep.subr.bf16.mxu0 0
    %764 = vmatpush1.bf16.msra.mxu0 %v745
    %765 = vmatprep.subr.bf16.mxu0 0
    %766 = vmatpush2.bf16.msra.mxu0 0
    %767 = vmatprep.subr.bf16.mxu0 0
    %768 = vmatpush2.bf16.msra.mxu0 0
    %769 = vmatprep.subr.bf16.mxu0 0
    %770 = vmatpush2.bf16.msra.mxu0 0
    %771 = vmatprep.subr.bf16.mxu0 0
    %772 = vmatpush2.bf16.msra.mxu0 0
    %773 = vmatprep.subr.bf16.mxu0 0
    %774 = vmatpush2.bf16.msra.mxu0 0
    %775 = vmatprep.subr.bf16.mxu0 0
    %776 = vmatpush2.bf16.msra.mxu0 0
    %777 = vmatprep.subr.bf16.mxu0 0
    %778 = vmatpush2.bf16.msra.mxu0 0
    %779 = vmatprep.subr.bf16.mxu0 0
    %780 = vmatpush2.bf16.msra.mxu0 0
    %781 = vmatprep.mubr.bf16.mxu0 0
    %782 = vmatmul.mubr.bf16.gmra.mxu0 %v60
    %v783 = vpop.f32.mrf.mxu0
    %v784 = vadd.f32 %v736, %v783
    %v785 = vpop.f32.mrf.mxu0
    %v786 = vpop.f32.mrf.mxu0
    %v787 = vadd.f32 %v736, %v786
    %v788 = vpop.f32.mrf.mxu0
    %789 = vdwg.mxu0
    %v791 = vsel %vm227, %v660, 0
    %v794 = vsel %vm227, %v722, 0
    %796 = vmatprep.subr.mxu0 0.0
    %797 = vmatpush1.xpose.msra.mxu0 0.0
    %798 = vmatprep.subr.mxu0 0.0
    %799 = vmatpush1.xpose.msra.mxu0 0.0
    %800 = vmatprep.subr.mxu0 0.0
    %801 = vmatpush1.xpose.msra.mxu0 0.0
    %802 = vmatprep.subr.mxu0 0.0
    %803 = vmatpush1.xpose.msra.mxu0 0.0
    %804 = vmatprep.subr.mxu0 0.0
    %805 = vmatpush1.xpose.msra.mxu0 0.0
    %806 = vmatprep.subr.mxu0 0.0
    %807 = vmatpush1.xpose.msra.mxu0 0.0
    %808 = vmatprep.subr.mxu0 0.0
    %809 = vmatpush1.xpose.msra.mxu0 0.0
    %810 = vmatprep.subr.mxu0 0.0
    %811 = vmatpush1.xpose.msra.mxu0 0.0
    %812 = vmatprep.subr.mxu0 0.0
    %813 = vmatpush1.xpose.msra.mxu0 0.0
    %814 = vmatprep.subr.mxu0 0.0
    %815 = vmatpush1.xpose.msra.mxu0 0.0
    %816 = vmatprep.subr.mxu0 0.0
    %817 = vmatpush1.xpose.msra.mxu0 0.0
    %818 = vmatprep.subr.mxu0 0.0
    %819 = vmatpush1.xpose.msra.mxu0 0.0
    %820 = vmatprep.subr.mxu0 0.0
    %821 = vmatpush1.xpose.msra.mxu0 0.0
    %822 = vmatprep.subr.mxu0 0.0
    %823 = vmatpush1.xpose.msra.mxu0 0.0
    %824 = vmatprep.subr.mxu0 0.0
    %825 = vmatpush1.xpose.msra.mxu0 0.0
    %826 = vmatprep.subr.mxu0 0.0
    %827 = vmatpush1.xpose.msra.mxu0 %v794
    %828 = vmatprep.subr.mxu0 0.0
    %829 = vmatpush2.xpose.msra.mxu0 0.0
    %830 = vmatprep.subr.mxu0 0.0
    %831 = vmatpush2.xpose.msra.mxu0 0.0
    %832 = vmatprep.subr.mxu0 0.0
    %833 = vmatpush2.xpose.msra.mxu0 0.0
    %834 = vmatprep.subr.mxu0 0.0
    %835 = vmatpush2.xpose.msra.mxu0 0.0
    %836 = vmatprep.subr.mxu0 0.0
    %837 = vmatpush2.xpose.msra.mxu0 0.0
    %838 = vmatprep.subr.mxu0 0.0
    %839 = vmatpush2.xpose.msra.mxu0 0.0
    %840 = vmatprep.subr.mxu0 0.0
    %841 = vmatpush2.xpose.msra.mxu0 0.0
    %842 = vmatprep.subr.mxu0 0.0
    %843 = vmatpush2.xpose.msra.mxu0 0.0
    %844 = vmatprep.subr.mxu0 0.0
    %845 = vmatpush2.xpose.msra.mxu0 0.0
    %846 = vmatprep.subr.mxu0 0.0
    %847 = vmatpush2.xpose.msra.mxu0 0.0
    %848 = vmatprep.subr.mxu0 0.0
    %849 = vmatpush2.xpose.msra.mxu0 0.0
    %850 = vmatprep.subr.mxu0 0.0
    %851 = vmatpush2.xpose.msra.mxu0 0.0
    %852 = vmatprep.subr.mxu0 0.0
    %853 = vmatpush2.xpose.msra.mxu0 0.0
    %854 = vmatprep.subr.mxu0 0.0
    %855 = vmatpush2.xpose.msra.mxu0 0.0
    %856 = vmatprep.subr.mxu0 0.0
    %857 = vmatpush2.xpose.msra.mxu0 0.0
    %858 = vmatprep.subr.mxu0 0.0
    %859 = vmatpush2.xpose.msra.mxu0 0.0
    %860 = vmatprep.mubr.f32.mxu0 0.0
    %861 = vmatmul.mubr.f32.gmra.mxu0 %v791
    %v862 = vpop.f32.mrf.mxu0
    %v863 = vadd.f32 0.0, %v862
    %v864 = vpop.f32.mrf.mxu0
    %865 = vdwg.mxu0
    %v867 = vsel %vm227, %v663, 0
    %v870 = vsel %vm227, %v725, 0
    %872 = vmatprep.subr.mxu0 0.0
    %873 = vmatpush1.xpose.msra.mxu0 0.0
    %874 = vmatprep.subr.mxu0 0.0
    %875 = vmatpush1.xpose.msra.mxu0 0.0
    %876 = vmatprep.subr.mxu0 0.0
    %877 = vmatpush1.xpose.msra.mxu0 0.0
    %878 = vmatprep.subr.mxu0 0.0
    %879 = vmatpush1.xpose.msra.mxu0 0.0
    %880 = vmatprep.subr.mxu0 0.0
    %881 = vmatpush1.xpose.msra.mxu0 0.0
    %882 = vmatprep.subr.mxu0 0.0
    %883 = vmatpush1.xpose.msra.mxu0 0.0
    %884 = vmatprep.subr.mxu0 0.0
    %885 = vmatpush1.xpose.msra.mxu0 0.0
    %886 = vmatprep.subr.mxu0 0.0
    %887 = vmatpush1.xpose.msra.mxu0 0.0
    %888 = vmatprep.subr.mxu0 0.0
    %889 = vmatpush1.xpose.msra.mxu0 0.0
    %890 = vmatprep.subr.mxu0 0.0
    %891 = vmatpush1.xpose.msra.mxu0 0.0
    %892 = vmatprep.subr.mxu0 0.0
    %893 = vmatpush1.xpose.msra.mxu0 0.0
    %894 = vmatprep.subr.mxu0 0.0
    %895 = vmatpush1.xpose.msra.mxu0 0.0
    %896 = vmatprep.subr.mxu0 0.0
    %897 = vmatpush1.xpose.msra.mxu0 0.0
    %898 = vmatprep.subr.mxu0 0.0
    %899 = vmatpush1.xpose.msra.mxu0 0.0
    %900 = vmatprep.subr.mxu0 0.0
    %901 = vmatpush1.xpose.msra.mxu0 0.0
    %902 = vmatprep.subr.mxu0 0.0
    %903 = vmatpush1.xpose.msra.mxu0 %v870
    %904 = vmatprep.subr.mxu0 0.0
    %905 = vmatpush2.xpose.msra.mxu0 0.0
    %906 = vmatprep.subr.mxu0 0.0
    %907 = vmatpush2.xpose.msra.mxu0 0.0
    %908 = vmatprep.subr.mxu0 0.0
    %909 = vmatpush2.xpose.msra.mxu0 0.0
    %910 = vmatprep.subr.mxu0 0.0
    %911 = vmatpush2.xpose.msra.mxu0 0.0
    %912 = vmatprep.subr.mxu0 0.0
    %913 = vmatpush2.xpose.msra.mxu0 0.0
    %914 = vmatprep.subr.mxu0 0.0
    %915 = vmatpush2.xpose.msra.mxu0 0.0
    %916 = vmatprep.subr.mxu0 0.0
    %917 = vmatpush2.xpose.msra.mxu0 0.0
    %918 = vmatprep.subr.mxu0 0.0
    %919 = vmatpush2.xpose.msra.mxu0 0.0
    %920 = vmatprep.subr.mxu0 0.0
    %921 = vmatpush2.xpose.msra.mxu0 0.0
    %922 = vmatprep.subr.mxu0 0.0
    %923 = vmatpush2.xpose.msra.mxu0 0.0
    %924 = vmatprep.subr.mxu0 0.0
    %925 = vmatpush2.xpose.msra.mxu0 0.0
    %926 = vmatprep.subr.mxu0 0.0
    %927 = vmatpush2.xpose.msra.mxu0 0.0
    %928 = vmatprep.subr.mxu0 0.0
    %929 = vmatpush2.xpose.msra.mxu0 0.0
    %930 = vmatprep.subr.mxu0 0.0
    %931 = vmatpush2.xpose.msra.mxu0 0.0
    %932 = vmatprep.subr.mxu0 0.0
    %933 = vmatpush2.xpose.msra.mxu0 0.0
    %934 = vmatprep.subr.mxu0 0.0
    %935 = vmatpush2.xpose.msra.mxu0 0.0
    %936 = vmatprep.mubr.f32.mxu0 0.0
    %937 = vmatmul.mubr.f32.gmra.mxu0 %v867
    %v938 = vpop.f32.mrf.mxu0
    %v939 = vadd.f32 0.0, %v938
    %v940 = vpop.f32.mrf.mxu0
    %941 = vdwg.mxu0
    %v942 = vsel %vm227, %v863, -inf
    %943 = vmax.xlane.f32.xlu0 %v942
    %v944 = vpop.xlane.xlu0 %943
    %v945 = vsel %vm227, %v939, -inf
    %946 = vmax.xlane.f32.xlu0 %v945
    %v947 = vpop.xlane.xlu0 %946
    %v948 = vsub.f32 %v863, %v944
    %v949 = vsub.f32 %v939, %v947
    %v950 = vmul.f32 %v948, 1.442695
    %v951 = vpow.pop %v950
    %v952 = vmul.f32 %v949, 1.442695
    %v953 = vpow.pop %v952
    %v954 = vsel %vm227, %v951, 0.0
    %955 = vadd.xlane.f32.xlu0 %v954
    %v956 = vpop.xlane.xlu0 %955
    %v957 = vsel %vm227, %v953, 0.0
    %958 = vadd.xlane.f32.xlu0 %v957
    %v959 = vpop.xlane.xlu0 %958
    %v960 = vrcp.pop %v956
    %v961 = vrcp.pop %v959
    %v962 = vmul.f32 %v951, %v960
    %v963 = vmul.f32 %v953, %v961
    %v965 = vsel %vm227, %v962, 0
    %967 = vmatprep.subr.mxu0 0.0
    %968 = vmatpush1.msra.mxu0 0.0
    %969 = vmatprep.subr.mxu0 0.0
    %970 = vmatpush1.msra.mxu0 0.0
    %971 = vmatprep.subr.mxu0 0.0
    %972 = vmatpush1.msra.mxu0 0.0
    %973 = vmatprep.subr.mxu0 0.0
    %974 = vmatpush1.msra.mxu0 0.0
    %975 = vmatprep.subr.mxu0 0.0
    %976 = vmatpush1.msra.mxu0 0.0
    %977 = vmatprep.subr.mxu0 0.0
    %978 = vmatpush1.msra.mxu0 0.0
    %979 = vmatprep.subr.mxu0 0.0
    %980 = vmatpush1.msra.mxu0 0.0
    %981 = vmatprep.subr.mxu0 0.0
    %982 = vmatpush1.msra.mxu0 0.0
    %983 = vmatprep.subr.mxu0 0.0
    %984 = vmatpush1.msra.mxu0 0.0
    %985 = vmatprep.subr.mxu0 0.0
    %986 = vmatpush1.msra.mxu0 0.0
    %987 = vmatprep.subr.mxu0 0.0
    %988 = vmatpush1.msra.mxu0 0.0
    %989 = vmatprep.subr.mxu0 0.0
    %990 = vmatpush1.msra.mxu0 0.0
    %991 = vmatprep.subr.mxu0 0.0
    %992 = vmatpush1.msra.mxu0 0.0
    %993 = vmatprep.subr.mxu0 0.0
    %994 = vmatpush1.msra.mxu0 0.0
    %995 = vmatprep.subr.mxu0 0.0
    %996 = vmatpush1.msra.mxu0 0.0
    %997 = vmatprep.subr.mxu0 0.0
    %998 = vmatpush1.msra.mxu0 %v784
    %999 = vmatprep.subr.mxu0 0.0
    %1000 = vmatpush2.msra.mxu0 0.0
    %1001 = vmatprep.subr.mxu0 0.0
    %1002 = vmatpush2.msra.mxu0 0.0
    %1003 = vmatprep.subr.mxu0 0.0
    %1004 = vmatpush2.msra.mxu0 0.0
    %1005 = vmatprep.subr.mxu0 0.0
    %1006 = vmatpush2.msra.mxu0 0.0
    %1007 = vmatprep.subr.mxu0 0.0
    %1008 = vmatpush2.msra.mxu0 0.0
    %1009 = vmatprep.subr.mxu0 0.0
    %1010 = vmatpush2.msra.mxu0 0.0
    %1011 = vmatprep.subr.mxu0 0.0
    %1012 = vmatpush2.msra.mxu0 0.0
    %1013 = vmatprep.subr.mxu0 0.0
    %1014 = vmatpush2.msra.mxu0 0.0
    %1015 = vmatprep.subr.mxu0 0.0
    %1016 = vmatpush2.msra.mxu0 0.0
    %1017 = vmatprep.subr.mxu0 0.0
    %1018 = vmatpush2.msra.mxu0 0.0
    %1019 = vmatprep.subr.mxu0 0.0
    %1020 = vmatpush2.msra.mxu0 0.0
    %1021 = vmatprep.subr.mxu0 0.0
    %1022 = vmatpush2.msra.mxu0 0.0
    %1023 = vmatprep.subr.mxu0 0.0
    %1024 = vmatpush2.msra.mxu0 0.0
    %1025 = vmatprep.subr.mxu0 0.0
    %1026 = vmatpush2.msra.mxu0 0.0
    %1027 = vmatprep.subr.mxu0 0.0
    %1028 = vmatpush2.msra.mxu0 0.0
    %1029 = vmatprep.subr.mxu0 0.0
    %1030 = vmatpush2.msra.mxu0 0.0
    %1031 = vmatprep.mubr.f32.mxu0 0.0
    %1032 = vmatmul.mubr.f32.gmra.mxu0 %v965
    %v1033 = vpop.f32.mrf.mxu0
    %v1034 = vadd.f32 0.0, %v1033
    %v1035 = vpop.f32.mrf.mxu0
    %1036 = vdwg.mxu0
    %v1038 = vsel %vm227, %v963, 0
    %1040 = vmatprep.subr.mxu0 0.0
    %1041 = vmatpush1.msra.mxu0 0.0
    %1042 = vmatprep.subr.mxu0 0.0
    %1043 = vmatpush1.msra.mxu0 0.0
    %1044 = vmatprep.subr.mxu0 0.0
    %1045 = vmatpush1.msra.mxu0 0.0
    %1046 = vmatprep.subr.mxu0 0.0
    %1047 = vmatpush1.msra.mxu0 0.0
    %1048 = vmatprep.subr.mxu0 0.0
    %1049 = vmatpush1.msra.mxu0 0.0
    %1050 = vmatprep.subr.mxu0 0.0
    %1051 = vmatpush1.msra.mxu0 0.0
    %1052 = vmatprep.subr.mxu0 0.0
    %1053 = vmatpush1.msra.mxu0 0.0
    %1054 = vmatprep.subr.mxu0 0.0
    %1055 = vmatpush1.msra.mxu0 0.0
    %1056 = vmatprep.subr.mxu0 0.0
    %1057 = vmatpush1.msra.mxu0 0.0
    %1058 = vmatprep.subr.mxu0 0.0
    %1059 = vmatpush1.msra.mxu0 0.0
    %1060 = vmatprep.subr.mxu0 0.0
    %1061 = vmatpush1.msra.mxu0 0.0
    %1062 = vmatprep.subr.mxu0 0.0
    %1063 = vmatpush1.msra.mxu0 0.0
    %1064 = vmatprep.subr.mxu0 0.0
    %1065 = vmatpush1.msra.mxu0 0.0
    %1066 = vmatprep.subr.mxu0 0.0
    %1067 = vmatpush1.msra.mxu0 0.0
    %1068 = vmatprep.subr.mxu0 0.0
    %1069 = vmatpush1.msra.mxu0 0.0
    %1070 = vmatprep.subr.mxu0 0.0
    %1071 = vmatpush1.msra.mxu0 %v787
    %1072 = vmatprep.subr.mxu0 0.0
    %1073 = vmatpush2.msra.mxu0 0.0
    %1074 = vmatprep.subr.mxu0 0.0
    %1075 = vmatpush2.msra.mxu0 0.0
    %1076 = vmatprep.subr.mxu0 0.0
    %1077 = vmatpush2.msra.mxu0 0.0
    %1078 = vmatprep.subr.mxu0 0.0
    %1079 = vmatpush2.msra.mxu0 0.0
    %1080 = vmatprep.subr.mxu0 0.0
    %1081 = vmatpush2.msra.mxu0 0.0
    %1082 = vmatprep.subr.mxu0 0.0
    %1083 = vmatpush2.msra.mxu0 0.0
    %1084 = vmatprep.subr.mxu0 0.0
    %1085 = vmatpush2.msra.mxu0 0.0
    %1086 = vmatprep.subr.mxu0 0.0
    %1087 = vmatpush2.msra.mxu0 0.0
    %1088 = vmatprep.subr.mxu0 0.0
    %1089 = vmatpush2.msra.mxu0 0.0
    %1090 = vmatprep.subr.mxu0 0.0
    %1091 = vmatpush2.msra.mxu0 0.0
    %1092 = vmatprep.subr.mxu0 0.0
    %1093 = vmatpush2.msra.mxu0 0.0
    %1094 = vmatprep.subr.mxu0 0.0
    %1095 = vmatpush2.msra.mxu0 0.0
    %1096 = vmatprep.subr.mxu0 0.0
    %1097 = vmatpush2.msra.mxu0 0.0
    %1098 = vmatprep.subr.mxu0 0.0
    %1099 = vmatpush2.msra.mxu0 0.0
    %1100 = vmatprep.subr.mxu0 0.0
    %1101 = vmatpush2.msra.mxu0 0.0
    %1102 = vmatprep.subr.mxu0 0.0
    %1103 = vmatpush2.msra.mxu0 0.0
    %1104 = vmatprep.mubr.f32.mxu0 0.0
    %1105 = vmatmul.mubr.f32.gmra.mxu0 %v1038
    %v1106 = vpop.f32.mrf.mxu0
    %v1107 = vadd.f32 0.0, %v1106
    %v1108 = vpop.f32.mrf.mxu0
    %1109 = vdwg.mxu0
    %v1110 = vpack.c.bf16 %v1107, %v1034
    %v1111 = vld [vmem:[%s1 + $0xd0] sm:$0xf]
    %v1113 = vsel %vm227, %v1110, 0
    %v1116 = vsel %vm553, %v1111, 0
    %1118 = vmatprep.subr.bf16.mxu0 0
    %1119 = vmatpush1.bf16.msra.mxu0 0
    %1120 = vmatprep.subr.bf16.mxu0 0
    %1121 = vmatpush1.bf16.msra.mxu0 0
    %1122 = vmatprep.subr.bf16.mxu0 0
    %1123 = vmatpush1.bf16.msra.mxu0 0
    %1124 = vmatprep.subr.bf16.mxu0 0
    %1125 = vmatpush1.bf16.msra.mxu0 0
    %1126 = vmatprep.subr.bf16.mxu0 0
    %1127 = vmatpush1.bf16.msra.mxu0 0
    %1128 = vmatprep.subr.bf16.mxu0 0
    %1129 = vmatpush1.bf16.msra.mxu0 0
    %1130 = vmatprep.subr.bf16.mxu0 0
    %1131 = vmatpush1.bf16.msra.mxu0 0
    %1132 = vmatprep.subr.bf16.mxu0 0
    %1133 = vmatpush1.bf16.msra.mxu0 %v1116
    %1134 = vmatprep.subr.bf16.mxu0 0
    %1135 = vmatpush2.bf16.msra.mxu0 0
    %1136 = vmatprep.subr.bf16.mxu0 0
    %1137 = vmatpush2.bf16.msra.mxu0 0
    %1138 = vmatprep.subr.bf16.mxu0 0
    %1139 = vmatpush2.bf16.msra.mxu0 0
    %1140 = vmatprep.subr.bf16.mxu0 0
    %1141 = vmatpush2.bf16.msra.mxu0 0
    %1142 = vmatprep.subr.bf16.mxu0 0
    %1143 = vmatpush2.bf16.msra.mxu0 0
    %1144 = vmatprep.subr.bf16.mxu0 0
    %1145 = vmatpush2.bf16.msra.mxu0 0
    %1146 = vmatprep.subr.bf16.mxu0 0
    %1147 = vmatpush2.bf16.msra.mxu0 0
    %1148 = vmatprep.subr.bf16.mxu0 0
    %1149 = vmatpush2.bf16.msra.mxu0 0
    %1150 = vmatprep.mubr.bf16.mxu0 0
    %1151 = vmatmul.mubr.bf16.gmra.mxu0 %v1113
    %v1152 = vpop.f32.mrf.mxu0
    %v1153 = vadd.f32 0.0, %v1152
    %v1154 = vpop.f32.mrf.mxu0
    %v1155 = vpop.f32.mrf.mxu0
    %v1156 = vadd.f32 0.0, %v1155
    %v1157 = vpop.f32.mrf.mxu0
    %1158 = vdwg.mxu0
    %v1159 = vadd.f32 %v602, %v1153
    %v1160 = vadd.f32 %v603, %v1156
    %v1161 = vld [vmem:[%s1 + $0x20] sm:$0xf]
    %v1162 = vld [vmem:[%s1 + $0x24] sm:$0xf]
    %v1163 = vld [vmem:[%s1 + $0x28] sm:$0xf]
    %v1164 = vld [vmem:[%s1 + $0x2c] sm:$0xf]
    %v1165 = vld [vmem:[%s2 + $0x2] sm:$0x1]
    %v1166 = vlaneseq
    %v1167 = vshrl.u32 %v1166, 7
    %v1168 = vsub.s32 0, %v1167
    %v1169 = vrot.slane %v1165, %v1168
    %v1174 = vunpack.c.l.b16 %v1161
    %v1175 = vunpack.c.l.b16 %v1162
    %v1176 = vunpack.c.l.b16 %v1163
    %v1177 = vunpack.c.l.b16 %v1164
    %v1178 = vpack.c.b16 %v1175, %v1174
    %v1179 = vpack.c.b16 %v1177, %v1176
    %1182 = vmatprep.subr.bf16.mxu0 0
    %1183 = vmatpush1.bf16.msra.mxu0 0
    %1184 = vmatprep.subr.bf16.mxu0 0
    %1185 = vmatpush1.bf16.msra.mxu0 0
    %1186 = vmatprep.subr.bf16.mxu0 0
    %1187 = vmatpush1.bf16.msra.mxu0 0
    %1188 = vmatprep.subr.bf16.mxu0 0
    %1189 = vmatpush1.bf16.msra.mxu0 0
    %1190 = vmatprep.subr.bf16.mxu0 0
    %1191 = vmatpush1.bf16.msra.mxu0 0
    %1192 = vmatprep.subr.bf16.mxu0 0
    %1193 = vmatpush1.bf16.msra.mxu0 0
    %1194 = vmatprep.subr.bf16.mxu0 0
    %1195 = vmatpush1.bf16.msra.mxu0 %v1179
    %1196 = vmatprep.subr.bf16.mxu0 0
    %1197 = vmatpush1.bf16.msra.mxu0 %v1178
    %1198 = vmatprep.subr.bf16.mxu0 0
    %1199 = vmatpush2.bf16.msra.mxu0 0
    %1200 = vmatprep.subr.bf16.mxu0 0
    %1201 = vmatpush2.bf16.msra.mxu0 0
    %1202 = vmatprep.subr.bf16.mxu0 0
    %1203 = vmatpush2.bf16.msra.mxu0 0
    %1204 = vmatprep.subr.bf16.mxu0 0
    %1205 = vmatpush2.bf16.msra.mxu0 0
    %1206 = vmatprep.subr.bf16.mxu0 0
    %1207 = vmatpush2.bf16.msra.mxu0 0
    %1208 = vmatprep.subr.bf16.mxu0 0
    %1209 = vmatpush2.bf16.msra.mxu0 0
    %1210 = vmatprep.subr.bf16.mxu0 0
    %1211 = vmatpush2.bf16.msra.mxu0 0
    %1212 = vmatprep.subr.bf16.mxu0 0
    %1213 = vmatpush2.bf16.msra.mxu0 0
    %1214 = vmatprep.mubr.bf16.mxu0 0
    %1215 = vmatmul.mubr.bf16.gmra.mxu0 %v60
    %v1216 = vpop.f32.mrf.mxu0
    %v1217 = vadd.f32 %v1169, %v1216
    %v1218 = vpop.f32.mrf.mxu0
    %v1219 = vpop.f32.mrf.mxu0
    %v1220 = vadd.f32 %v1169, %v1219
    %v1221 = vpop.f32.mrf.mxu0
    %1222 = vdwg.mxu0
    %v1223 = vld [vmem:[%s1 + $0x60] sm:$0xf]
    %v1224 = vld [vmem:[%s1 + $0x64] sm:$0xf]
    %v1225 = vld [vmem:[%s1 + $0x68] sm:$0xf]
    %v1226 = vld [vmem:[%s1 + $0x6c] sm:$0xf]
    %v1227 = vld [vmem:[%s2 + $0x6] sm:$0x1]
    %v1228 = vlaneseq
    %v1229 = vshrl.u32 %v1228, 7
    %v1230 = vsub.s32 0, %v1229
    %v1231 = vrot.slane %v1227, %v1230
    %v1236 = vunpack.c.l.b16 %v1223
    %v1237 = vunpack.c.l.b16 %v1224
    %v1238 = vunpack.c.l.b16 %v1225
    %v1239 = vunpack.c.l.b16 %v1226
    %v1240 = vpack.c.b16 %v1237, %v1236
    %v1241 = vpack.c.b16 %v1239, %v1238
    %1244 = vmatprep.subr.bf16.mxu0 0
    %1245 = vmatpush1.bf16.msra.mxu0 0
    %1246 = vmatprep.subr.bf16.mxu0 0
    %1247 = vmatpush1.bf16.msra.mxu0 0
    %1248 = vmatprep.subr.bf16.mxu0 0
    %1249 = vmatpush1.bf16.msra.mxu0 0
    %1250 = vmatprep.subr.bf16.mxu0 0
    %1251 = vmatpush1.bf16.msra.mxu0 0
    %1252 = vmatprep.subr.bf16.mxu0 0
    %1253 = vmatpush1.bf16.msra.mxu0 0
    %1254 = vmatprep.subr.bf16.mxu0 0
    %1255 = vmatpush1.bf16.msra.mxu0 0
    %1256 = vmatprep.subr.bf16.mxu0 0
    %1257 = vmatpush1.bf16.msra.mxu0 %v1241
    %1258 = vmatprep.subr.bf16.mxu0 0
    %1259 = vmatpush1.bf16.msra.mxu0 %v1240
    %1260 = vmatprep.subr.bf16.mxu0 0
    %1261 = vmatpush2.bf16.msra.mxu0 0
    %1262 = vmatprep.subr.bf16.mxu0 0
    %1263 = vmatpush2.bf16.msra.mxu0 0
    %1264 = vmatprep.subr.bf16.mxu0 0
    %1265 = vmatpush2.bf16.msra.mxu0 0
    %1266 = vmatprep.subr.bf16.mxu0 0
    %1267 = vmatpush2.bf16.msra.mxu0 0
    %1268 = vmatprep.subr.bf16.mxu0 0
    %1269 = vmatpush2.bf16.msra.mxu0 0
    %1270 = vmatprep.subr.bf16.mxu0 0
    %1271 = vmatpush2.bf16.msra.mxu0 0
    %1272 = vmatprep.subr.bf16.mxu0 0
    %1273 = vmatpush2.bf16.msra.mxu0 0
    %1274 = vmatprep.subr.bf16.mxu0 0
    %1275 = vmatpush2.bf16.msra.mxu0 0
    %1276 = vmatprep.mubr.bf16.mxu0 0
    %1277 = vmatmul.mubr.bf16.gmra.mxu0 %v60
    %v1278 = vpop.f32.mrf.mxu0
    %v1279 = vadd.f32 %v1231, %v1278
    %v1280 = vpop.f32.mrf.mxu0
    %v1281 = vpop.f32.mrf.mxu0
    %v1282 = vadd.f32 %v1231, %v1281
    %v1283 = vpop.f32.mrf.mxu0
    %1284 = vdwg.mxu0
    %v1285 = vld [vmem:[%s1 + $0xa0] sm:$0xf]
    %v1286 = vld [vmem:[%s1 + $0xa4] sm:$0xf]
    %v1287 = vld [vmem:[%s1 + $0xa8] sm:$0xf]
    %v1288 = vld [vmem:[%s1 + $0xac] sm:$0xf]
    %v1289 = vld [vmem:[%s2 + $0xa] sm:$0x1]
    %v1290 = vlaneseq
    %v1291 = vshrl.u32 %v1290, 7
    %v1292 = vsub.s32 0, %v1291
    %v1293 = vrot.slane %v1289, %v1292
    %v1298 = vunpack.c.l.b16 %v1285
    %v1299 = vunpack.c.l.b16 %v1286
    %v1300 = vunpack.c.l.b16 %v1287
    %v1301 = vunpack.c.l.b16 %v1288
    %v1302 = vpack.c.b16 %v1299, %v1298
    %v1303 = vpack.c.b16 %v1301, %v1300
    %1306 = vmatprep.subr.bf16.mxu0 0
    %1307 = vmatpush1.bf16.msra.mxu0 0
    %1308 = vmatprep.subr.bf16.mxu0 0
    %1309 = vmatpush1.bf16.msra.mxu0 0
    %1310 = vmatprep.subr.bf16.mxu0 0
    %1311 = vmatpush1.bf16.msra.mxu0 0
    %1312 = vmatprep.subr.bf16.mxu0 0
    %1313 = vmatpush1.bf16.msra.mxu0 0
    %1314 = vmatprep.subr.bf16.mxu0 0
    %1315 = vmatpush1.bf16.msra.mxu0 0
    %1316 = vmatprep.subr.bf16.mxu0 0
    %1317 = vmatpush1.bf16.msra.mxu0 0
    %1318 = vmatprep.subr.bf16.mxu0 0
    %1319 = vmatpush1.bf16.msra.mxu0 %v1303
    %1320 = vmatprep.subr.bf16.mxu0 0
    %1321 = vmatpush1.bf16.msra.mxu0 %v1302
    %1322 = vmatprep.subr.bf16.mxu0 0
    %1323 = vmatpush2.bf16.msra.mxu0 0
    %1324 = vmatprep.subr.bf16.mxu0 0
    %1325 = vmatpush2.bf16.msra.mxu0 0
    %1326 = vmatprep.subr.bf16.mxu0 0
    %1327 = vmatpush2.bf16.msra.mxu0 0
    %1328 = vmatprep.subr.bf16.mxu0 0
    %1329 = vmatpush2.bf16.msra.mxu0 0
    %1330 = vmatprep.subr.bf16.mxu0 0
    %1331 = vmatpush2.bf16.msra.mxu0 0
    %1332 = vmatprep.subr.bf16.mxu0 0
    %1333 = vmatpush2.bf16.msra.mxu0 0
    %1334 = vmatprep.subr.bf16.mxu0 0
    %1335 = vmatpush2.bf16.msra.mxu0 0
    %1336 = vmatprep.subr.bf16.mxu0 0
    %1337 = vmatpush2.bf16.msra.mxu0 0
    %1338 = vmatprep.mubr.bf16.mxu0 0
    %1339 = vmatmul.mubr.bf16.gmra.mxu0 %v60
    %v1340 = vpop.f32.mrf.mxu0
    %v1341 = vadd.f32 %v1293, %v1340
    %v1342 = vpop.f32.mrf.mxu0
    %v1343 = vpop.f32.mrf.mxu0
    %v1344 = vadd.f32 %v1293, %v1343
    %v1345 = vpop.f32.mrf.mxu0
    %1346 = vdwg.mxu0
    %v1348 = vsel %vm227, %v1217, 0
    %v1351 = vsel %vm227, %v1279, 0
    %1353 = vmatprep.subr.mxu0 0.0
    %1354 = vmatpush1.xpose.msra.mxu0 0.0
    %1355 = vmatprep.subr.mxu0 0.0
    %1356 = vmatpush1.xpose.msra.mxu0 0.0
    %1357 = vmatprep.subr.mxu0 0.0
    %1358 = vmatpush1.xpose.msra.mxu0 0.0
    %1359 = vmatprep.subr.mxu0 0.0
    %1360 = vmatpush1.xpose.msra.mxu0 0.0
    %1361 = vmatprep.subr.mxu0 0.0
    %1362 = vmatpush1.xpose.msra.mxu0 0.0
    %1363 = vmatprep.subr.mxu0 0.0
    %1364 = vmatpush1.xpose.msra.mxu0 0.0
    %1365 = vmatprep.subr.mxu0 0.0
    %1366 = vmatpush1.xpose.msra.mxu0 0.0
    %1367 = vmatprep.subr.mxu0 0.0
    %1368 = vmatpush1.xpose.msra.mxu0 0.0
    %1369 = vmatprep.subr.mxu0 0.0
    %1370 = vmatpush1.xpose.msra.mxu0 0.0
    %1371 = vmatprep.subr.mxu0 0.0
    %1372 = vmatpush1.xpose.msra.mxu0 0.0
    %1373 = vmatprep.subr.mxu0 0.0
    %1374 = vmatpush1.xpose.msra.mxu0 0.0
    %1375 = vmatprep.subr.mxu0 0.0
    %1376 = vmatpush1.xpose.msra.mxu0 0.0
    %1377 = vmatprep.subr.mxu0 0.0
    %1378 = vmatpush1.xpose.msra.mxu0 0.0
    %1379 = vmatprep.subr.mxu0 0.0
    %1380 = vmatpush1.xpose.msra.mxu0 0.0
    %1381 = vmatprep.subr.mxu0 0.0
    %1382 = vmatpush1.xpose.msra.mxu0 0.0
    %1383 = vmatprep.subr.mxu0 0.0
    %1384 = vmatpush1.xpose.msra.mxu0 %v1351
    %1385 = vmatprep.subr.mxu0 0.0
    %1386 = vmatpush2.xpose.msra.mxu0 0.0
    %1387 = vmatprep.subr.mxu0 0.0
    %1388 = vmatpush2.xpose.msra.mxu0 0.0
    %1389 = vmatprep.subr.mxu0 0.0
    %1390 = vmatpush2.xpose.msra.mxu0 0.0
    %1391 = vmatprep.subr.mxu0 0.0
    %1392 = vmatpush2.xpose.msra.mxu0 0.0
    %1393 = vmatprep.subr.mxu0 0.0
    %1394 = vmatpush2.xpose.msra.mxu0 0.0
    %1395 = vmatprep.subr.mxu0 0.0
    %1396 = vmatpush2.xpose.msra.mxu0 0.0
    %1397 = vmatprep.subr.mxu0 0.0
    %1398 = vmatpush2.xpose.msra.mxu0 0.0
    %1399 = vmatprep.subr.mxu0 0.0
    %1400 = vmatpush2.xpose.msra.mxu0 0.0
    %1401 = vmatprep.subr.mxu0 0.0
    %1402 = vmatpush2.xpose.msra.mxu0 0.0
    %1403 = vmatprep.subr.mxu0 0.0
    %1404 = vmatpush2.xpose.msra.mxu0 0.0
    %1405 = vmatprep.subr.mxu0 0.0
    %1406 = vmatpush2.xpose.msra.mxu0 0.0
    %1407 = vmatprep.subr.mxu0 0.0
    %1408 = vmatpush2.xpose.msra.mxu0 0.0
    %1409 = vmatprep.subr.mxu0 0.0
    %1410 = vmatpush2.xpose.msra.mxu0 0.0
    %1411 = vmatprep.subr.mxu0 0.0
    %1412 = vmatpush2.xpose.msra.mxu0 0.0
    %1413 = vmatprep.subr.mxu0 0.0
    %1414 = vmatpush2.xpose.msra.mxu0 0.0
    %1415 = vmatprep.subr.mxu0 0.0
    %1416 = vmatpush2.xpose.msra.mxu0 0.0
    %1417 = vmatprep.mubr.f32.mxu0 0.0
    %1418 = vmatmul.mubr.f32.gmra.mxu0 %v1348
    %v1419 = vpop.f32.mrf.mxu0
    %v1420 = vadd.f32 0.0, %v1419
    %v1421 = vpop.f32.mrf.mxu0
    %1422 = vdwg.mxu0
    %v1424 = vsel %vm227, %v1220, 0
    %v1427 = vsel %vm227, %v1282, 0
    %1429 = vmatprep.subr.mxu0 0.0
    %1430 = vmatpush1.xpose.msra.mxu0 0.0
    %1431 = vmatprep.subr.mxu0 0.0
    %1432 = vmatpush1.xpose.msra.mxu0 0.0
    %1433 = vmatprep.subr.mxu0 0.0
    %1434 = vmatpush1.xpose.msra.mxu0 0.0
    %1435 = vmatprep.subr.mxu0 0.0
    %1436 = vmatpush1.xpose.msra.mxu0 0.0
    %1437 = vmatprep.subr.mxu0 0.0
    %1438 = vmatpush1.xpose.msra.mxu0 0.0
    %1439 = vmatprep.subr.mxu0 0.0
    %1440 = vmatpush1.xpose.msra.mxu0 0.0
    %1441 = vmatprep.subr.mxu0 0.0
    %1442 = vmatpush1.xpose.msra.mxu0 0.0
    %1443 = vmatprep.subr.mxu0 0.0
    %1444 = vmatpush1.xpose.msra.mxu0 0.0
    %1445 = vmatprep.subr.mxu0 0.0
    %1446 = vmatpush1.xpose.msra.mxu0 0.0
    %1447 = vmatprep.subr.mxu0 0.0
    %1448 = vmatpush1.xpose.msra.mxu0 0.0
    %1449 = vmatprep.subr.mxu0 0.0
    %1450 = vmatpush1.xpose.msra.mxu0 0.0
    %1451 = vmatprep.subr.mxu0 0.0
    %1452 = vmatpush1.xpose.msra.mxu0 0.0
    %1453 = vmatprep.subr.mxu0 0.0
    %1454 = vmatpush1.xpose.msra.mxu0 0.0
    %1455 = vmatprep.subr.mxu0 0.0
    %1456 = vmatpush1.xpose.msra.mxu0 0.0
    %1457 = vmatprep.subr.mxu0 0.0
    %1458 = vmatpush1.xpose.msra.mxu0 0.0
    %1459 = vmatprep.subr.mxu0 0.0
    %1460 = vmatpush1.xpose.msra.mxu0 %v1427
    %1461 = vmatprep.subr.mxu0 0.0
    %1462 = vmatpush2.xpose.msra.mxu0 0.0
    %1463 = vmatprep.subr.mxu0 0.0
    %1464 = vmatpush2.xpose.msra.mxu0 0.0
    %1465 = vmatprep.subr.mxu0 0.0
    %1466 = vmatpush2.xpose.msra.mxu0 0.0
    %1467 = vmatprep.subr.mxu0 0.0
    %1468 = vmatpush2.xpose.msra.mxu0 0.0
    %1469 = vmatprep.subr.mxu0 0.0
    %1470 = vmatpush2.xpose.msra.mxu0 0.0
    %1471 = vmatprep.subr.mxu0 0.0
    %1472 = vmatpush2.xpose.msra.mxu0 0.0
    %1473 = vmatprep.subr.mxu0 0.0
    %1474 = vmatpush2.xpose.msra.mxu0 0.0
    %1475 = vmatprep.subr.mxu0 0.0
    %1476 = vmatpush2.xpose.msra.mxu0 0.0
    %1477 = vmatprep.subr.mxu0 0.0
    %1478 = vmatpush2.xpose.msra.mxu0 0.0
    %1479 = vmatprep.subr.mxu0 0.0
    %1480 = vmatpush2.xpose.msra.mxu0 0.0
    %1481 = vmatprep.subr.mxu0 0.0
    %1482 = vmatpush2.xpose.msra.mxu0 0.0
    %1483 = vmatprep.subr.mxu0 0.0
    %1484 = vmatpush2.xpose.msra.mxu0 0.0
    %1485 = vmatprep.subr.mxu0 0.0
    %1486 = vmatpush2.xpose.msra.mxu0 0.0
    %1487 = vmatprep.subr.mxu0 0.0
    %1488 = vmatpush2.xpose.msra.mxu0 0.0
    %1489 = vmatprep.subr.mxu0 0.0
    %1490 = vmatpush2.xpose.msra.mxu0 0.0
    %1491 = vmatprep.subr.mxu0 0.0
    %1492 = vmatpush2.xpose.msra.mxu0 0.0
    %1493 = vmatprep.mubr.f32.mxu0 0.0
    %1494 = vmatmul.mubr.f32.gmra.mxu0 %v1424
    %v1495 = vpop.f32.mrf.mxu0
    %v1496 = vadd.f32 0.0, %v1495
    %v1497 = vpop.f32.mrf.mxu0
    %1498 = vdwg.mxu0
    %v1499 = vsel %vm227, %v1420, -inf
    %1500 = vmax.xlane.f32.xlu0 %v1499
    %v1501 = vpop.xlane.xlu0 %1500
    %v1502 = vsel %vm227, %v1496, -inf
    %1503 = vmax.xlane.f32.xlu0 %v1502
    %v1504 = vpop.xlane.xlu0 %1503
    %v1505 = vsub.f32 %v1420, %v1501
    %v1506 = vsub.f32 %v1496, %v1504
    %v1507 = vmul.f32 %v1505, 1.442695
    %v1508 = vpow.pop %v1507
    %v1509 = vmul.f32 %v1506, 1.442695
    %v1510 = vpow.pop %v1509
    %v1511 = vsel %vm227, %v1508, 0.0
    %1512 = vadd.xlane.f32.xlu0 %v1511
    %v1513 = vpop.xlane.xlu0 %1512
    %v1514 = vsel %vm227, %v1510, 0.0
    %1515 = vadd.xlane.f32.xlu0 %v1514
    %v1516 = vpop.xlane.xlu0 %1515
    %v1517 = vrcp.pop %v1513
    %v1518 = vrcp.pop %v1516
    %v1519 = vmul.f32 %v1508, %v1517
    %v1520 = vmul.f32 %v1510, %v1518
    %v1522 = vsel %vm227, %v1519, 0
    %1524 = vmatprep.subr.mxu0 0.0
    %1525 = vmatpush1.msra.mxu0 0.0
    %1526 = vmatprep.subr.mxu0 0.0
    %1527 = vmatpush1.msra.mxu0 0.0
    %1528 = vmatprep.subr.mxu0 0.0
    %1529 = vmatpush1.msra.mxu0 0.0
    %1530 = vmatprep.subr.mxu0 0.0
    %1531 = vmatpush1.msra.mxu0 0.0
    %1532 = vmatprep.subr.mxu0 0.0
    %1533 = vmatpush1.msra.mxu0 0.0
    %1534 = vmatprep.subr.mxu0 0.0
    %1535 = vmatpush1.msra.mxu0 0.0
    %1536 = vmatprep.subr.mxu0 0.0
    %1537 = vmatpush1.msra.mxu0 0.0
    %1538 = vmatprep.subr.mxu0 0.0
    %1539 = vmatpush1.msra.mxu0 0.0
    %1540 = vmatprep.subr.mxu0 0.0
    %1541 = vmatpush1.msra.mxu0 0.0
    %1542 = vmatprep.subr.mxu0 0.0
    %1543 = vmatpush1.msra.mxu0 0.0
    %1544 = vmatprep.subr.mxu0 0.0
    %1545 = vmatpush1.msra.mxu0 0.0
    %1546 = vmatprep.subr.mxu0 0.0
    %1547 = vmatpush1.msra.mxu0 0.0
    %1548 = vmatprep.subr.mxu0 0.0
    %1549 = vmatpush1.msra.mxu0 0.0
    %1550 = vmatprep.subr.mxu0 0.0
    %1551 = vmatpush1.msra.mxu0 0.0
    %1552 = vmatprep.subr.mxu0 0.0
    %1553 = vmatpush1.msra.mxu0 0.0
    %1554 = vmatprep.subr.mxu0 0.0
    %1555 = vmatpush1.msra.mxu0 %v1341
    %1556 = vmatprep.subr.mxu0 0.0
    %1557 = vmatpush2.msra.mxu0 0.0
    %1558 = vmatprep.subr.mxu0 0.0
    %1559 = vmatpush2.msra.mxu0 0.0
    %1560 = vmatprep.subr.mxu0 0.0
    %1561 = vmatpush2.msra.mxu0 0.0
    %1562 = vmatprep.subr.mxu0 0.0
    %1563 = vmatpush2.msra.mxu0 0.0
    %1564 = vmatprep.subr.mxu0 0.0
    %1565 = vmatpush2.msra.mxu0 0.0
    %1566 = vmatprep.subr.mxu0 0.0
    %1567 = vmatpush2.msra.mxu0 0.0
    %1568 = vmatprep.subr.mxu0 0.0
    %1569 = vmatpush2.msra.mxu0 0.0
    %1570 = vmatprep.subr.mxu0 0.0
    %1571 = vmatpush2.msra.mxu0 0.0
    %1572 = vmatprep.subr.mxu0 0.0
    %1573 = vmatpush2.msra.mxu0 0.0
    %1574 = vmatprep.subr.mxu0 0.0
    %1575 = vmatpush2.msra.mxu0 0.0
    %1576 = vmatprep.subr.mxu0 0.0
    %1577 = vmatpush2.msra.mxu0 0.0
    %1578 = vmatprep.subr.mxu0 0.0
    %1579 = vmatpush2.msra.mxu0 0.0
    %1580 = vmatprep.subr.mxu0 0.0
    %1581 = vmatpush2.msra.mxu0 0.0
    %1582 = vmatprep.subr.mxu0 0.0
    %1583 = vmatpush2.msra.mxu0 0.0
    %1584 = vmatprep.subr.mxu0 0.0
    %1585 = vmatpush2.msra.mxu0 0.0
    %1586 = vmatprep.subr.mxu0 0.0
    %1587 = vmatpush2.msra.mxu0 0.0
    %1588 = vmatprep.mubr.f32.mxu0 0.0
    %1589 = vmatmul.mubr.f32.gmra.mxu0 %v1522
    %v1590 = vpop.f32.mrf.mxu0
    %v1591 = vadd.f32 0.0, %v1590
    %v1592 = vpop.f32.mrf.mxu0
    %1593 = vdwg.mxu0
    %v1595 = vsel %vm227, %v1520, 0
    %1597 = vmatprep.subr.mxu0 0.0
    %1598 = vmatpush1.msra.mxu0 0.0
    %1599 = vmatprep.subr.mxu0 0.0
    %1600 = vmatpush1.msra.mxu0 0.0
    %1601 = vmatprep.subr.mxu0 0.0
    %1602 = vmatpush1.msra.mxu0 0.0
    %1603 = vmatprep.subr.mxu0 0.0
    %1604 = vmatpush1.msra.mxu0 0.0
    %1605 = vmatprep.subr.mxu0 0.0
    %1606 = vmatpush1.msra.mxu0 0.0
    %1607 = vmatprep.subr.mxu0 0.0
    %1608 = vmatpush1.msra.mxu0 0.0
    %1609 = vmatprep.subr.mxu0 0.0
    %1610 = vmatpush1.msra.mxu0 0.0
    %1611 = vmatprep.subr.mxu0 0.0
    %1612 = vmatpush1.msra.mxu0 0.0
    %1613 = vmatprep.subr.mxu0 0.0
    %1614 = vmatpush1.msra.mxu0 0.0
    %1615 = vmatprep.subr.mxu0 0.0
    %1616 = vmatpush1.msra.mxu0 0.0
    %1617 = vmatprep.subr.mxu0 0.0
    %1618 = vmatpush1.msra.mxu0 0.0
    %1619 = vmatprep.subr.mxu0 0.0
    %1620 = vmatpush1.msra.mxu0 0.0
    %1621 = vmatprep.subr.mxu0 0.0
    %1622 = vmatpush1.msra.mxu0 0.0
    %1623 = vmatprep.subr.mxu0 0.0
    %1624 = vmatpush1.msra.mxu0 0.0
    %1625 = vmatprep.subr.mxu0 0.0
    %1626 = vmatpush1.msra.mxu0 0.0
    %1627 = vmatprep.subr.mxu0 0.0
    %1628 = vmatpush1.msra.mxu0 %v1344
    %1629 = vmatprep.subr.mxu0 0.0
    %1630 = vmatpush2.msra.mxu0 0.0
    %1631 = vmatprep.subr.mxu0 0.0
    %1632 = vmatpush2.msra.mxu0 0.0
    %1633 = vmatprep.subr.mxu0 0.0
    %1634 = vmatpush2.msra.mxu0 0.0
    %1635 = vmatprep.subr.mxu0 0.0
    %1636 = vmatpush2.msra.mxu0 0.0
    %1637 = vmatprep.subr.mxu0 0.0
    %1638 = vmatpush2.msra.mxu0 0.0
    %1639 = vmatprep.subr.mxu0 0.0
    %1640 = vmatpush2.msra.mxu0 0.0
    %1641 = vmatprep.subr.mxu0 0.0
    %1642 = vmatpush2.msra.mxu0 0.0
    %1643 = vmatprep.subr.mxu0 0.0
    %1644 = vmatpush2.msra.mxu0 0.0
    %1645 = vmatprep.subr.mxu0 0.0
    %1646 = vmatpush2.msra.mxu0 0.0
    %1647 = vmatprep.subr.mxu0 0.0
    %1648 = vmatpush2.msra.mxu0 0.0
    %1649 = vmatprep.subr.mxu0 0.0
    %1650 = vmatpush2.msra.mxu0 0.0
    %1651 = vmatprep.subr.mxu0 0.0
    %1652 = vmatpush2.msra.mxu0 0.0
    %1653 = vmatprep.subr.mxu0 0.0
    %1654 = vmatpush2.msra.mxu0 0.0
    %1655 = vmatprep.subr.mxu0 0.0
    %1656 = vmatpush2.msra.mxu0 0.0
    %1657 = vmatprep.subr.mxu0 0.0
    %1658 = vmatpush2.msra.mxu0 0.0
    %1659 = vmatprep.subr.mxu0 0.0
    %1660 = vmatpush2.msra.mxu0 0.0
    %1661 = vmatprep.mubr.f32.mxu0 0.0
    %1662 = vmatmul.mubr.f32.gmra.mxu0 %v1595
    %v1663 = vpop.f32.mrf.mxu0
    %v1664 = vadd.f32 0.0, %v1663
    %v1665 = vpop.f32.mrf.mxu0
    %1666 = vdwg.mxu0
    %v1667 = vpack.c.bf16 %v1664, %v1591
    %v1668 = vld [vmem:[%s1 + $0xe0] sm:$0xf]
    %v1670 = vsel %vm227, %v1667, 0
    %v1673 = vsel %vm553, %v1668, 0
    %1675 = vmatprep.subr.bf16.mxu0 0
    %1676 = vmatpush1.bf16.msra.mxu0 0
    %1677 = vmatprep.subr.bf16.mxu0 0
    %1678 = vmatpush1.bf16.msra.mxu0 0
    %1679 = vmatprep.subr.bf16.mxu0 0
    %1680 = vmatpush1.bf16.msra.mxu0 0
    %1681 = vmatprep.subr.bf16.mxu0 0
    %1682 = vmatpush1.bf16.msra.mxu0 0
    %1683 = vmatprep.subr.bf16.mxu0 0
    %1684 = vmatpush1.bf16.msra.mxu0 0
    %1685 = vmatprep.subr.bf16.mxu0 0
    %1686 = vmatpush1.bf16.msra.mxu0 0
    %1687 = vmatprep.subr.bf16.mxu0 0
    %1688 = vmatpush1.bf16.msra.mxu0 0
    %1689 = vmatprep.subr.bf16.mxu0 0
    %1690 = vmatpush1.bf16.msra.mxu0 %v1673
    %1691 = vmatprep.subr.bf16.mxu0 0
    %1692 = vmatpush2.bf16.msra.mxu0 0
    %1693 = vmatprep.subr.bf16.mxu0 0
    %1694 = vmatpush2.bf16.msra.mxu0 0
    %1695 = vmatprep.subr.bf16.mxu0 0
    %1696 = vmatpush2.bf16.msra.mxu0 0
    %1697 = vmatprep.subr.bf16.mxu0 0
    %1698 = vmatpush2.bf16.msra.mxu0 0
    %1699 = vmatprep.subr.bf16.mxu0 0
    %1700 = vmatpush2.bf16.msra.mxu0 0
    %1701 = vmatprep.subr.bf16.mxu0 0
    %1702 = vmatpush2.bf16.msra.mxu0 0
    %1703 = vmatprep.subr.bf16.mxu0 0
    %1704 = vmatpush2.bf16.msra.mxu0 0
    %1705 = vmatprep.subr.bf16.mxu0 0
    %1706 = vmatpush2.bf16.msra.mxu0 0
    %1707 = vmatprep.mubr.bf16.mxu0 0
    %1708 = vmatmul.mubr.bf16.gmra.mxu0 %v1670
    %v1709 = vpop.f32.mrf.mxu0
    %v1710 = vadd.f32 0.0, %v1709
    %v1711 = vpop.f32.mrf.mxu0
    %v1712 = vpop.f32.mrf.mxu0
    %v1713 = vadd.f32 0.0, %v1712
    %v1714 = vpop.f32.mrf.mxu0
    %1715 = vdwg.mxu0
    %v1716 = vadd.f32 %v1159, %v1710
    %v1717 = vadd.f32 %v1160, %v1713
    %v1718 = vld [vmem:[%s1 + $0x30] sm:$0xf]
    %v1719 = vld [vmem:[%s1 + $0x34] sm:$0xf]
    %v1720 = vld [vmem:[%s1 + $0x38] sm:$0xf]
    %v1721 = vld [vmem:[%s1 + $0x3c] sm:$0xf]
    %v1722 = vld [vmem:[%s2 + $0x3] sm:$0x1]
    %v1723 = vlaneseq
    %v1724 = vshrl.u32 %v1723, 7
    %v1725 = vsub.s32 0, %v1724
    %v1726 = vrot.slane %v1722, %v1725
    %v1731 = vunpack.c.l.b16 %v1718
    %v1732 = vunpack.c.l.b16 %v1719
    %v1733 = vunpack.c.l.b16 %v1720
    %v1734 = vunpack.c.l.b16 %v1721
    %v1735 = vpack.c.b16 %v1732, %v1731
    %v1736 = vpack.c.b16 %v1734, %v1733
    %1739 = vmatprep.subr.bf16.mxu0 0
    %1740 = vmatpush1.bf16.msra.mxu0 0
    %1741 = vmatprep.subr.bf16.mxu0 0
    %1742 = vmatpush1.bf16.msra.mxu0 0
    %1743 = vmatprep.subr.bf16.mxu0 0
    %1744 = vmatpush1.bf16.msra.mxu0 0
    %1745 = vmatprep.subr.bf16.mxu0 0
    %1746 = vmatpush1.bf16.msra.mxu0 0
    %1747 = vmatprep.subr.bf16.mxu0 0
    %1748 = vmatpush1.bf16.msra.mxu0 0
    %1749 = vmatprep.subr.bf16.mxu0 0
    %1750 = vmatpush1.bf16.msra.mxu0 0
    %1751 = vmatprep.subr.bf16.mxu0 0
    %1752 = vmatpush1.bf16.msra.mxu0 %v1736
    %1753 = vmatprep.subr.bf16.mxu0 0
    %1754 = vmatpush1.bf16.msra.mxu0 %v1735
    %1755 = vmatprep.subr.bf16.mxu0 0
    %1756 = vmatpush2.bf16.msra.mxu0 0
    %1757 = vmatprep.subr.bf16.mxu0 0
    %1758 = vmatpush2.bf16.msra.mxu0 0
    %1759 = vmatprep.subr.bf16.mxu0 0
    %1760 = vmatpush2.bf16.msra.mxu0 0
    %1761 = vmatprep.subr.bf16.mxu0 0
    %1762 = vmatpush2.bf16.msra.mxu0 0
    %1763 = vmatprep.subr.bf16.mxu0 0
    %1764 = vmatpush2.bf16.msra.mxu0 0
    %1765 = vmatprep.subr.bf16.mxu0 0
    %1766 = vmatpush2.bf16.msra.mxu0 0
    %1767 = vmatprep.subr.bf16.mxu0 0
    %1768 = vmatpush2.bf16.msra.mxu0 0
    %1769 = vmatprep.subr.bf16.mxu0 0
    %1770 = vmatpush2.bf16.msra.mxu0 0
    %1771 = vmatprep.mubr.bf16.mxu0 0
    %1772 = vmatmul.mubr.bf16.gmra.mxu0 %v60
    %v1773 = vpop.f32.mrf.mxu0
    %v1774 = vadd.f32 %v1726, %v1773
    %v1775 = vpop.f32.mrf.mxu0
    %v1776 = vpop.f32.mrf.mxu0
    %v1777 = vadd.f32 %v1726, %v1776
    %v1778 = vpop.f32.mrf.mxu0
    %1779 = vdwg.mxu0
    %v1780 = vld [vmem:[%s1 + $0x70] sm:$0xf]
    %v1781 = vld [vmem:[%s1 + $0x74] sm:$0xf]
    %v1782 = vld [vmem:[%s1 + $0x78] sm:$0xf]
    %v1783 = vld [vmem:[%s1 + $0x7c] sm:$0xf]
    %v1784 = vld [vmem:[%s2 + $0x7] sm:$0x1]
    %v1785 = vlaneseq
    %v1786 = vshrl.u32 %v1785, 7
    %v1787 = vsub.s32 0, %v1786
    %v1788 = vrot.slane %v1784, %v1787
    %v1793 = vunpack.c.l.b16 %v1780
    %v1794 = vunpack.c.l.b16 %v1781
    %v1795 = vunpack.c.l.b16 %v1782
    %v1796 = vunpack.c.l.b16 %v1783
    %v1797 = vpack.c.b16 %v1794, %v1793
    %v1798 = vpack.c.b16 %v1796, %v1795
    %1801 = vmatprep.subr.bf16.mxu0 0
    %1802 = vmatpush1.bf16.msra.mxu0 0
    %1803 = vmatprep.subr.bf16.mxu0 0
    %1804 = vmatpush1.bf16.msra.mxu0 0
    %1805 = vmatprep.subr.bf16.mxu0 0
    %1806 = vmatpush1.bf16.msra.mxu0 0
    %1807 = vmatprep.subr.bf16.mxu0 0
    %1808 = vmatpush1.bf16.msra.mxu0 0
    %1809 = vmatprep.subr.bf16.mxu0 0
    %1810 = vmatpush1.bf16.msra.mxu0 0
    %1811 = vmatprep.subr.bf16.mxu0 0
    %1812 = vmatpush1.bf16.msra.mxu0 0
    %1813 = vmatprep.subr.bf16.mxu0 0
    %1814 = vmatpush1.bf16.msra.mxu0 %v1798
    %1815 = vmatprep.subr.bf16.mxu0 0
    %1816 = vmatpush1.bf16.msra.mxu0 %v1797
    %1817 = vmatprep.subr.bf16.mxu0 0
    %1818 = vmatpush2.bf16.msra.mxu0 0
    %1819 = vmatprep.subr.bf16.mxu0 0
    %1820 = vmatpush2.bf16.msra.mxu0 0
    %1821 = vmatprep.subr.bf16.mxu0 0
    %1822 = vmatpush2.bf16.msra.mxu0 0
    %1823 = vmatprep.subr.bf16.mxu0 0
    %1824 = vmatpush2.bf16.msra.mxu0 0
    %1825 = vmatprep.subr.bf16.mxu0 0
    %1826 = vmatpush2.bf16.msra.mxu0 0
    %1827 = vmatprep.subr.bf16.mxu0 0
    %1828 = vmatpush2.bf16.msra.mxu0 0
    %1829 = vmatprep.subr.bf16.mxu0 0
    %1830 = vmatpush2.bf16.msra.mxu0 0
    %1831 = vmatprep.subr.bf16.mxu0 0
    %1832 = vmatpush2.bf16.msra.mxu0 0
    %1833 = vmatprep.mubr.bf16.mxu0 0
    %1834 = vmatmul.mubr.bf16.gmra.mxu0 %v60
    %v1835 = vpop.f32.mrf.mxu0
    %v1836 = vadd.f32 %v1788, %v1835
    %v1837 = vpop.f32.mrf.mxu0
    %v1838 = vpop.f32.mrf.mxu0
    %v1839 = vadd.f32 %v1788, %v1838
    %v1840 = vpop.f32.mrf.mxu0
    %1841 = vdwg.mxu0
    %v1842 = vld [vmem:[%s1 + $0xb0] sm:$0xf]
    %v1843 = vld [vmem:[%s1 + $0xb4] sm:$0xf]
    %v1844 = vld [vmem:[%s1 + $0xb8] sm:$0xf]
    %v1845 = vld [vmem:[%s1 + $0xbc] sm:$0xf]
    %v1846 = vld [vmem:[%s2 + $0xb] sm:$0x1]
    %v1847 = vlaneseq
    %v1848 = vshrl.u32 %v1847, 7
    %v1849 = vsub.s32 0, %v1848
    %v1850 = vrot.slane %v1846, %v1849
    %v1855 = vunpack.c.l.b16 %v1842
    %v1856 = vunpack.c.l.b16 %v1843
    %v1857 = vunpack.c.l.b16 %v1844
    %v1858 = vunpack.c.l.b16 %v1845
    %v1859 = vpack.c.b16 %v1856, %v1855
    %v1860 = vpack.c.b16 %v1858, %v1857
    %1863 = vmatprep.subr.bf16.mxu0 0
    %1864 = vmatpush1.bf16.msra.mxu0 0
    %1865 = vmatprep.subr.bf16.mxu0 0
    %1866 = vmatpush1.bf16.msra.mxu0 0
    %1867 = vmatprep.subr.bf16.mxu0 0
    %1868 = vmatpush1.bf16.msra.mxu0 0
    %1869 = vmatprep.subr.bf16.mxu0 0
    %1870 = vmatpush1.bf16.msra.mxu0 0
    %1871 = vmatprep.subr.bf16.mxu0 0
    %1872 = vmatpush1.bf16.msra.mxu0 0
    %1873 = vmatprep.subr.bf16.mxu0 0
    %1874 = vmatpush1.bf16.msra.mxu0 0
    %1875 = vmatprep.subr.bf16.mxu0 0
    %1876 = vmatpush1.bf16.msra.mxu0 %v1860
    %1877 = vmatprep.subr.bf16.mxu0 0
    %1878 = vmatpush1.bf16.msra.mxu0 %v1859
    %1879 = vmatprep.subr.bf16.mxu0 0
    %1880 = vmatpush2.bf16.msra.mxu0 0
    %1881 = vmatprep.subr.bf16.mxu0 0
    %1882 = vmatpush2.bf16.msra.mxu0 0
    %1883 = vmatprep.subr.bf16.mxu0 0
    %1884 = vmatpush2.bf16.msra.mxu0 0
    %1885 = vmatprep.subr.bf16.mxu0 0
    %1886 = vmatpush2.bf16.msra.mxu0 0
    %1887 = vmatprep.subr.bf16.mxu0 0
    %1888 = vmatpush2.bf16.msra.mxu0 0
    %1889 = vmatprep.subr.bf16.mxu0 0
    %1890 = vmatpush2.bf16.msra.mxu0 0
    %1891 = vmatprep.subr.bf16.mxu0 0
    %1892 = vmatpush2.bf16.msra.mxu0 0
    %1893 = vmatprep.subr.bf16.mxu0 0
    %1894 = vmatpush2.bf16.msra.mxu0 0
    %1895 = vmatprep.mubr.bf16.mxu0 0
    %1896 = vmatmul.mubr.bf16.gmra.mxu0 %v60
    %v1897 = vpop.f32.mrf.mxu0
    %v1898 = vadd.f32 %v1850, %v1897
    %v1899 = vpop.f32.mrf.mxu0
    %v1900 = vpop.f32.mrf.mxu0
    %v1901 = vadd.f32 %v1850, %v1900
    %v1902 = vpop.f32.mrf.mxu0
    %1903 = vdwg.mxu0
    %v1905 = vsel %vm227, %v1774, 0
    %v1908 = vsel %vm227, %v1836, 0
    %1910 = vmatprep.subr.mxu0 0.0
    %1911 = vmatpush1.xpose.msra.mxu0 0.0
    %1912 = vmatprep.subr.mxu0 0.0
    %1913 = vmatpush1.xpose.msra.mxu0 0.0
    %1914 = vmatprep.subr.mxu0 0.0
    %1915 = vmatpush1.xpose.msra.mxu0 0.0
    %1916 = vmatprep.subr.mxu0 0.0
    %1917 = vmatpush1.xpose.msra.mxu0 0.0
    %1918 = vmatprep.subr.mxu0 0.0
    %1919 = vmatpush1.xpose.msra.mxu0 0.0
    %1920 = vmatprep.subr.mxu0 0.0
    %1921 = vmatpush1.xpose.msra.mxu0 0.0
    %1922 = vmatprep.subr.mxu0 0.0
    %1923 = vmatpush1.xpose.msra.mxu0 0.0
    %1924 = vmatprep.subr.mxu0 0.0
    %1925 = vmatpush1.xpose.msra.mxu0 0.0
    %1926 = vmatprep.subr.mxu0 0.0
    %1927 = vmatpush1.xpose.msra.mxu0 0.0
    %1928 = vmatprep.subr.mxu0 0.0
    %1929 = vmatpush1.xpose.msra.mxu0 0.0
    %1930 = vmatprep.subr.mxu0 0.0
    %1931 = vmatpush1.xpose.msra.mxu0 0.0
    %1932 = vmatprep.subr.mxu0 0.0
    %1933 = vmatpush1.xpose.msra.mxu0 0.0
    %1934 = vmatprep.subr.mxu0 0.0
    %1935 = vmatpush1.xpose.msra.mxu0 0.0
    %1936 = vmatprep.subr.mxu0 0.0
    %1937 = vmatpush1.xpose.msra.mxu0 0.0
    %1938 = vmatprep.subr.mxu0 0.0
    %1939 = vmatpush1.xpose.msra.mxu0 0.0
    %1940 = vmatprep.subr.mxu0 0.0
    %1941 = vmatpush1.xpose.msra.mxu0 %v1908
    %1942 = vmatprep.subr.mxu0 0.0
    %1943 = vmatpush2.xpose.msra.mxu0 0.0
    %1944 = vmatprep.subr.mxu0 0.0
    %1945 = vmatpush2.xpose.msra.mxu0 0.0
    %1946 = vmatprep.subr.mxu0 0.0
    %1947 = vmatpush2.xpose.msra.mxu0 0.0
    %1948 = vmatprep.subr.mxu0 0.0
    %1949 = vmatpush2.xpose.msra.mxu0 0.0
    %1950 = vmatprep.subr.mxu0 0.0
    %1951 = vmatpush2.xpose.msra.mxu0 0.0
    %1952 = vmatprep.subr.mxu0 0.0
    %1953 = vmatpush2.xpose.msra.mxu0 0.0
    %1954 = vmatprep.subr.mxu0 0.0
    %1955 = vmatpush2.xpose.msra.mxu0 0.0
    %1956 = vmatprep.subr.mxu0 0.0
    %1957 = vmatpush2.xpose.msra.mxu0 0.0
    %1958 = vmatprep.subr.mxu0 0.0
    %1959 = vmatpush2.xpose.msra.mxu0 0.0
    %1960 = vmatprep.subr.mxu0 0.0
    %1961 = vmatpush2.xpose.msra.mxu0 0.0
    %1962 = vmatprep.subr.mxu0 0.0
    %1963 = vmatpush2.xpose.msra.mxu0 0.0
    %1964 = vmatprep.subr.mxu0 0.0
    %1965 = vmatpush2.xpose.msra.mxu0 0.0
    %1966 = vmatprep.subr.mxu0 0.0
    %1967 = vmatpush2.xpose.msra.mxu0 0.0
    %1968 = vmatprep.subr.mxu0 0.0
    %1969 = vmatpush2.xpose.msra.mxu0 0.0
    %1970 = vmatprep.subr.mxu0 0.0
    %1971 = vmatpush2.xpose.msra.mxu0 0.0
    %1972 = vmatprep.subr.mxu0 0.0
    %1973 = vmatpush2.xpose.msra.mxu0 0.0
    %1974 = vmatprep.mubr.f32.mxu0 0.0
    %1975 = vmatmul.mubr.f32.gmra.mxu0 %v1905
    %v1976 = vpop.f32.mrf.mxu0
    %v1977 = vadd.f32 0.0, %v1976
    %v1978 = vpop.f32.mrf.mxu0
    %1979 = vdwg.mxu0
    %v1981 = vsel %vm227, %v1777, 0
    %v1984 = vsel %vm227, %v1839, 0
    %1986 = vmatprep.subr.mxu0 0.0
    %1987 = vmatpush1.xpose.msra.mxu0 0.0
    %1988 = vmatprep.subr.mxu0 0.0
    %1989 = vmatpush1.xpose.msra.mxu0 0.0
    %1990 = vmatprep.subr.mxu0 0.0
    %1991 = vmatpush1.xpose.msra.mxu0 0.0
    %1992 = vmatprep.subr.mxu0 0.0
    %1993 = vmatpush1.xpose.msra.mxu0 0.0
    %1994 = vmatprep.subr.mxu0 0.0
    %1995 = vmatpush1.xpose.msra.mxu0 0.0
    %1996 = vmatprep.subr.mxu0 0.0
    %1997 = vmatpush1.xpose.msra.mxu0 0.0
    %1998 = vmatprep.subr.mxu0 0.0
    %1999 = vmatpush1.xpose.msra.mxu0 0.0
    %2000 = vmatprep.subr.mxu0 0.0
    %2001 = vmatpush1.xpose.msra.mxu0 0.0
    %2002 = vmatprep.subr.mxu0 0.0
    %2003 = vmatpush1.xpose.msra.mxu0 0.0
    %2004 = vmatprep.subr.mxu0 0.0
    %2005 = vmatpush1.xpose.msra.mxu0 0.0
    %2006 = vmatprep.subr.mxu0 0.0
    %2007 = vmatpush1.xpose.msra.mxu0 0.0
    %2008 = vmatprep.subr.mxu0 0.0
    %2009 = vmatpush1.xpose.msra.mxu0 0.0
    %2010 = vmatprep.subr.mxu0 0.0
    %2011 = vmatpush1.xpose.msra.mxu0 0.0
    %2012 = vmatprep.subr.mxu0 0.0
    %2013 = vmatpush1.xpose.msra.mxu0 0.0
    %2014 = vmatprep.subr.mxu0 0.0
    %2015 = vmatpush1.xpose.msra.mxu0 0.0
    %2016 = vmatprep.subr.mxu0 0.0
    %2017 = vmatpush1.xpose.msra.mxu0 %v1984
    %2018 = vmatprep.subr.mxu0 0.0
    %2019 = vmatpush2.xpose.msra.mxu0 0.0
    %2020 = vmatprep.subr.mxu0 0.0
    %2021 = vmatpush2.xpose.msra.mxu0 0.0
    %2022 = vmatprep.subr.mxu0 0.0
    %2023 = vmatpush2.xpose.msra.mxu0 0.0
    %2024 = vmatprep.subr.mxu0 0.0
    %2025 = vmatpush2.xpose.msra.mxu0 0.0
    %2026 = vmatprep.subr.mxu0 0.0
    %2027 = vmatpush2.xpose.msra.mxu0 0.0
    %2028 = vmatprep.subr.mxu0 0.0
    %2029 = vmatpush2.xpose.msra.mxu0 0.0
    %2030 = vmatprep.subr.mxu0 0.0
    %2031 = vmatpush2.xpose.msra.mxu0 0.0
    %2032 = vmatprep.subr.mxu0 0.0
    %2033 = vmatpush2.xpose.msra.mxu0 0.0
    %2034 = vmatprep.subr.mxu0 0.0
    %2035 = vmatpush2.xpose.msra.mxu0 0.0
    %2036 = vmatprep.subr.mxu0 0.0
    %2037 = vmatpush2.xpose.msra.mxu0 0.0
    %2038 = vmatprep.subr.mxu0 0.0
    %2039 = vmatpush2.xpose.msra.mxu0 0.0
    %2040 = vmatprep.subr.mxu0 0.0
    %2041 = vmatpush2.xpose.msra.mxu0 0.0
    %2042 = vmatprep.subr.mxu0 0.0
    %2043 = vmatpush2.xpose.msra.mxu0 0.0
    %2044 = vmatprep.subr.mxu0 0.0
    %2045 = vmatpush2.xpose.msra.mxu0 0.0
    %2046 = vmatprep.subr.mxu0 0.0
    %2047 = vmatpush2.xpose.msra.mxu0 0.0
    %2048 = vmatprep.subr.mxu0 0.0
    %2049 = vmatpush2.xpose.msra.mxu0 0.0
    %2050 = vmatprep.mubr.f32.mxu0 0.0
    %2051 = vmatmul.mubr.f32.gmra.mxu0 %v1981
    %v2052 = vpop.f32.mrf.mxu0
    %v2053 = vadd.f32 0.0, %v2052
    %v2054 = vpop.f32.mrf.mxu0
    %2055 = vdwg.mxu0
    %v2056 = vsel %vm227, %v1977, -inf
    %2057 = vmax.xlane.f32.xlu0 %v2056
    %v2058 = vpop.xlane.xlu0 %2057
    %v2059 = vsel %vm227, %v2053, -inf
    %2060 = vmax.xlane.f32.xlu0 %v2059
    %v2061 = vpop.xlane.xlu0 %2060
    %v2062 = vsub.f32 %v1977, %v2058
    %v2063 = vsub.f32 %v2053, %v2061
    %v2064 = vmul.f32 %v2062, 1.442695
    %v2065 = vpow.pop %v2064
    %v2066 = vmul.f32 %v2063, 1.442695
    %v2067 = vpow.pop %v2066
    %v2068 = vsel %vm227, %v2065, 0.0
    %2069 = vadd.xlane.f32.xlu0 %v2068
    %v2070 = vpop.xlane.xlu0 %2069
    %v2071 = vsel %vm227, %v2067, 0.0
    %2072 = vadd.xlane.f32.xlu0 %v2071
    %v2073 = vpop.xlane.xlu0 %2072
    %v2074 = vrcp.pop %v2070
    %v2075 = vrcp.pop %v2073
    %v2076 = vmul.f32 %v2065, %v2074
    %v2077 = vmul.f32 %v2067, %v2075
    %v2079 = vsel %vm227, %v2076, 0
    %2081 = vmatprep.subr.mxu0 0.0
    %2082 = vmatpush1.msra.mxu0 0.0
    %2083 = vmatprep.subr.mxu0 0.0
    %2084 = vmatpush1.msra.mxu0 0.0
    %2085 = vmatprep.subr.mxu0 0.0
    %2086 = vmatpush1.msra.mxu0 0.0
    %2087 = vmatprep.subr.mxu0 0.0
    %2088 = vmatpush1.msra.mxu0 0.0
    %2089 = vmatprep.subr.mxu0 0.0
    %2090 = vmatpush1.msra.mxu0 0.0
    %2091 = vmatprep.subr.mxu0 0.0
    %2092 = vmatpush1.msra.mxu0 0.0
    %2093 = vmatprep.subr.mxu0 0.0
    %2094 = vmatpush1.msra.mxu0 0.0
    %2095 = vmatprep.subr.mxu0 0.0
    %2096 = vmatpush1.msra.mxu0 0.0
    %2097 = vmatprep.subr.mxu0 0.0
    %2098 = vmatpush1.msra.mxu0 0.0
    %2099 = vmatprep.subr.mxu0 0.0
    %2100 = vmatpush1.msra.mxu0 0.0
    %2101 = vmatprep.subr.mxu0 0.0
    %2102 = vmatpush1.msra.mxu0 0.0
    %2103 = vmatprep.subr.mxu0 0.0
    %2104 = vmatpush1.msra.mxu0 0.0
    %2105 = vmatprep.subr.mxu0 0.0
    %2106 = vmatpush1.msra.mxu0 0.0
    %2107 = vmatprep.subr.mxu0 0.0
    %2108 = vmatpush1.msra.mxu0 0.0
    %2109 = vmatprep.subr.mxu0 0.0
    %2110 = vmatpush1.msra.mxu0 0.0
    %2111 = vmatprep.subr.mxu0 0.0
    %2112 = vmatpush1.msra.mxu0 %v1898
    %2113 = vmatprep.subr.mxu0 0.0
    %2114 = vmatpush2.msra.mxu0 0.0
    %2115 = vmatprep.subr.mxu0 0.0
    %2116 = vmatpush2.msra.mxu0 0.0
    %2117 = vmatprep.subr.mxu0 0.0
    %2118 = vmatpush2.msra.mxu0 0.0
    %2119 = vmatprep.subr.mxu0 0.0
    %2120 = vmatpush2.msra.mxu0 0.0
    %2121 = vmatprep.subr.mxu0 0.0
    %2122 = vmatpush2.msra.mxu0 0.0
    %2123 = vmatprep.subr.mxu0 0.0
    %2124 = vmatpush2.msra.mxu0 0.0
    %2125 = vmatprep.subr.mxu0 0.0
    %2126 = vmatpush2.msra.mxu0 0.0
    %2127 = vmatprep.subr.mxu0 0.0
    %2128 = vmatpush2.msra.mxu0 0.0
    %2129 = vmatprep.subr.mxu0 0.0
    %2130 = vmatpush2.msra.mxu0 0.0
    %2131 = vmatprep.subr.mxu0 0.0
    %2132 = vmatpush2.msra.mxu0 0.0
    %2133 = vmatprep.subr.mxu0 0.0
    %2134 = vmatpush2.msra.mxu0 0.0
    %2135 = vmatprep.subr.mxu0 0.0
    %2136 = vmatpush2.msra.mxu0 0.0
    %2137 = vmatprep.subr.mxu0 0.0
    %2138 = vmatpush2.msra.mxu0 0.0
    %2139 = vmatprep.subr.mxu0 0.0
    %2140 = vmatpush2.msra.mxu0 0.0
    %2141 = vmatprep.subr.mxu0 0.0
    %2142 = vmatpush2.msra.mxu0 0.0
    %2143 = vmatprep.subr.mxu0 0.0
    %2144 = vmatpush2.msra.mxu0 0.0
    %2145 = vmatprep.mubr.f32.mxu0 0.0
    %2146 = vmatmul.mubr.f32.gmra.mxu0 %v2079
    %v2147 = vpop.f32.mrf.mxu0
    %v2148 = vadd.f32 0.0, %v2147
    %v2149 = vpop.f32.mrf.mxu0
    %2150 = vdwg.mxu0
    %v2152 = vsel %vm227, %v2077, 0
    %2154 = vmatprep.subr.mxu0 0.0
    %2155 = vmatpush1.msra.mxu0 0.0
    %2156 = vmatprep.subr.mxu0 0.0
    %2157 = vmatpush1.msra.mxu0 0.0
    %2158 = vmatprep.subr.mxu0 0.0
    %2159 = vmatpush1.msra.mxu0 0.0
    %2160 = vmatprep.subr.mxu0 0.0
    %2161 = vmatpush1.msra.mxu0 0.0
    %2162 = vmatprep.subr.mxu0 0.0
    %2163 = vmatpush1.msra.mxu0 0.0
    %2164 = vmatprep.subr.mxu0 0.0
    %2165 = vmatpush1.msra.mxu0 0.0
    %2166 = vmatprep.subr.mxu0 0.0
    %2167 = vmatpush1.msra.mxu0 0.0
    %2168 = vmatprep.subr.mxu0 0.0
    %2169 = vmatpush1.msra.mxu0 0.0
    %2170 = vmatprep.subr.mxu0 0.0
    %2171 = vmatpush1.msra.mxu0 0.0
    %2172 = vmatprep.subr.mxu0 0.0
    %2173 = vmatpush1.msra.mxu0 0.0
    %2174 = vmatprep.subr.mxu0 0.0
    %2175 = vmatpush1.msra.mxu0 0.0
    %2176 = vmatprep.subr.mxu0 0.0
    %2177 = vmatpush1.msra.mxu0 0.0
    %2178 = vmatprep.subr.mxu0 0.0
    %2179 = vmatpush1.msra.mxu0 0.0
    %2180 = vmatprep.subr.mxu0 0.0
    %2181 = vmatpush1.msra.mxu0 0.0
    %2182 = vmatprep.subr.mxu0 0.0
    %2183 = vmatpush1.msra.mxu0 0.0
    %2184 = vmatprep.subr.mxu0 0.0
    %2185 = vmatpush1.msra.mxu0 %v1901
    %2186 = vmatprep.subr.mxu0 0.0
    %2187 = vmatpush2.msra.mxu0 0.0
    %2188 = vmatprep.subr.mxu0 0.0
    %2189 = vmatpush2.msra.mxu0 0.0
    %2190 = vmatprep.subr.mxu0 0.0
    %2191 = vmatpush2.msra.mxu0 0.0
    %2192 = vmatprep.subr.mxu0 0.0
    %2193 = vmatpush2.msra.mxu0 0.0
    %2194 = vmatprep.subr.mxu0 0.0
    %2195 = vmatpush2.msra.mxu0 0.0
    %2196 = vmatprep.subr.mxu0 0.0
    %2197 = vmatpush2.msra.mxu0 0.0
    %2198 = vmatprep.subr.mxu0 0.0
    %2199 = vmatpush2.msra.mxu0 0.0
    %2200 = vmatprep.subr.mxu0 0.0
    %2201 = vmatpush2.msra.mxu0 0.0
    %2202 = vmatprep.subr.mxu0 0.0
    %2203 = vmatpush2.msra.mxu0 0.0
    %2204 = vmatprep.subr.mxu0 0.0
    %2205 = vmatpush2.msra.mxu0 0.0
    %2206 = vmatprep.subr.mxu0 0.0
    %2207 = vmatpush2.msra.mxu0 0.0
    %2208 = vmatprep.subr.mxu0 0.0
    %2209 = vmatpush2.msra.mxu0 0.0
    %2210 = vmatprep.subr.mxu0 0.0
    %2211 = vmatpush2.msra.mxu0 0.0
    %2212 = vmatprep.subr.mxu0 0.0
    %2213 = vmatpush2.msra.mxu0 0.0
    %2214 = vmatprep.subr.mxu0 0.0
    %2215 = vmatpush2.msra.mxu0 0.0
    %2216 = vmatprep.subr.mxu0 0.0
    %2217 = vmatpush2.msra.mxu0 0.0
    %2218 = vmatprep.mubr.f32.mxu0 0.0
    %2219 = vmatmul.mubr.f32.gmra.mxu0 %v2152
    %v2220 = vpop.f32.mrf.mxu0
    %v2221 = vadd.f32 0.0, %v2220
    %v2222 = vpop.f32.mrf.mxu0
    %2223 = vdwg.mxu0
    %v2224 = vpack.c.bf16 %v2221, %v2148
    %v2225 = vld [vmem:[%s1 + $0xf0] sm:$0xf]
    %v2227 = vsel %vm227, %v2224, 0
    %v2230 = vsel %vm553, %v2225, 0
    %2232 = vmatprep.subr.bf16.mxu0 0
    %2233 = vmatpush1.bf16.msra.mxu0 0
    %2234 = vmatprep.subr.bf16.mxu0 0
    %2235 = vmatpush1.bf16.msra.mxu0 0
    %2236 = vmatprep.subr.bf16.mxu0 0
    %2237 = vmatpush1.bf16.msra.mxu0 0
    %2238 = vmatprep.subr.bf16.mxu0 0
    %2239 = vmatpush1.bf16.msra.mxu0 0
    %2240 = vmatprep.subr.bf16.mxu0 0
    %2241 = vmatpush1.bf16.msra.mxu0 0
    %2242 = vmatprep.subr.bf16.mxu0 0
    %2243 = vmatpush1.bf16.msra.mxu0 0
    %2244 = vmatprep.subr.bf16.mxu0 0
    %2245 = vmatpush1.bf16.msra.mxu0 0
    %2246 = vmatprep.subr.bf16.mxu0 0
    %2247 = vmatpush1.bf16.msra.mxu0 %v2230
    %2248 = vmatprep.subr.bf16.mxu0 0
    %2249 = vmatpush2.bf16.msra.mxu0 0
    %2250 = vmatprep.subr.bf16.mxu0 0
    %2251 = vmatpush2.bf16.msra.mxu0 0
    %2252 = vmatprep.subr.bf16.mxu0 0
    %2253 = vmatpush2.bf16.msra.mxu0 0
    %2254 = vmatprep.subr.bf16.mxu0 0
    %2255 = vmatpush2.bf16.msra.mxu0 0
    %2256 = vmatprep.subr.bf16.mxu0 0
    %2257 = vmatpush2.bf16.msra.mxu0 0
    %2258 = vmatprep.subr.bf16.mxu0 0
    %2259 = vmatpush2.bf16.msra.mxu0 0
    %2260 = vmatprep.subr.bf16.mxu0 0
    %2261 = vmatpush2.bf16.msra.mxu0 0
    %2262 = vmatprep.subr.bf16.mxu0 0
    %2263 = vmatpush2.bf16.msra.mxu0 0
    %2264 = vmatprep.mubr.bf16.mxu0 0
    %2265 = vmatmul.mubr.bf16.gmra.mxu0 %v2227
    %v2266 = vpop.f32.mrf.mxu0
    %v2267 = vadd.f32 0.0, %v2266
    %v2268 = vpop.f32.mrf.mxu0
    %v2269 = vpop.f32.mrf.mxu0
    %v2270 = vadd.f32 0.0, %v2269
    %v2271 = vpop.f32.mrf.mxu0
    %2272 = vdwg.mxu0
    %v2273 = vadd.f32 %v1716, %v2267
    %v2274 = vadd.f32 %v1717, %v2270
    %v2275 = vadd.f32 %v34, %v2273
    %v2276 = vadd.f32 %v35, %v2274
    %v2277 = vsel %vm58, %v2275, 0.0
    %2278 = vadd.xlane.f32.xlu0 %v2277
    %v2279 = vpop.xlane.xlu0 %2278
    %v2280 = vsel %vm58, %v2276, 0.0
    %2281 = vadd.xlane.f32.xlu0 %v2280
    %v2282 = vpop.xlane.xlu0 %2281
    %v2283 = vrcp.pop 32.0
    %v2284 = vmul.f32 %v2279, %v2283
    %v2285 = vmul.f32 %v2282, %v2283
    %v2286 = vsub.f32 %v2275, %v2284
    %v2287 = vsub.f32 %v2276, %v2285
    %v2288 = vmul.f32 %v2286, %v2286
    %v2289 = vmul.f32 %v2287, %v2287
    %v2290 = vsel %vm58, %v2288, 0.0
    %2291 = vadd.xlane.f32.xlu0 %v2290
    %v2292 = vpop.xlane.xlu0 %2291
    %v2293 = vsel %vm58, %v2289, 0.0
    %2294 = vadd.xlane.f32.xlu0 %v2293
    %v2295 = vpop.xlane.xlu0 %2294
    %v2296 = vmul.f32 %v2292, %v2283
    %v2297 = vmul.f32 %v2295, %v2283
    %v2298 = vadd.f32 %v2296, 1e-05
    %v2299 = vadd.f32 %v2297, 1e-05
    %v2300 = vrsqrt.pop %v2298
    %v2301 = vrsqrt.pop %v2299
    %v2302 = vmul.f32 %v2286, %v2300
    %v2303 = vmul.f32 %v2287, %v2301
    %v2304 = vlaneseq
    %v2305 = vshrl.u32 %v2304, 7
    %v2306 = vsub.s32 0, %v2305
    %v2307 = vrot.slane %v20, %v2306
    %v2308 = vmul.f32 %v2302, %v2307
    %v2309 = vmul.f32 %v2303, %v2307
    %v2310 = vlaneseq
    %v2311 = vshrl.u32 %v2310, 7
    %v2312 = vsub.s32 0, %v2311
    %v2313 = vrot.slane %v21, %v2312
    %v2314 = vadd.f32 %v2308, %v2313
    %v2315 = vadd.f32 %v2309, %v2313
    %v2316 = vpack.c.bf16 %v2315, %v2314
    %v2317 = vlaneseq
    %v2318 = vshrl.u32 %v2317, 7
    %v2319 = vsub.s32 0, %v2318
    %v2320 = vrot.slane %v22, %v2319
    %v2325 = vunpack.c.l.b16 %v26
    %v2326 = vunpack.c.l.b16 %v27
    %v2327 = vunpack.c.l.b16 %v28
    %v2328 = vunpack.c.l.b16 %v29
    %v2329 = vpack.c.b16 %v2326, %v2325
    %v2330 = vpack.c.b16 %v2328, %v2327
    %v2334 = vsel %vm58, %v2316, 0
    %2336 = vmatprep.subr.bf16.mxu0 0
    %2337 = vmatpush1.bf16.msra.mxu0 0
    %2338 = vmatprep.subr.bf16.mxu0 0
    %2339 = vmatpush1.bf16.msra.mxu0 0
    %2340 = vmatprep.subr.bf16.mxu0 0
    %2341 = vmatpush1.bf16.msra.mxu0 0
    %2342 = vmatprep.subr.bf16.mxu0 0
    %2343 = vmatpush1.bf16.msra.mxu0 0
    %2344 = vmatprep.subr.bf16.mxu0 0
    %2345 = vmatpush1.bf16.msra.mxu0 0
    %2346 = vmatprep.subr.bf16.mxu0 0
    %2347 = vmatpush1.bf16.msra.mxu0 0
    %2348 = vmatprep.subr.bf16.mxu0 0
    %2349 = vmatpush1.bf16.msra.mxu0 %v2330
    %2350 = vmatprep.subr.bf16.mxu0 0
    %2351 = vmatpush1.bf16.msra.mxu0 %v2329
    %2352 = vmatprep.subr.bf16.mxu0 0
    %2353 = vmatpush2.bf16.msra.mxu0 0
    %2354 = vmatprep.subr.bf16.mxu0 0
    %2355 = vmatpush2.bf16.msra.mxu0 0
    %2356 = vmatprep.subr.bf16.mxu0 0
    %2357 = vmatpush2.bf16.msra.mxu0 0
    %2358 = vmatprep.subr.bf16.mxu0 0
    %2359 = vmatpush2.bf16.msra.mxu0 0
    %2360 = vmatprep.subr.bf16.mxu0 0
    %2361 = vmatpush2.bf16.msra.mxu0 0
    %2362 = vmatprep.subr.bf16.mxu0 0
    %2363 = vmatpush2.bf16.msra.mxu0 0
    %2364 = vmatprep.subr.bf16.mxu0 0
    %2365 = vmatpush2.bf16.msra.mxu0 0
    %2366 = vmatprep.subr.bf16.mxu0 0
    %2367 = vmatpush2.bf16.msra.mxu0 0
    %2368 = vmatprep.mubr.bf16.mxu0 0
    %2369 = vmatmul.mubr.bf16.gmra.mxu0 %v2334
    %v2370 = vpop.f32.mrf.mxu0
    %v2371 = vadd.f32 %v2320, %v2370
    %v2372 = vpop.f32.mrf.mxu0
    %v2373 = vpop.f32.mrf.mxu0
    %v2374 = vadd.f32 %v2320, %v2373
    %v2375 = vpop.f32.mrf.mxu0
    %2376 = vdwg.mxu0
    %v2377 = vmul.f32 %v2371, 0.5
    %v2378 = vmul.f32 %v2374, 0.5
    %v2379 = vmul.f32 %v2371, 0.044715
    %v2380 = vmul.f32 %v2374, 0.044715
    %v2381 = vmul.f32 %v2379, %v2371
    %v2382 = vmul.f32 %v2380, %v2374
    %v2383 = vmul.f32 %v2381, %v2371
    %v2384 = vmul.f32 %v2382, %v2374
    %v2385 = vadd.f32 %v2371, %v2383
    %v2386 = vadd.f32 %v2374, %v2384
    %v2387 = vmul.f32 %v2385, 0.7978846
    %v2388 = vmul.f32 %v2386, 0.7978846
    %v2389 = vtanh.pop %v2387
    %v2390 = vtanh.pop %v2388
    %v2391 = vadd.f32 %v2389, 1.0
    %v2392 = vadd.f32 %v2390, 1.0
    %v2393 = vmul.f32 %v2377, %v2391
    %v2394 = vmul.f32 %v2378, %v2392
    %v2395 = vpack.c.bf16 %v2394, %v2393
    %v2396 = vlaneseq
    %v2397 = vshrl.u32 %v2396, 7
    %v2398 = vsub.s32 0, %v2397
    %v2399 = vrot.slane %v23, %v2398
    %v2404 = vunpack.c.l.b16 %v30
    %v2405 = vunpack.c.l.b16 %v31
    %v2406 = vunpack.c.l.b16 %v32
    %v2407 = vunpack.c.l.b16 %v33
    %v2408 = vpack.c.b16 %v2405, %v2404
    %v2409 = vpack.c.b16 %v2407, %v2406
    %v2413 = vsel %vm58, %v2395, 0
    %2415 = vmatprep.subr.bf16.mxu0 0
    %2416 = vmatpush1.bf16.msra.mxu0 0
    %2417 = vmatprep.subr.bf16.mxu0 0
    %2418 = vmatpush1.bf16.msra.mxu0 0
    %2419 = vmatprep.subr.bf16.mxu0 0
    %2420 = vmatpush1.bf16.msra.mxu0 0
    %2421 = vmatprep.subr.bf16.mxu0 0
    %2422 = vmatpush1.bf16.msra.mxu0 0
    %2423 = vmatprep.subr.bf16.mxu0 0
    %2424 = vmatpush1.bf16.msra.mxu0 0
    %2425 = vmatprep.subr.bf16.mxu0 0
    %2426 = vmatpush1.bf16.msra.mxu0 0
    %2427 = vmatprep.subr.bf16.mxu0 0
    %2428 = vmatpush1.bf16.msra.mxu0 %v2409
    %2429 = vmatprep.subr.bf16.mxu0 0
    %2430 = vmatpush1.bf16.msra.mxu0 %v2408
    %2431 = vmatprep.subr.bf16.mxu0 0
    %2432 = vmatpush2.bf16.msra.mxu0 0
    %2433 = vmatprep.subr.bf16.mxu0 0
    %2434 = vmatpush2.bf16.msra.mxu0 0
    %2435 = vmatprep.subr.bf16.mxu0 0
    %2436 = vmatpush2.bf16.msra.mxu0 0
    %2437 = vmatprep.subr.bf16.mxu0 0
    %2438 = vmatpush2.bf16.msra.mxu0 0
    %2439 = vmatprep.subr.bf16.mxu0 0
    %2440 = vmatpush2.bf16.msra.mxu0 0
    %2441 = vmatprep.subr.bf16.mxu0 0
    %2442 = vmatpush2.bf16.msra.mxu0 0
    %2443 = vmatprep.subr.bf16.mxu0 0
    %2444 = vmatpush2.bf16.msra.mxu0 0
    %2445 = vmatprep.subr.bf16.mxu0 0
    %2446 = vmatpush2.bf16.msra.mxu0 0
    %2447 = vmatprep.mubr.bf16.mxu0 0
    %2448 = vmatmul.mubr.bf16.gmra.mxu0 %v2413
    %v2449 = vpop.f32.mrf.mxu0
    %v2450 = vadd.f32 %v2399, %v2449
    %v2451 = vpop.f32.mrf.mxu0
    %v2452 = vpop.f32.mrf.mxu0
    %v2453 = vadd.f32 %v2399, %v2452
    %v2454 = vpop.f32.mrf.mxu0
    %2455 = vdwg.mxu0
    %v2456 = vadd.f32 %v2314, %v2450
    %v2457 = vadd.f32 %v2315, %v2453
    %v2458 = vsel %vm58, %v2456, 0.0
    %2459 = vadd.xlane.f32.xlu0 %v2458
    %v2460 = vpop.xlane.xlu0 %2459
    %v2461 = vsel %vm58, %v2457, 0.0
    %2462 = vadd.xlane.f32.xlu0 %v2461
    %v2463 = vpop.xlane.xlu0 %2462
    %v2464 = vmul.f32 %v2460, %v2283
    %v2465 = vmul.f32 %v2463, %v2283
    %v2466 = vsub.f32 %v2456, %v2464
    %v2467 = vsub.f32 %v2457, %v2465
    %v2468 = vmul.f32 %v2466, %v2466
    %v2469 = vmul.f32 %v2467, %v2467
    %v2470 = vsel %vm58, %v2468, 0.0
    %2471 = vadd.xlane.f32.xlu0 %v2470
    %v2472 = vpop.xlane.xlu0 %2471
    %v2473 = vsel %vm58, %v2469, 0.0
    %2474 = vadd.xlane.f32.xlu0 %v2473
    %v2475 = vpop.xlane.xlu0 %2474
    %v2476 = vmul.f32 %v2472, %v2283
    %v2477 = vmul.f32 %v2475, %v2283
    %v2478 = vadd.f32 %v2476, 1e-05
    %v2479 = vadd.f32 %v2477, 1e-05
    %v2480 = vrsqrt.pop %v2478
    %v2481 = vrsqrt.pop %v2479
    %v2482 = vmul.f32 %v2466, %v2480
    %v2483 = vmul.f32 %v2467, %v2481
    %v2484 = vlaneseq
    %v2485 = vshrl.u32 %v2484, 7
    %v2486 = vsub.s32 0, %v2485
    %v2487 = vrot.slane %v24, %v2486
    %v2488 = vmul.f32 %v2482, %v2487
    %v2489 = vmul.f32 %v2483, %v2487
    %v2490 = vlaneseq
    %v2491 = vshrl.u32 %v2490, 7
    %v2492 = vsub.s32 0, %v2491
    %v2493 = vrot.slane %v25, %v2492
    %v2494 = vadd.f32 %v2488, %v2493
    %v2495 = vadd.f32 %v2489, %v2493
    %v2496 = vpack.c.bf16 %v2495, %v2494
    %v2497 = vld [vmem:[%s1] sm:$0xf]
    %v2498 = vld [vmem:[%s1 + $0x4] sm:$0xf]
    %v2499 = vld [vmem:[%s1 + $0x8] sm:$0xf]
    %v2500 = vld [vmem:[%s1 + $0xc] sm:$0xf]
    %v2501 = vld [vmem:[%s2] sm:$0x1]
    %v2502 = vlaneseq
    %v2503 = vshrl.u32 %v2502, 7
    %v2504 = vsub.s32 0, %v2503
    %v2505 = vrot.slane %v2501, %v2504
    %v2510 = vunpack.c.l.b16 %v2497
    %v2511 = vunpack.c.l.b16 %v2498
    %v2512 = vunpack.c.l.b16 %v2499
    %v2513 = vunpack.c.l.b16 %v2500
    %v2514 = vpack.c.b16 %v2511, %v2510
    %v2515 = vpack.c.b16 %v2513, %v2512
    %v2519 = vsel %vm58, %v2496, 0
    %2521 = vmatprep.subr.bf16.mxu0 0
    %2522 = vmatpush1.bf16.msra.mxu0 0
    %2523 = vmatprep.subr.bf16.mxu0 0
    %2524 = vmatpush1.bf16.msra.mxu0 0
    %2525 = vmatprep.subr.bf16.mxu0 0
    %2526 = vmatpush1.bf16.msra.mxu0 0
    %2527 = vmatprep.subr.bf16.mxu0 0
    %2528 = vmatpush1.bf16.msra.mxu0 0
    %2529 = vmatprep.subr.bf16.mxu0 0
    %2530 = vmatpush1.bf16.msra.mxu0 0
    %2531 = vmatprep.subr.bf16.mxu0 0
    %2532 = vmatpush1.bf16.msra.mxu0 0
    %2533 = vmatprep.subr.bf16.mxu0 0
    %2534 = vmatpush1.bf16.msra.mxu0 %v2515
    %2535 = vmatprep.subr.bf16.mxu0 0
    %2536 = vmatpush1.bf16.msra.mxu0 %v2514
    %2537 = vmatprep.subr.bf16.mxu0 0
    %2538 = vmatpush2.bf16.msra.mxu0 0
    %2539 = vmatprep.subr.bf16.mxu0 0
    %2540 = vmatpush2.bf16.msra.mxu0 0
    %2541 = vmatprep.subr.bf16.mxu0 0
    %2542 = vmatpush2.bf16.msra.mxu0 0
    %2543 = vmatprep.subr.bf16.mxu0 0
    %2544 = vmatpush2.bf16.msra.mxu0 0
    %2545 = vmatprep.subr.bf16.mxu0 0
    %2546 = vmatpush2.bf16.msra.mxu0 0
    %2547 = vmatprep.subr.bf16.mxu0 0
    %2548 = vmatpush2.bf16.msra.mxu0 0
    %2549 = vmatprep.subr.bf16.mxu0 0
    %2550 = vmatpush2.bf16.msra.mxu0 0
    %2551 = vmatprep.subr.bf16.mxu0 0
    %2552 = vmatpush2.bf16.msra.mxu0 0
    %2553 = vmatprep.mubr.bf16.mxu0 0
    %2554 = vmatmul.mubr.bf16.gmra.mxu0 %v2519
    %v2555 = vpop.f32.mrf.mxu0
    %v2556 = vadd.f32 %v2505, %v2555
    %v2557 = vpop.f32.mrf.mxu0
    %v2558 = vpop.f32.mrf.mxu0
    %v2559 = vadd.f32 %v2505, %v2558
    %v2560 = vpop.f32.mrf.mxu0
    %2561 = vdwg.mxu0
    %v2562 = vld [vmem:[%s1 + $0x40] sm:$0xf]
    %v2563 = vld [vmem:[%s1 + $0x44] sm:$0xf]
    %v2564 = vld [vmem:[%s1 + $0x48] sm:$0xf]
    %v2565 = vld [vmem:[%s1 + $0x4c] sm:$0xf]
    %v2566 = vld [vmem:[%s2 + $0x4] sm:$0x1]
    %v2567 = vlaneseq
    %v2568 = vshrl.u32 %v2567, 7
    %v2569 = vsub.s32 0, %v2568
    %v2570 = vrot.slane %v2566, %v2569
    %v2575 = vunpack.c.l.b16 %v2562
    %v2576 = vunpack.c.l.b16 %v2563
    %v2577 = vunpack.c.l.b16 %v2564
    %v2578 = vunpack.c.l.b16 %v2565
    %v2579 = vpack.c.b16 %v2576, %v2575
    %v2580 = vpack.c.b16 %v2578, %v2577
    %2583 = vmatprep.subr.bf16.mxu0 0
    %2584 = vmatpush1.bf16.msra.mxu0 0
    %2585 = vmatprep.subr.bf16.mxu0 0
    %2586 = vmatpush1.bf16.msra.mxu0 0
    %2587 = vmatprep.subr.bf16.mxu0 0
    %2588 = vmatpush1.bf16.msra.mxu0 0
    %2589 = vmatprep.subr.bf16.mxu0 0
    %2590 = vmatpush1.bf16.msra.mxu0 0
    %2591 = vmatprep.subr.bf16.mxu0 0
    %2592 = vmatpush1.bf16.msra.mxu0 0
    %2593 = vmatprep.subr.bf16.mxu0 0
    %2594 = vmatpush1.bf16.msra.mxu0 0
    %2595 = vmatprep.subr.bf16.mxu0 0
    %2596 = vmatpush1.bf16.msra.mxu0 %v2580
    %2597 = vmatprep.subr.bf16.mxu0 0
    %2598 = vmatpush1.bf16.msra.mxu0 %v2579
    %2599 = vmatprep.subr.bf16.mxu0 0
    %2600 = vmatpush2.bf16.msra.mxu0 0
    %2601 = vmatprep.subr.bf16.mxu0 0
    %2602 = vmatpush2.bf16.msra.mxu0 0
    %2603 = vmatprep.subr.bf16.mxu0 0
    %2604 = vmatpush2.bf16.msra.mxu0 0
    %2605 = vmatprep.subr.bf16.mxu0 0
    %2606 = vmatpush2.bf16.msra.mxu0 0
    %2607 = vmatprep.subr.bf16.mxu0 0
    %2608 = vmatpush2.bf16.msra.mxu0 0
    %2609 = vmatprep.subr.bf16.mxu0 0
    %2610 = vmatpush2.bf16.msra.mxu0 0
    %2611 = vmatprep.subr.bf16.mxu0 0
    %2612 = vmatpush2.bf16.msra.mxu0 0
    %2613 = vmatprep.subr.bf16.mxu0 0
    %2614 = vmatpush2.bf16.msra.mxu0 0
    %2615 = vmatprep.mubr.bf16.mxu0 0
    %2616 = vmatmul.mubr.bf16.gmra.mxu0 %v2519
    %v2617 = vpop.f32.mrf.mxu0
    %v2618 = vadd.f32 %v2570, %v2617
    %v2619 = vpop.f32.mrf.mxu0
    %v2620 = vpop.f32.mrf.mxu0
    %v2621 = vadd.f32 %v2570, %v2620
    %v2622 = vpop.f32.mrf.mxu0
    %2623 = vdwg.mxu0
    %v2624 = vld [vmem:[%s1 + $0x80] sm:$0xf]
    %v2625 = vld [vmem:[%s1 + $0x84] sm:$0xf]
    %v2626 = vld [vmem:[%s1 + $0x88] sm:$0xf]
    %v2627 = vld [vmem:[%s1 + $0x8c] sm:$0xf]
    %v2628 = vld [vmem:[%s2 + $0x8] sm:$0x1]
    %v2629 = vlaneseq
    %v2630 = vshrl.u32 %v2629, 7
    %v2631 = vsub.s32 0, %v2630
    %v2632 = vrot.slane %v2628, %v2631
    %v2637 = vunpack.c.l.b16 %v2624
    %v2638 = vunpack.c.l.b16 %v2625
    %v2639 = vunpack.c.l.b16 %v2626
    %v2640 = vunpack.c.l.b16 %v2627
    %v2641 = vpack.c.b16 %v2638, %v2637
    %v2642 = vpack.c.b16 %v2640, %v2639
    %2645 = vmatprep.subr.bf16.mxu0 0
    %2646 = vmatpush1.bf16.msra.mxu0 0
    %2647 = vmatprep.subr.bf16.mxu0 0
    %2648 = vmatpush1.bf16.msra.mxu0 0
    %2649 = vmatprep.subr.bf16.mxu0 0
    %2650 = vmatpush1.bf16.msra.mxu0 0
    %2651 = vmatprep.subr.bf16.mxu0 0
    %2652 = vmatpush1.bf16.msra.mxu0 0
    %2653 = vmatprep.subr.bf16.mxu0 0
    %2654 = vmatpush1.bf16.msra.mxu0 0
    %2655 = vmatprep.subr.bf16.mxu0 0
    %2656 = vmatpush1.bf16.msra.mxu0 0
    %2657 = vmatprep.subr.bf16.mxu0 0
    %2658 = vmatpush1.bf16.msra.mxu0 %v2642
    %2659 = vmatprep.subr.bf16.mxu0 0
    %2660 = vmatpush1.bf16.msra.mxu0 %v2641
    %2661 = vmatprep.subr.bf16.mxu0 0
    %2662 = vmatpush2.bf16.msra.mxu0 0
    %2663 = vmatprep.subr.bf16.mxu0 0
    %2664 = vmatpush2.bf16.msra.mxu0 0
    %2665 = vmatprep.subr.bf16.mxu0 0
    %2666 = vmatpush2.bf16.msra.mxu0 0
    %2667 = vmatprep.subr.bf16.mxu0 0
    %2668 = vmatpush2.bf16.msra.mxu0 0
    %2669 = vmatprep.subr.bf16.mxu0 0
    %2670 = vmatpush2.bf16.msra.mxu0 0
    %2671 = vmatprep.subr.bf16.mxu0 0
    %2672 = vmatpush2.bf16.msra.mxu0 0
    %2673 = vmatprep.subr.bf16.mxu0 0
    %2674 = vmatpush2.bf16.msra.mxu0 0
    %2675 = vmatprep.subr.bf16.mxu0 0
    %2676 = vmatpush2.bf16.msra.mxu0 0
    %2677 = vmatprep.mubr.bf16.mxu0 0
    %2678 = vmatmul.mubr.bf16.gmra.mxu0 %v2519
    %v2679 = vpop.f32.mrf.mxu0
    %v2680 = vadd.f32 %v2632, %v2679
    %v2681 = vpop.f32.mrf.mxu0
    %v2682 = vpop.f32.mrf.mxu0
    %v2683 = vadd.f32 %v2632, %v2682
    %v2684 = vpop.f32.mrf.mxu0
    %2685 = vdwg.mxu0
    %v2687 = vsel %vm227, %v2556, 0
    %v2690 = vsel %vm227, %v2618, 0
    %2692 = vmatprep.subr.mxu0 0.0
    %2693 = vmatpush1.xpose.msra.mxu0 0.0
    %2694 = vmatprep.subr.mxu0 0.0
    %2695 = vmatpush1.xpose.msra.mxu0 0.0
    %2696 = vmatprep.subr.mxu0 0.0
    %2697 = vmatpush1.xpose.msra.mxu0 0.0
    %2698 = vmatprep.subr.mxu0 0.0
    %2699 = vmatpush1.xpose.msra.mxu0 0.0
    %2700 = vmatprep.subr.mxu0 0.0
    %2701 = vmatpush1.xpose.msra.mxu0 0.0
    %2702 = vmatprep.subr.mxu0 0.0
    %2703 = vmatpush1.xpose.msra.mxu0 0.0
    %2704 = vmatprep.subr.mxu0 0.0
    %2705 = vmatpush1.xpose.msra.mxu0 0.0
    %2706 = vmatprep.subr.mxu0 0.0
    %2707 = vmatpush1.xpose.msra.mxu0 0.0
    %2708 = vmatprep.subr.mxu0 0.0
    %2709 = vmatpush1.xpose.msra.mxu0 0.0
    %2710 = vmatprep.subr.mxu0 0.0
    %2711 = vmatpush1.xpose.msra.mxu0 0.0
    %2712 = vmatprep.subr.mxu0 0.0
    %2713 = vmatpush1.xpose.msra.mxu0 0.0
    %2714 = vmatprep.subr.mxu0 0.0
    %2715 = vmatpush1.xpose.msra.mxu0 0.0
    %2716 = vmatprep.subr.mxu0 0.0
    %2717 = vmatpush1.xpose.msra.mxu0 0.0
    %2718 = vmatprep.subr.mxu0 0.0
    %2719 = vmatpush1.xpose.msra.mxu0 0.0
    %2720 = vmatprep.subr.mxu0 0.0
    %2721 = vmatpush1.xpose.msra.mxu0 0.0
    %2722 = vmatprep.subr.mxu0 0.0
    %2723 = vmatpush1.xpose.msra.mxu0 %v2690
    %2724 = vmatprep.subr.mxu0 0.0
    %2725 = vmatpush2.xpose.msra.mxu0 0.0
    %2726 = vmatprep.subr.mxu0 0.0
    %2727 = vmatpush2.xpose.msra.mxu0 0.0
    %2728 = vmatprep.subr.mxu0 0.0
    %2729 = vmatpush2.xpose.msra.mxu0 0.0
    %2730 = vmatprep.subr.mxu0 0.0
    %2731 = vmatpush2.xpose.msra.mxu0 0.0
    %2732 = vmatprep.subr.mxu0 0.0
    %2733 = vmatpush2.xpose.msra.mxu0 0.0
    %2734 = vmatprep.subr.mxu0 0.0
    %2735 = vmatpush2.xpose.msra.mxu0 0.0
    %2736 = vmatprep.subr.mxu0 0.0
    %2737 = vmatpush2.xpose.msra.mxu0 0.0
    %2738 = vmatprep.subr.mxu0 0.0
    %2739 = vmatpush2.xpose.msra.mxu0 0.0
    %2740 = vmatprep.subr.mxu0 0.0
    %2741 = vmatpush2.xpose.msra.mxu0 0.0
    %2742 = vmatprep.subr.mxu0 0.0
    %2743 = vmatpush2.xpose.msra.mxu0 0.0
    %2744 = vmatprep.subr.mxu0 0.0
    %2745 = vmatpush2.xpose.msra.mxu0 0.0
    %2746 = vmatprep.subr.mxu0 0.0
    %2747 = vmatpush2.xpose.msra.mxu0 0.0
    %2748 = vmatprep.subr.mxu0 0.0
    %2749 = vmatpush2.xpose.msra.mxu0 0.0
    %2750 = vmatprep.subr.mxu0 0.0
    %2751 = vmatpush2.xpose.msra.mxu0 0.0
    %2752 = vmatprep.subr.mxu0 0.0
    %2753 = vmatpush2.xpose.msra.mxu0 0.0
    %2754 = vmatprep.subr.mxu0 0.0
    %2755 = vmatpush2.xpose.msra.mxu0 0.0
    %2756 = vmatprep.mubr.f32.mxu0 0.0
    %2757 = vmatmul.mubr.f32.gmra.mxu0 %v2687
    %v2758 = vpop.f32.mrf.mxu0
    %v2759 = vadd.f32 0.0, %v2758
    %v2760 = vpop.f32.mrf.mxu0
    %2761 = vdwg.mxu0
    %v2763 = vsel %vm227, %v2559, 0
    %v2766 = vsel %vm227, %v2621, 0
    %2768 = vmatprep.subr.mxu0 0.0
    %2769 = vmatpush1.xpose.msra.mxu0 0.0
    %2770 = vmatprep.subr.mxu0 0.0
    %2771 = vmatpush1.xpose.msra.mxu0 0.0
    %2772 = vmatprep.subr.mxu0 0.0
    %2773 = vmatpush1.xpose.msra.mxu0 0.0
    %2774 = vmatprep.subr.mxu0 0.0
    %2775 = vmatpush1.xpose.msra.mxu0 0.0
    %2776 = vmatprep.subr.mxu0 0.0
    %2777 = vmatpush1.xpose.msra.mxu0 0.0
    %2778 = vmatprep.subr.mxu0 0.0
    %2779 = vmatpush1.xpose.msra.mxu0 0.0
    %2780 = vmatprep.subr.mxu0 0.0
    %2781 = vmatpush1.xpose.msra.mxu0 0.0
    %2782 = vmatprep.subr.mxu0 0.0
    %2783 = vmatpush1.xpose.msra.mxu0 0.0
    %2784 = vmatprep.subr.mxu0 0.0
    %2785 = vmatpush1.xpose.msra.mxu0 0.0
    %2786 = vmatprep.subr.mxu0 0.0
    %2787 = vmatpush1.xpose.msra.mxu0 0.0
    %2788 = vmatprep.subr.mxu0 0.0
    %2789 = vmatpush1.xpose.msra.mxu0 0.0
    %2790 = vmatprep.subr.mxu0 0.0
    %2791 = vmatpush1.xpose.msra.mxu0 0.0
    %2792 = vmatprep.subr.mxu0 0.0
    %2793 = vmatpush1.xpose.msra.mxu0 0.0
    %2794 = vmatprep.subr.mxu0 0.0
    %2795 = vmatpush1.xpose.msra.mxu0 0.0
    %2796 = vmatprep.subr.mxu0 0.0
    %2797 = vmatpush1.xpose.msra.mxu0 0.0
    %2798 = vmatprep.subr.mxu0 0.0
    %2799 = vmatpush1.xpose.msra.mxu0 %v2766
    %2800 = vmatprep.subr.mxu0 0.0
    %2801 = vmatpush2.xpose.msra.mxu0 0.0
    %2802 = vmatprep.subr.mxu0 0.0
    %2803 = vmatpush2.xpose.msra.mxu0 0.0
    %2804 = vmatprep.subr.mxu0 0.0
    %2805 = vmatpush2.xpose.msra.mxu0 0.0
    %2806 = vmatprep.subr.mxu0 0.0
    %2807 = vmatpush2.xpose.msra.mxu0 0.0
    %2808 = vmatprep.subr.mxu0 0.0
    %2809 = vmatpush2.xpose.msra.mxu0 0.0
    %2810 = vmatprep.subr.mxu0 0.0
    %2811 = vmatpush2.xpose.msra.mxu0 0.0
    %2812 = vmatprep.subr.mxu0 0.0
    %2813 = vmatpush2.xpose.msra.mxu0 0.0
    %2814 = vmatprep.subr.mxu0 0.0
    %2815 = vmatpush2.xpose.msra.mxu0 0.0
    %2816 = vmatprep.subr.mxu0 0.0
    %2817 = vmatpush2.xpose.msra.mxu0 0.0
    %2818 = vmatprep.subr.mxu0 0.0
    %2819 = vmatpush2.xpose.msra.mxu0 0.0
    %2820 = vmatprep.subr.mxu0 0.0
    %2821 = vmatpush2.xpose.msra.mxu0 0.0
    %2822 = vmatprep.subr.mxu0 0.0
    %2823 = vmatpush2.xpose.msra.mxu0 0.0
    %2824 = vmatprep.subr.mxu0 0.0
    %2825 = vmatpush2.xpose.msra.mxu0 0.0
    %2826 = vmatprep.subr.mxu0 0.0
    %2827 = vmatpush2.xpose.msra.mxu0 0.0
    %2828 = vmatprep.subr.mxu0 0.0
    %2829 = vmatpush2.xpose.msra.mxu0 0.0
    %2830 = vmatprep.subr.mxu0 0.0
    %2831 = vmatpush2.xpose.msra.mxu0 0.0
    %2832 = vmatprep.mubr.f32.mxu0 0.0
    %2833 = vmatmul.mubr.f32.gmra.mxu0 %v2763
    %v2834 = vpop.f32.mrf.mxu0
    %v2835 = vadd.f32 0.0, %v2834
    %v2836 = vpop.f32.mrf.mxu0
    %2837 = vdwg.mxu0
    %v2838 = vsel %vm227, %v2759, -inf
    %2839 = vmax.xlane.f32.xlu0 %v2838
    %v2840 = vpop.xlane.xlu0 %2839
    %v2841 = vsel %vm227, %v2835, -inf
    %2842 = vmax.xlane.f32.xlu0 %v2841
    %v2843 = vpop.xlane.xlu0 %2842
    %v2844 = vsub.f32 %v2759, %v2840
    %v2845 = vsub.f32 %v2835, %v2843
    %v2846 = vmul.f32 %v2844, 1.442695
    %v2847 = vpow.pop %v2846
    %v2848 = vmul.f32 %v2845, 1.442695
    %v2849 = vpow.pop %v2848
    %v2850 = vsel %vm227, %v2847, 0.0
    %2851 = vadd.xlane.f32.xlu0 %v2850
    %v2852 = vpop.xlane.xlu0 %2851
    %v2853 = vsel %vm227, %v2849, 0.0
    %2854 = vadd.xlane.f32.xlu0 %v2853
    %v2855 = vpop.xlane.xlu0 %2854
    %v2856 = vrcp.pop %v2852
    %v2857 = vrcp.pop %v2855
    %v2858 = vmul.f32 %v2847, %v2856
    %v2859 = vmul.f32 %v2849, %v2857
    %v2861 = vsel %vm227, %v2858, 0
    %2863 = vmatprep.subr.mxu0 0.0
    %2864 = vmatpush1.msra.mxu0 0.0
    %2865 = vmatprep.subr.mxu0 0.0
    %2866 = vmatpush1.msra.mxu0 0.0
    %2867 = vmatprep.subr.mxu0 0.0
    %2868 = vmatpush1.msra.mxu0 0.0
    %2869 = vmatprep.subr.mxu0 0.0
    %2870 = vmatpush1.msra.mxu0 0.0
    %2871 = vmatprep.subr.mxu0 0.0
    %2872 = vmatpush1.msra.mxu0 0.0
    %2873 = vmatprep.subr.mxu0 0.0
    %2874 = vmatpush1.msra.mxu0 0.0
    %2875 = vmatprep.subr.mxu0 0.0
    %2876 = vmatpush1.msra.mxu0 0.0
    %2877 = vmatprep.subr.mxu0 0.0
    %2878 = vmatpush1.msra.mxu0 0.0
    %2879 = vmatprep.subr.mxu0 0.0
    %2880 = vmatpush1.msra.mxu0 0.0
    %2881 = vmatprep.subr.mxu0 0.0
    %2882 = vmatpush1.msra.mxu0 0.0
    %2883 = vmatprep.subr.mxu0 0.0
    %2884 = vmatpush1.msra.mxu0 0.0
    %2885 = vmatprep.subr.mxu0 0.0
    %2886 = vmatpush1.msra.mxu0 0.0
    %2887 = vmatprep.subr.mxu0 0.0
    %2888 = vmatpush1.msra.mxu0 0.0
    %2889 = vmatprep.subr.mxu0 0.0
    %2890 = vmatpush1.msra.mxu0 0.0
    %2891 = vmatprep.subr.mxu0 0.0
    %2892 = vmatpush1.msra.mxu0 0.0
    %2893 = vmatprep.subr.mxu0 0.0
    %2894 = vmatpush1.msra.mxu0 %v2680
    %2895 = vmatprep.subr.mxu0 0.0
    %2896 = vmatpush2.msra.mxu0 0.0
    %2897 = vmatprep.subr.mxu0 0.0
    %2898 = vmatpush2.msra.mxu0 0.0
    %2899 = vmatprep.subr.mxu0 0.0
    %2900 = vmatpush2.msra.mxu0 0.0
    %2901 = vmatprep.subr.mxu0 0.0
    %2902 = vmatpush2.msra.mxu0 0.0
    %2903 = vmatprep.subr.mxu0 0.0
    %2904 = vmatpush2.msra.mxu0 0.0
    %2905 = vmatprep.subr.mxu0 0.0
    %2906 = vmatpush2.msra.mxu0 0.0
    %2907 = vmatprep.subr.mxu0 0.0
    %2908 = vmatpush2.msra.mxu0 0.0
    %2909 = vmatprep.subr.mxu0 0.0
    %2910 = vmatpush2.msra.mxu0 0.0
    %2911 = vmatprep.subr.mxu0 0.0
    %2912 = vmatpush2.msra.mxu0 0.0
    %2913 = vmatprep.subr.mxu0 0.0
    %2914 = vmatpush2.msra.mxu0 0.0
    %2915 = vmatprep.subr.mxu0 0.0
    %2916 = vmatpush2.msra.mxu0 0.0
    %2917 = vmatprep.subr.mxu0 0.0
    %2918 = vmatpush2.msra.mxu0 0.0
    %2919 = vmatprep.subr.mxu0 0.0
    %2920 = vmatpush2.msra.mxu0 0.0
    %2921 = vmatprep.subr.mxu0 0.0
    %2922 = vmatpush2.msra.mxu0 0.0
    %2923 = vmatprep.subr.mxu0 0.0
    %2924 = vmatpush2.msra.mxu0 0.0
    %2925 = vmatprep.subr.mxu0 0.0
    %2926 = vmatpush2.msra.mxu0 0.0
    %2927 = vmatprep.mubr.f32.mxu0 0.0
    %2928 = vmatmul.mubr.f32.gmra.mxu0 %v2861
    %v2929 = vpop.f32.mrf.mxu0
    %v2930 = vadd.f32 0.0, %v2929
    %v2931 = vpop.f32.mrf.mxu0
    %2932 = vdwg.mxu0
    %v2934 = vsel %vm227, %v2859, 0
    %2936 = vmatprep.subr.mxu0 0.0
    %2937 = vmatpush1.msra.mxu0 0.0
    %2938 = vmatprep.subr.mxu0 0.0
    %2939 = vmatpush1.msra.mxu0 0.0
    %2940 = vmatprep.subr.mxu0 0.0
    %2941 = vmatpush1.msra.mxu0 0.0
    %2942 = vmatprep.subr.mxu0 0.0
    %2943 = vmatpush1.msra.mxu0 0.0
    %2944 = vmatprep.subr.mxu0 0.0
    %2945 = vmatpush1.msra.mxu0 0.0
    %2946 = vmatprep.subr.mxu0 0.0
    %2947 = vmatpush1.msra.mxu0 0.0
    %2948 = vmatprep.subr.mxu0 0.0
    %2949 = vmatpush1.msra.mxu0 0.0
    %2950 = vmatprep.subr.mxu0 0.0
    %2951 = vmatpush1.msra.mxu0 0.0
    %2952 = vmatprep.subr.mxu0 0.0
    %2953 = vmatpush1.msra.mxu0 0.0
    %2954 = vmatprep.subr.mxu0 0.0
    %2955 = vmatpush1.msra.mxu0 0.0
    %2956 = vmatprep.subr.mxu0 0.0
    %2957 = vmatpush1.msra.mxu0 0.0
    %2958 = vmatprep.subr.mxu0 0.0
    %2959 = vmatpush1.msra.mxu0 0.0
    %2960 = vmatprep.subr.mxu0 0.0
    %2961 = vmatpush1.msra.mxu0 0.0
    %2962 = vmatprep.subr.mxu0 0.0
    %2963 = vmatpush1.msra.mxu0 0.0
    %2964 = vmatprep.subr.mxu0 0.0
    %2965 = vmatpush1.msra.mxu0 0.0
    %2966 = vmatprep.subr.mxu0 0.0
    %2967 = vmatpush1.msra.mxu0 %v2683
    %2968 = vmatprep.subr.mxu0 0.0
    %2969 = vmatpush2.msra.mxu0 0.0
    %2970 = vmatprep.subr.mxu0 0.0
    %2971 = vmatpush2.msra.mxu0 0.0
    %2972 = vmatprep.subr.mxu0 0.0
    %2973 = vmatpush2.msra.mxu0 0.0
    %2974 = vmatprep.subr.mxu0 0.0
    %2975 = vmatpush2.msra.mxu0 0.0
    %2976 = vmatprep.subr.mxu0 0.0
    %2977 = vmatpush2.msra.mxu0 0.0
    %2978 = vmatprep.subr.mxu0 0.0
    %2979 = vmatpush2.msra.mxu0 0.0
    %2980 = vmatprep.subr.mxu0 0.0
    %2981 = vmatpush2.msra.mxu0 0.0
    %2982 = vmatprep.subr.mxu0 0.0
    %2983 = vmatpush2.msra.mxu0 0.0
    %2984 = vmatprep.subr.mxu0 0.0
    %2985 = vmatpush2.msra.mxu0 0.0
    %2986 = vmatprep.subr.mxu0 0.0
    %2987 = vmatpush2.msra.mxu0 0.0
    %2988 = vmatprep.subr.mxu0 0.0
    %2989 = vmatpush2.msra.mxu0 0.0
    %2990 = vmatprep.subr.mxu0 0.0
    %2991 = vmatpush2.msra.mxu0 0.0
    %2992 = vmatprep.subr.mxu0 0.0
    %2993 = vmatpush2.msra.mxu0 0.0
    %2994 = vmatprep.subr.mxu0 0.0
    %2995 = vmatpush2.msra.mxu0 0.0
    %2996 = vmatprep.subr.mxu0 0.0
    %2997 = vmatpush2.msra.mxu0 0.0
    %2998 = vmatprep.subr.mxu0 0.0
    %2999 = vmatpush2.msra.mxu0 0.0
    %3000 = vmatprep.mubr.f32.mxu0 0.0
    %3001 = vmatmul.mubr.f32.gmra.mxu0 %v2934
    %v3002 = vpop.f32.mrf.mxu0
    %v3003 = vadd.f32 0.0, %v3002
    %v3004 = vpop.f32.mrf.mxu0
    %3005 = vdwg.mxu0
    %v3006 = vpack.c.bf16 %v3003, %v2930
    %v3007 = vld [vmem:[%s1 + $0xc0] sm:$0xf]
    %v3009 = vsel %vm227, %v3006, 0
    %v3012 = vsel %vm553, %v3007, 0
    %3014 = vmatprep.subr.bf16.mxu0 0
    %3015 = vmatpush1.bf16.msra.mxu0 0
    %3016 = vmatprep.subr.bf16.mxu0 0
    %3017 = vmatpush1.bf16.msra.mxu0 0
    %3018 = vmatprep.subr.bf16.mxu0 0
    %3019 = vmatpush1.bf16.msra.mxu0 0
    %3020 = vmatprep.subr.bf16.mxu0 0
    %3021 = vmatpush1.bf16.msra.mxu0 0
    %3022 = vmatprep.subr.bf16.mxu0 0
    %3023 = vmatpush1.bf16.msra.mxu0 0
    %3024 = vmatprep.subr.bf16.mxu0 0
    %3025 = vmatpush1.bf16.msra.mxu0 0
    %3026 = vmatprep.subr.bf16.mxu0 0
    %3027 = vmatpush1.bf16.msra.mxu0 0
    %3028 = vmatprep.subr.bf16.mxu0 0
    %3029 = vmatpush1.bf16.msra.mxu0 %v3012
    %3030 = vmatprep.subr.bf16.mxu0 0
    %3031 = vmatpush2.bf16.msra.mxu0 0
    %3032 = vmatprep.subr.bf16.mxu0 0
    %3033 = vmatpush2.bf16.msra.mxu0 0
    %3034 = vmatprep.subr.bf16.mxu0 0
    %3035 = vmatpush2.bf16.msra.mxu0 0
    %3036 = vmatprep.subr.bf16.mxu0 0
    %3037 = vmatpush2.bf16.msra.mxu0 0
    %3038 = vmatprep.subr.bf16.mxu0 0
    %3039 = vmatpush2.bf16.msra.mxu0 0
    %3040 = vmatprep.subr.bf16.mxu0 0
    %3041 = vmatpush2.bf16.msra.mxu0 0
    %3042 = vmatprep.subr.bf16.mxu0 0
    %3043 = vmatpush2.bf16.msra.mxu0 0
    %3044 = vmatprep.subr.bf16.mxu0 0
    %3045 = vmatpush2.bf16.msra.mxu0 0
    %3046 = vmatprep.mubr.bf16.mxu0 0
    %3047 = vmatmul.mubr.bf16.gmra.mxu0 %v3009
    %v3048 = vpop.f32.mrf.mxu0
    %v3049 = vadd.f32 0.0, %v3048
    %v3050 = vpop.f32.mrf.mxu0
    %v3051 = vpop.f32.mrf.mxu0
    %v3052 = vadd.f32 0.0, %v3051
    %v3053 = vpop.f32.mrf.mxu0
    %3054 = vdwg.mxu0
    %v3055 = vadd.f32 %v601, %v3049
    %v3056 = vadd.f32 %v601, %v3052
    %v3057 = vld [vmem:[%s1 + $0x10] sm:$0xf]
    %v3058 = vld [vmem:[%s1 + $0x14] sm:$0xf]
    %v3059 = vld [vmem:[%s1 + $0x18] sm:$0xf]
    %v3060 = vld [vmem:[%s1 + $0x1c] sm:$0xf]
    %v3061 = vld [vmem:[%s2 + $0x1] sm:$0x1]
    %v3062 = vlaneseq
    %v3063 = vshrl.u32 %v3062, 7
    %v3064 = vsub.s32 0, %v3063
    %v3065 = vrot.slane %v3061, %v3064
    %v3070 = vunpack.c.l.b16 %v3057
    %v3071 = vunpack.c.l.b16 %v3058
    %v3072 = vunpack.c.l.b16 %v3059
    %v3073 = vunpack.c.l.b16 %v3060
    %v3074 = vpack.c.b16 %v3071, %v3070
    %v3075 = vpack.c.b16 %v3073, %v3072
    %3078 = vmatprep.subr.bf16.mxu0 0
    %3079 = vmatpush1.bf16.msra.mxu0 0
    %3080 = vmatprep.subr.bf16.mxu0 0
    %3081 = vmatpush1.bf16.msra.mxu0 0
    %3082 = vmatprep.subr.bf16.mxu0 0
    %3083 = vmatpush1.bf16.msra.mxu0 0
    %3084 = vmatprep.subr.bf16.mxu0 0
    %3085 = vmatpush1.bf16.msra.mxu0 0
    %3086 = vmatprep.subr.bf16.mxu0 0
    %3087 = vmatpush1.bf16.msra.mxu0 0
    %3088 = vmatprep.subr.bf16.mxu0 0
    %3089 = vmatpush1.bf16.msra.mxu0 0
    %3090 = vmatprep.subr.bf16.mxu0 0
    %3091 = vmatpush1.bf16.msra.mxu0 %v3075
    %3092 = vmatprep.subr.bf16.mxu0 0
    %3093 = vmatpush1.bf16.msra.mxu0 %v3074
    %3094 = vmatprep.subr.bf16.mxu0 0
    %3095 = vmatpush2.bf16.msra.mxu0 0
    %3096 = vmatprep.subr.bf16.mxu0 0
    %3097 = vmatpush2.bf16.msra.mxu0 0
    %3098 = vmatprep.subr.bf16.mxu0 0
    %3099 = vmatpush2.bf16.msra.mxu0 0
    %3100 = vmatprep.subr.bf16.mxu0 0
    %3101 = vmatpush2.bf16.msra.mxu0 0
    %3102 = vmatprep.subr.bf16.mxu0 0
    %3103 = vmatpush2.bf16.msra.mxu0 0
    %3104 = vmatprep.subr.bf16.mxu0 0
    %3105 = vmatpush2.bf16.msra.mxu0 0
    %3106 = vmatprep.subr.bf16.mxu0 0
    %3107 = vmatpush2.bf16.msra.mxu0 0
    %3108 = vmatprep.subr.bf16.mxu0 0
    %3109 = vmatpush2.bf16.msra.mxu0 0
    %3110 = vmatprep.mubr.bf16.mxu0 0
    %3111 = vmatmul.mubr.bf16.gmra.mxu0 %v2519
    %v3112 = vpop.f32.mrf.mxu0
    %v3113 = vadd.f32 %v3065, %v3112
    %v3114 = vpop.f32.mrf.mxu0
    %v3115 = vpop.f32.mrf.mxu0
    %v3116 = vadd.f32 %v3065, %v3115
    %v3117 = vpop.f32.mrf.mxu0
    %3118 = vdwg.mxu0
    %v3119 = vld [vmem:[%s1 + $0x50] sm:$0xf]
    %v3120 = vld [vmem:[%s1 + $0x54] sm:$0xf]
    %v3121 = vld [vmem:[%s1 + $0x58] sm:$0xf]
    %v3122 = vld [vmem:[%s1 + $0x5c] sm:$0xf]
    %v3123 = vld [vmem:[%s2 + $0x5] sm:$0x1]
    %v3124 = vlaneseq
    %v3125 = vshrl.u32 %v3124, 7
    %v3126 = vsub.s32 0, %v3125
    %v3127 = vrot.slane %v3123, %v3126
    %v3132 = vunpack.c.l.b16 %v3119
    %v3133 = vunpack.c.l.b16 %v3120
    %v3134 = vunpack.c.l.b16 %v3121
    %v3135 = vunpack.c.l.b16 %v3122
    %v3136 = vpack.c.b16 %v3133, %v3132
    %v3137 = vpack.c.b16 %v3135, %v3134
    %3140 = vmatprep.subr.bf16.mxu0 0
    %3141 = vmatpush1.bf16.msra.mxu0 0
    %3142 = vmatprep.subr.bf16.mxu0 0
    %3143 = vmatpush1.bf16.msra.mxu0 0
    %3144 = vmatprep.subr.bf16.mxu0 0
    %3145 = vmatpush1.bf16.msra.mxu0 0
    %3146 = vmatprep.subr.bf16.mxu0 0
    %3147 = vmatpush1.bf16.msra.mxu0 0
    %3148 = vmatprep.subr.bf16.mxu0 0
    %3149 = vmatpush1.bf16.msra.mxu0 0
    %3150 = vmatprep.subr.bf16.mxu0 0
    %3151 = vmatpush1.bf16.msra.mxu0 0
    %3152 = vmatprep.subr.bf16.mxu0 0
    %3153 = vmatpush1.bf16.msra.mxu0 %v3137
    %3154 = vmatprep.subr.bf16.mxu0 0
    %3155 = vmatpush1.bf16.msra.mxu0 %v3136
    %3156 = vmatprep.subr.bf16.mxu0 0
    %3157 = vmatpush2.bf16.msra.mxu0 0
    %3158 = vmatprep.subr.bf16.mxu0 0
    %3159 = vmatpush2.bf16.msra.mxu0 0
    %3160 = vmatprep.subr.bf16.mxu0 0
    %3161 = vmatpush2.bf16.msra.mxu0 0
    %3162 = vmatprep.subr.bf16.mxu0 0
    %3163 = vmatpush2.bf16.msra.mxu0 0
    %3164 = vmatprep.subr.bf16.mxu0 0
    %3165 = vmatpush2.bf16.msra.mxu0 0
    %3166 = vmatprep.subr.bf16.mxu0 0
    %3167 = vmatpush2.bf16.msra.mxu0 0
    %3168 = vmatprep.subr.bf16.mxu0 0
    %3169 = vmatpush2.bf16.msra.mxu0 0
    %3170 = vmatprep.subr.bf16.mxu0 0
    %3171 = vmatpush2.bf16.msra.mxu0 0
    %3172 = vmatprep.mubr.bf16.mxu0 0
    %3173 = vmatmul.mubr.bf16.gmra.mxu0 %v2519
    %v3174 = vpop.f32.mrf.mxu0
    %v3175 = vadd.f32 %v3127, %v3174
    %v3176 = vpop.f32.mrf.mxu0
    %v3177 = vpop.f32.mrf.mxu0
    %v3178 = vadd.f32 %v3127, %v3177
    %v3179 = vpop.f32.mrf.mxu0
    %3180 = vdwg.mxu0
    %v3181 = vld [vmem:[%s1 + $0x90] sm:$0xf]
    %v3182 = vld [vmem:[%s1 + $0x94] sm:$0xf]
    %v3183 = vld [vmem:[%s1 + $0x98] sm:$0xf]
    %v3184 = vld [vmem:[%s1 + $0x9c] sm:$0xf]
    %v3185 = vld [vmem:[%s2 + $0x9] sm:$0x1]
    %v3186 = vlaneseq
    %v3187 = vshrl.u32 %v3186, 7
    %v3188 = vsub.s32 0, %v3187
    %v3189 = vrot.slane %v3185, %v3188
    %v3194 = vunpack.c.l.b16 %v3181
    %v3195 = vunpack.c.l.b16 %v3182
    %v3196 = vunpack.c.l.b16 %v3183
    %v3197 = vunpack.c.l.b16 %v3184
    %v3198 = vpack.c.b16 %v3195, %v3194
    %v3199 = vpack.c.b16 %v3197, %v3196
    %3202 = vmatprep.subr.bf16.mxu0 0
    %3203 = vmatpush1.bf16.msra.mxu0 0
    %3204 = vmatprep.subr.bf16.mxu0 0
    %3205 = vmatpush1.bf16.msra.mxu0 0
    %3206 = vmatprep.subr.bf16.mxu0 0
    %3207 = vmatpush1.bf16.msra.mxu0 0
    %3208 = vmatprep.subr.bf16.mxu0 0
    %3209 = vmatpush1.bf16.msra.mxu0 0
    %3210 = vmatprep.subr.bf16.mxu0 0
    %3211 = vmatpush1.bf16.msra.mxu0 0
    %3212 = vmatprep.subr.bf16.mxu0 0
    %3213 = vmatpush1.bf16.msra.mxu0 0
    %3214 = vmatprep.subr.bf16.mxu0 0
    %3215 = vmatpush1.bf16.msra.mxu0 %v3199
    %3216 = vmatprep.subr.bf16.mxu0 0
    %3217 = vmatpush1.bf16.msra.mxu0 %v3198
    %3218 = vmatprep.subr.bf16.mxu0 0
    %3219 = vmatpush2.bf16.msra.mxu0 0
    %3220 = vmatprep.subr.bf16.mxu0 0
    %3221 = vmatpush2.bf16.msra.mxu0 0
    %3222 = vmatprep.subr.bf16.mxu0 0
    %3223 = vmatpush2.bf16.msra.mxu0 0
    %3224 = vmatprep.subr.bf16.mxu0 0
    %3225 = vmatpush2.bf16.msra.mxu0 0
    %3226 = vmatprep.subr.bf16.mxu0 0
    %3227 = vmatpush2.bf16.msra.mxu0 0
    %3228 = vmatprep.subr.bf16.mxu0 0
    %3229 = vmatpush2.bf16.msra.mxu0 0
    %3230 = vmatprep.subr.bf16.mxu0 0
    %3231 = vmatpush2.bf16.msra.mxu0 0
    %3232 = vmatprep.subr.bf16.mxu0 0
    %3233 = vmatpush2.bf16.msra.mxu0 0
    %3234 = vmatprep.mubr.bf16.mxu0 0
    %3235 = vmatmul.mubr.bf16.gmra.mxu0 %v2519
    %v3236 = vpop.f32.mrf.mxu0
    %v3237 = vadd.f32 %v3189, %v3236
    %v3238 = vpop.f32.mrf.mxu0
    %v3239 = vpop.f32.mrf.mxu0
    %v3240 = vadd.f32 %v3189, %v3239
    %v3241 = vpop.f32.mrf.mxu0
    %3242 = vdwg.mxu0
    %v3244 = vsel %vm227, %v3113, 0
    %v3247 = vsel %vm227, %v3175, 0
    %3249 = vmatprep.subr.mxu0 0.0
    %3250 = vmatpush1.xpose.msra.mxu0 0.0
    %3251 = vmatprep.subr.mxu0 0.0
    %3252 = vmatpush1.xpose.msra.mxu0 0.0
    %3253 = vmatprep.subr.mxu0 0.0
    %3254 = vmatpush1.xpose.msra.mxu0 0.0
    %3255 = vmatprep.subr.mxu0 0.0
    %3256 = vmatpush1.xpose.msra.mxu0 0.0
    %3257 = vmatprep.subr.mxu0 0.0
    %3258 = vmatpush1.xpose.msra.mxu0 0.0
    %3259 = vmatprep.subr.mxu0 0.0
    %3260 = vmatpush1.xpose.msra.mxu0 0.0
    %3261 = vmatprep.subr.mxu0 0.0
    %3262 = vmatpush1.xpose.msra.mxu0 0.0
    %3263 = vmatprep.subr.mxu0 0.0
    %3264 = vmatpush1.xpose.msra.mxu0 0.0
    %3265 = vmatprep.subr.mxu0 0.0
    %3266 = vmatpush1.xpose.msra.mxu0 0.0
    %3267 = vmatprep.subr.mxu0 0.0
    %3268 = vmatpush1.xpose.msra.mxu0 0.0
    %3269 = vmatprep.subr.mxu0 0.0
    %3270 = vmatpush1.xpose.msra.mxu0 0.0
    %3271 = vmatprep.subr.mxu0 0.0
    %3272 = vmatpush1.xpose.msra.mxu0 0.0
    %3273 = vmatprep.subr.mxu0 0.0
    %3274 = vmatpush1.xpose.msra.mxu0 0.0
    %3275 = vmatprep.subr.mxu0 0.0
    %3276 = vmatpush1.xpose.msra.mxu0 0.0
    %3277 = vmatprep.subr.mxu0 0.0
    %3278 = vmatpush1.xpose.msra.mxu0 0.0
    %3279 = vmatprep.subr.mxu0 0.0
    %3280 = vmatpush1.xpose.msra.mxu0 %v3247
    %3281 = vmatprep.subr.mxu0 0.0
    %3282 = vmatpush2.xpose.msra.mxu0 0.0
    %3283 = vmatprep.subr.mxu0 0.0
    %3284 = vmatpush2.xpose.msra.mxu0 0.0
    %3285 = vmatprep.subr.mxu0 0.0
    %3286 = vmatpush2.xpose.msra.mxu0 0.0
    %3287 = vmatprep.subr.mxu0 0.0
    %3288 = vmatpush2.xpose.msra.mxu0 0.0
    %3289 = vmatprep.subr.mxu0 0.0
    %3290 = vmatpush2.xpose.msra.mxu0 0.0
    %3291 = vmatprep.subr.mxu0 0.0
    %3292 = vmatpush2.xpose.msra.mxu0 0.0
    %3293 = vmatprep.subr.mxu0 0.0
    %3294 = vmatpush2.xpose.msra.mxu0 0.0
    %3295 = vmatprep.subr.mxu0 0.0
    %3296 = vmatpush2.xpose.msra.mxu0 0.0
    %3297 = vmatprep.subr.mxu0 0.0
    %3298 = vmatpush2.xpose.msra.mxu0 0.0
    %3299 = vmatprep.subr.mxu0 0.0
    %3300 = vmatpush2.xpose.msra.mxu0 0.0
    %3301 = vmatprep.subr.mxu0 0.0
    %3302 = vmatpush2.xpose.msra.mxu0 0.0
    %3303 = vmatprep.subr.mxu0 0.0
    %3304 = vmatpush2.xpose.msra.mxu0 0.0
    %3305 = vmatprep.subr.mxu0 0.0
    %3306 = vmatpush2.xpose.msra.mxu0 0.0
    %3307 = vmatprep.subr.mxu0 0.0
    %3308 = vmatpush2.xpose.msra.mxu0 0.0
    %3309 = vmatprep.subr.mxu0 0.0
    %3310 = vmatpush2.xpose.msra.mxu0 0.0
    %3311 = vmatprep.subr.mxu0 0.0
    %3312 = vmatpush2.xpose.msra.mxu0 0.0
    %3313 = vmatprep.mubr.f32.mxu0 0.0
    %3314 = vmatmul.mubr.f32.gmra.mxu0 %v3244
    %v3315 = vpop.f32.mrf.mxu0
    %v3316 = vadd.f32 0.0, %v3315
    %v3317 = vpop.f32.mrf.mxu0
    %3318 = vdwg.mxu0
    %v3320 = vsel %vm227, %v3116, 0
    %v3323 = vsel %vm227, %v3178, 0
    %3325 = vmatprep.subr.mxu0 0.0
    %3326 = vmatpush1.xpose.msra.mxu0 0.0
    %3327 = vmatprep.subr.mxu0 0.0
    %3328 = vmatpush1.xpose.msra.mxu0 0.0
    %3329 = vmatprep.subr.mxu0 0.0
    %3330 = vmatpush1.xpose.msra.mxu0 0.0
    %3331 = vmatprep.subr.mxu0 0.0
    %3332 = vmatpush1.xpose.msra.mxu0 0.0
    %3333 = vmatprep.subr.mxu0 0.0
    %3334 = vmatpush1.xpose.msra.mxu0 0.0
    %3335 = vmatprep.subr.mxu0 0.0
    %3336 = vmatpush1.xpose.msra.mxu0 0.0
    %3337 = vmatprep.subr.mxu0 0.0
    %3338 = vmatpush1.xpose.msra.mxu0 0.0
    %3339 = vmatprep.subr.mxu0 0.0
    %3340 = vmatpush1.xpose.msra.mxu0 0.0
    %3341 = vmatprep.subr.mxu0 0.0
    %3342 = vmatpush1.xpose.msra.mxu0 0.0
    %3343 = vmatprep.subr.mxu0 0.0
    %3344 = vmatpush1.xpose.msra.mxu0 0.0
    %3345 = vmatprep.subr.mxu0 0.0
    %3346 = vmatpush1.xpose.msra.mxu0 0.0
    %3347 = vmatprep.subr.mxu0 0.0
    %3348 = vmatpush1.xpose.msra.mxu0 0.0
    %3349 = vmatprep.subr.mxu0 0.0
    %3350 = vmatpush1.xpose.msra.mxu0 0.0
    %3351 = vmatprep.subr.mxu0 0.0
    %3352 = vmatpush1.xpose.msra.mxu0 0.0
    %3353 = vmatprep.subr.mxu0 0.0
    %3354 = vmatpush1.xpose.msra.mxu0 0.0
    %3355 = vmatprep.subr.mxu0 0.0
    %3356 = vmatpush1.xpose.msra.mxu0 %v3323
    %3357 = vmatprep.subr.mxu0 0.0
    %3358 = vmatpush2.xpose.msra.mxu0 0.0
    %3359 = vmatprep.subr.mxu0 0.0
    %3360 = vmatpush2.xpose.msra.mxu0 0.0
    %3361 = vmatprep.subr.mxu0 0.0
    %3362 = vmatpush2.xpose.msra.mxu0 0.0
    %3363 = vmatprep.subr.mxu0 0.0
    %3364 = vmatpush2.xpose.msra.mxu0 0.0
    %3365 = vmatprep.subr.mxu0 0.0
    %3366 = vmatpush2.xpose.msra.mxu0 0.0
    %3367 = vmatprep.subr.mxu0 0.0
    %3368 = vmatpush2.xpose.msra.mxu0 0.0
    %3369 = vmatprep.subr.mxu0 0.0
    %3370 = vmatpush2.xpose.msra.mxu0 0.0
    %3371 = vmatprep.subr.mxu0 0.0
    %3372 = vmatpush2.xpose.msra.mxu0 0.0
    %3373 = vmatprep.subr.mxu0 0.0
    %3374 = vmatpush2.xpose.msra.mxu0 0.0
    %3375 = vmatprep.subr.mxu0 0.0
    %3376 = vmatpush2.xpose.msra.mxu0 0.0
    %3377 = vmatprep.subr.mxu0 0.0
    %3378 = vmatpush2.xpose.msra.mxu0 0.0
    %3379 = vmatprep.subr.mxu0 0.0
    %3380 = vmatpush2.xpose.msra.mxu0 0.0
    %3381 = vmatprep.subr.mxu0 0.0
    %3382 = vmatpush2.xpose.msra.mxu0 0.0
    %3383 = vmatprep.subr.mxu0 0.0
    %3384 = vmatpush2.xpose.msra.mxu0 0.0
    %3385 = vmatprep.subr.mxu0 0.0
    %3386 = vmatpush2.xpose.msra.mxu0 0.0
    %3387 = vmatprep.subr.mxu0 0.0
    %3388 = vmatpush2.xpose.msra.mxu0 0.0
    %3389 = vmatprep.mubr.f32.mxu0 0.0
    %3390 = vmatmul.mubr.f32.gmra.mxu0 %v3320
    %v3391 = vpop.f32.mrf.mxu0
    %v3392 = vadd.f32 0.0, %v3391
    %v3393 = vpop.f32.mrf.mxu0
    %3394 = vdwg.mxu0
    %v3395 = vsel %vm227, %v3316, -inf
    %3396 = vmax.xlane.f32.xlu0 %v3395
    %v3397 = vpop.xlane.xlu0 %3396
    %v3398 = vsel %vm227, %v3392, -inf
    %3399 = vmax.xlane.f32.xlu0 %v3398
    %v3400 = vpop.xlane.xlu0 %3399
    %v3401 = vsub.f32 %v3316, %v3397
    %v3402 = vsub.f32 %v3392, %v3400
    %v3403 = vmul.f32 %v3401, 1.442695
    %v3404 = vpow.pop %v3403
    %v3405 = vmul.f32 %v3402, 1.442695
    %v3406 = vpow.pop %v3405
    %v3407 = vsel %vm227, %v3404, 0.0
    %3408 = vadd.xlane.f32.xlu0 %v3407
    %v3409 = vpop.xlane.xlu0 %3408
    %v3410 = vsel %vm227, %v3406, 0.0
    %3411 = vadd.xlane.f32.xlu0 %v3410
    %v3412 = vpop.xlane.xlu0 %3411
    %v3413 = vrcp.pop %v3409
    %v3414 = vrcp.pop %v3412
    %v3415 = vmul.f32 %v3404, %v3413
    %v3416 = vmul.f32 %v3406, %v3414
    %v3418 = vsel %vm227, %v3415, 0
    %3420 = vmatprep.subr.mxu0 0.0
    %3421 = vmatpush1.msra.mxu0 0.0
    %3422 = vmatprep.subr.mxu0 0.0
    %3423 = vmatpush1.msra.mxu0 0.0
    %3424 = vmatprep.subr.mxu0 0.0
    %3425 = vmatpush1.msra.mxu0 0.0
    %3426 = vmatprep.subr.mxu0 0.0
    %3427 = vmatpush1.msra.mxu0 0.0
    %3428 = vmatprep.subr.mxu0 0.0
    %3429 = vmatpush1.msra.mxu0 0.0
    %3430 = vmatprep.subr.mxu0 0.0
    %3431 = vmatpush1.msra.mxu0 0.0
    %3432 = vmatprep.subr.mxu0 0.0
    %3433 = vmatpush1.msra.mxu0 0.0
    %3434 = vmatprep.subr.mxu0 0.0
    %3435 = vmatpush1.msra.mxu0 0.0
    %3436 = vmatprep.subr.mxu0 0.0
    %3437 = vmatpush1.msra.mxu0 0.0
    %3438 = vmatprep.subr.mxu0 0.0
    %3439 = vmatpush1.msra.mxu0 0.0
    %3440 = vmatprep.subr.mxu0 0.0
    %3441 = vmatpush1.msra.mxu0 0.0
    %3442 = vmatprep.subr.mxu0 0.0
    %3443 = vmatpush1.msra.mxu0 0.0
    %3444 = vmatprep.subr.mxu0 0.0
    %3445 = vmatpush1.msra.mxu0 0.0
    %3446 = vmatprep.subr.mxu0 0.0
    %3447 = vmatpush1.msra.mxu0 0.0
    %3448 = vmatprep.subr.mxu0 0.0
    %3449 = vmatpush1.msra.mxu0 0.0
    %3450 = vmatprep.subr.mxu0 0.0
    %3451 = vmatpush1.msra.mxu0 %v3237
    %3452 = vmatprep.subr.mxu0 0.0
    %3453 = vmatpush2.msra.mxu0 0.0
    %3454 = vmatprep.subr.mxu0 0.0
    %3455 = vmatpush2.msra.mxu0 0.0
    %3456 = vmatprep.subr.mxu0 0.0
    %3457 = vmatpush2.msra.mxu0 0.0
    %3458 = vmatprep.subr.mxu0 0.0
    %3459 = vmatpush2.msra.mxu0 0.0
    %3460 = vmatprep.subr.mxu0 0.0
    %3461 = vmatpush2.msra.mxu0 0.0
    %3462 = vmatprep.subr.mxu0 0.0
    %3463 = vmatpush2.msra.mxu0 0.0
    %3464 = vmatprep.subr.mxu0 0.0
    %3465 = vmatpush2.msra.mxu0 0.0
    %3466 = vmatprep.subr.mxu0 0.0
    %3467 = vmatpush2.msra.mxu0 0.0
    %3468 = vmatprep.subr.mxu0 0.0
    %3469 = vmatpush2.msra.mxu0 0.0
    %3470 = vmatprep.subr.mxu0 0.0
    %3471 = vmatpush2.msra.mxu0 0.0
    %3472 = vmatprep.subr.mxu0 0.0
    %3473 = vmatpush2.msra.mxu0 0.0
    %3474 = vmatprep.subr.mxu0 0.0
    %3475 = vmatpush2.msra.mxu0 0.0
    %3476 = vmatprep.subr.mxu0 0.0
    %3477 = vmatpush2.msra.mxu0 0.0
    %3478 = vmatprep.subr.mxu0 0.0
    %3479 = vmatpush2.msra.mxu0 0.0
    %3480 = vmatprep.subr.mxu0 0.0
    %3481 = vmatpush2.msra.mxu0 0.0
    %3482 = vmatprep.subr.mxu0 0.0
    %3483 = vmatpush2.msra.mxu0 0.0
    %3484 = vmatprep.mubr.f32.mxu0 0.0
    %3485 = vmatmul.mubr.f32.gmra.mxu0 %v3418
    %v3486 = vpop.f32.mrf.mxu0
    %v3487 = vadd.f32 0.0, %v3486
    %v3488 = vpop.f32.mrf.mxu0
    %3489 = vdwg.mxu0
    %v3491 = vsel %vm227, %v3416, 0
    %3493 = vmatprep.subr.mxu0 0.0
    %3494 = vmatpush1.msra.mxu0 0.0
    %3495 = vmatprep.subr.mxu0 0.0
    %3496 = vmatpush1.msra.mxu0 0.0
    %3497 = vmatprep.subr.mxu0 0.0
    %3498 = vmatpush1.msra.mxu0 0.0
    %3499 = vmatprep.subr.mxu0 0.0
    %3500 = vmatpush1.msra.mxu0 0.0
    %3501 = vmatprep.subr.mxu0 0.0
    %3502 = vmatpush1.msra.mxu0 0.0
    %3503 = vmatprep.subr.mxu0 0.0
    %3504 = vmatpush1.msra.mxu0 0.0
    %3505 = vmatprep.subr.mxu0 0.0
    %3506 = vmatpush1.msra.mxu0 0.0
    %3507 = vmatprep.subr.mxu0 0.0
    %3508 = vmatpush1.msra.mxu0 0.0
    %3509 = vmatprep.subr.mxu0 0.0
    %3510 = vmatpush1.msra.mxu0 0.0
    %3511 = vmatprep.subr.mxu0 0.0
    %3512 = vmatpush1.msra.mxu0 0.0
    %3513 = vmatprep.subr.mxu0 0.0
    %3514 = vmatpush1.msra.mxu0 0.0
    %3515 = vmatprep.subr.mxu0 0.0
    %3516 = vmatpush1.msra.mxu0 0.0
    %3517 = vmatprep.subr.mxu0 0.0
    %3518 = vmatpush1.msra.mxu0 0.0
    %3519 = vmatprep.subr.mxu0 0.0
    %3520 = vmatpush1.msra.mxu0 0.0
    %3521 = vmatprep.subr.mxu0 0.0
    %3522 = vmatpush1.msra.mxu0 0.0
    %3523 = vmatprep.subr.mxu0 0.0
    %3524 = vmatpush1.msra.mxu0 %v3240
    %3525 = vmatprep.subr.mxu0 0.0
    %3526 = vmatpush2.msra.mxu0 0.0
    %3527 = vmatprep.subr.mxu0 0.0
    %3528 = vmatpush2.msra.mxu0 0.0
    %3529 = vmatprep.subr.mxu0 0.0
    %3530 = vmatpush2.msra.mxu0 0.0
    %3531 = vmatprep.subr.mxu0 0.0
    %3532 = vmatpush2.msra.mxu0 0.0
    %3533 = vmatprep.subr.mxu0 0.0
    %3534 = vmatpush2.msra.mxu0 0.0
    %3535 = vmatprep.subr.mxu0 0.0
    %3536 = vmatpush2.msra.mxu0 0.0
    %3537 = vmatprep.subr.mxu0 0.0
    %3538 = vmatpush2.msra.mxu0 0.0
    %3539 = vmatprep.subr.mxu0 0.0
    %3540 = vmatpush2.msra.mxu0 0.0
    %3541 = vmatprep.subr.mxu0 0.0
    %3542 = vmatpush2.msra.mxu0 0.0
    %3543 = vmatprep.subr.mxu0 0.0
    %3544 = vmatpush2.msra.mxu0 0.0
    %3545 = vmatprep.subr.mxu0 0.0
    %3546 = vmatpush2.msra.mxu0 0.0
    %3547 = vmatprep.subr.mxu0 0.0
    %3548 = vmatpush2.msra.mxu0 0.0
    %3549 = vmatprep.subr.mxu0 0.0
    %3550 = vmatpush2.msra.mxu0 0.0
    %3551 = vmatprep.subr.mxu0 0.0
    %3552 = vmatpush2.msra.mxu0 0.0
    %3553 = vmatprep.subr.mxu0 0.0
    %3554 = vmatpush2.msra.mxu0 0.0
    %3555 = vmatprep.subr.mxu0 0.0
    %3556 = vmatpush2.msra.mxu0 0.0
    %3557 = vmatprep.mubr.f32.mxu0 0.0
    %3558 = vmatmul.mubr.f32.gmra.mxu0 %v3491
    %v3559 = vpop.f32.mrf.mxu0
    %v3560 = vadd.f32 0.0, %v3559
    %v3561 = vpop.f32.mrf.mxu0
    %3562 = vdwg.mxu0
    %v3563 = vpack.c.bf16 %v3560, %v3487
    %v3564 = vld [vmem:[%s1 + $0xd0] sm:$0xf]
    %v3566 = vsel %vm227, %v3563, 0
    %v3569 = vsel %vm553, %v3564, 0
    %3571 = vmatprep.subr.bf16.mxu0 0
    %3572 = vmatpush1.bf16.msra.mxu0 0
    %3573 = vmatprep.subr.bf16.mxu0 0
    %3574 = vmatpush1.bf16.msra.mxu0 0
    %3575 = vmatprep.subr.bf16.mxu0 0
    %3576 = vmatpush1.bf16.msra.mxu0 0
    %3577 = vmatprep.subr.bf16.mxu0 0
    %3578 = vmatpush1.bf16.msra.mxu0 0
    %3579 = vmatprep.subr.bf16.mxu0 0
    %3580 = vmatpush1.bf16.msra.mxu0 0
    %3581 = vmatprep.subr.bf16.mxu0 0
    %3582 = vmatpush1.bf16.msra.mxu0 0
    %3583 = vmatprep.subr.bf16.mxu0 0
    %3584 = vmatpush1.bf16.msra.mxu0 0
    %3585 = vmatprep.subr.bf16.mxu0 0
    %3586 = vmatpush1.bf16.msra.mxu0 %v3569
    %3587 = vmatprep.subr.bf16.mxu0 0
    %3588 = vmatpush2.bf16.msra.mxu0 0
    %3589 = vmatprep.subr.bf16.mxu0 0
    %3590 = vmatpush2.bf16.msra.mxu0 0
    %3591 = vmatprep.subr.bf16.mxu0 0
    %3592 = vmatpush2.bf16.msra.mxu0 0
    %3593 = vmatprep.subr.bf16.mxu0 0
    %3594 = vmatpush2.bf16.msra.mxu0 0
    %3595 = vmatprep.subr.bf16.mxu0 0
    %3596 = vmatpush2.bf16.msra.mxu0 0
    %3597 = vmatprep.subr.bf16.mxu0 0
    %3598 = vmatpush2.bf16.msra.mxu0 0
    %3599 = vmatprep.subr.bf16.mxu0 0
    %3600 = vmatpush2.bf16.msra.mxu0 0
    %3601 = vmatprep.subr.bf16.mxu0 0
    %3602 = vmatpush2.bf16.msra.mxu0 0
    %3603 = vmatprep.mubr.bf16.mxu0 0
    %3604 = vmatmul.mubr.bf16.gmra.mxu0 %v3566
    %v3605 = vpop.f32.mrf.mxu0
    %v3606 = vadd.f32 0.0, %v3605
    %v3607 = vpop.f32.mrf.mxu0
    %v3608 = vpop.f32.mrf.mxu0
    %v3609 = vadd.f32 0.0, %v3608
    %v3610 = vpop.f32.mrf.mxu0
    %3611 = vdwg.mxu0
    %v3612 = vadd.f32 %v3055, %v3606
    %v3613 = vadd.f32 %v3056, %v3609
    %v3614 = vld [vmem:[%s1 + $0x20] sm:$0xf]
    %v3615 = vld [vmem:[%s1 + $0x24] sm:$0xf]
    %v3616 = vld [vmem:[%s1 + $0x28] sm:$0xf]
    %v3617 = vld [vmem:[%s1 + $0x2c] sm:$0xf]
    %v3618 = vld [vmem:[%s2 + $0x2] sm:$0x1]
    %v3619 = vlaneseq
    %v3620 = vshrl.u32 %v3619, 7
    %v3621 = vsub.s32 0, %v3620
    %v3622 = vrot.slane %v3618, %v3621
    %v3627 = vunpack.c.l.b16 %v3614
    %v3628 = vunpack.c.l.b16 %v3615
    %v3629 = vunpack.c.l.b16 %v3616
    %v3630 = vunpack.c.l.b16 %v3617
    %v3631 = vpack.c.b16 %v3628, %v3627
    %v3632 = vpack.c.b16 %v3630, %v3629
    %3635 = vmatprep.subr.bf16.mxu0 0
    %3636 = vmatpush1.bf16.msra.mxu0 0
    %3637 = vmatprep.subr.bf16.mxu0 0
    %3638 = vmatpush1.bf16.msra.mxu0 0
    %3639 = vmatprep.subr.bf16.mxu0 0
    %3640 = vmatpush1.bf16.msra.mxu0 0
    %3641 = vmatprep.subr.bf16.mxu0 0
    %3642 = vmatpush1.bf16.msra.mxu0 0
    %3643 = vmatprep.subr.bf16.mxu0 0
    %3644 = vmatpush1.bf16.msra.mxu0 0
    %3645 = vmatprep.subr.bf16.mxu0 0
    %3646 = vmatpush1.bf16.msra.mxu0 0
    %3647 = vmatprep.subr.bf16.mxu0 0
    %3648 = vmatpush1.bf16.msra.mxu0 %v3632
    %3649 = vmatprep.subr.bf16.mxu0 0
    %3650 = vmatpush1.bf16.msra.mxu0 %v3631
    %3651 = vmatprep.subr.bf16.mxu0 0
    %3652 = vmatpush2.bf16.msra.mxu0 0
    %3653 = vmatprep.subr.bf16.mxu0 0
    %3654 = vmatpush2.bf16.msra.mxu0 0
    %3655 = vmatprep.subr.bf16.mxu0 0
    %3656 = vmatpush2.bf16.msra.mxu0 0
    %3657 = vmatprep.subr.bf16.mxu0 0
    %3658 = vmatpush2.bf16.msra.mxu0 0
    %3659 = vmatprep.subr.bf16.mxu0 0
    %3660 = vmatpush2.bf16.msra.mxu0 0
    %3661 = vmatprep.subr.bf16.mxu0 0
    %3662 = vmatpush2.bf16.msra.mxu0 0
    %3663 = vmatprep.subr.bf16.mxu0 0
    %3664 = vmatpush2.bf16.msra.mxu0 0
    %3665 = vmatprep.subr.bf16.mxu0 0
    %3666 = vmatpush2.bf16.msra.mxu0 0
    %3667 = vmatprep.mubr.bf16.mxu0 0
    %3668 = vmatmul.mubr.bf16.gmra.mxu0 %v2519
    %v3669 = vpop.f32.mrf.mxu0
    %v3670 = vadd.f32 %v3622, %v3669
    %v3671 = vpop.f32.mrf.mxu0
    %v3672 = vpop.f32.mrf.mxu0
    %v3673 = vadd.f32 %v3622, %v3672
    %v3674 = vpop.f32.mrf.mxu0
    %3675 = vdwg.mxu0
    %v3676 = vld [vmem:[%s1 + $0x60] sm:$0xf]
    %v3677 = vld [vmem:[%s1 + $0x64] sm:$0xf]
    %v3678 = vld [vmem:[%s1 + $0x68] sm:$0xf]
    %v3679 = vld [vmem:[%s1 + $0x6c] sm:$0xf]
    %v3680 = vld [vmem:[%s2 + $0x6] sm:$0x1]
    %v3681 = vlaneseq
    %v3682 = vshrl.u32 %v3681, 7
    %v3683 = vsub.s32 0, %v3682
    %v3684 = vrot.slane %v3680, %v3683
    %v3689 = vunpack.c.l.b16 %v3676
    %v3690 = vunpack.c.l.b16 %v3677
    %v3691 = vunpack.c.l.b16 %v3678
    %v3692 = vunpack.c.l.b16 %v3679
    %v3693 = vpack.c.b16 %v3690, %v3689
    %v3694 = vpack.c.b16 %v3692, %v3691
    %3697 = vmatprep.subr.bf16.mxu0 0
    %3698 = vmatpush1.bf16.msra.mxu0 0
    %3699 = vmatprep.subr.bf16.mxu0 0
    %3700 = vmatpush1.bf16.msra.mxu0 0
    %3701 = vmatprep.subr.bf16.mxu0 0
    %3702 = vmatpush1.bf16.msra.mxu0 0
    %3703 = vmatprep.subr.bf16.mxu0 0
    %3704 = vmatpush1.bf16.msra.mxu0 0
    %3705 = vmatprep.subr.bf16.mxu0 0
    %3706 = vmatpush1.bf16.msra.mxu0 0
    %3707 = vmatprep.subr.bf16.mxu0 0
    %3708 = vmatpush1.bf16.msra.mxu0 0
    %3709 = vmatprep.subr.bf16.mxu0 0
    %3710 = vmatpush1.bf16.msra.mxu0 %v3694
    %3711 = vmatprep.subr.bf16.mxu0 0
    %3712 = vmatpush1.bf16.msra.mxu0 %v3693
    %3713 = vmatprep.subr.bf16.mxu0 0
    %3714 = vmatpush2.bf16.msra.mxu0 0
    %3715 = vmatprep.subr.bf16.mxu0 0
    %3716 = vmatpush2.bf16.msra.mxu0 0
    %3717 = vmatprep.subr.bf16.mxu0 0
    %3718 = vmatpush2.bf16.msra.mxu0 0
    %3719 = vmatprep.subr.bf16.mxu0 0
    %3720 = vmatpush2.bf16.msra.mxu0 0
    %3721 = vmatprep.subr.bf16.mxu0 0
    %3722 = vmatpush2.bf16.msra.mxu0 0
    %3723 = vmatprep.subr.bf16.mxu0 0
    %3724 = vmatpush2.bf16.msra.mxu0 0
    %3725 = vmatprep.subr.bf16.mxu0 0
    %3726 = vmatpush2.bf16.msra.mxu0 0
    %3727 = vmatprep.subr.bf16.mxu0 0
    %3728 = vmatpush2.bf16.msra.mxu0 0
    %3729 = vmatprep.mubr.bf16.mxu0 0
    %3730 = vmatmul.mubr.bf16.gmra.mxu0 %v2519
    %v3731 = vpop.f32.mrf.mxu0
    %v3732 = vadd.f32 %v3684, %v3731
    %v3733 = vpop.f32.mrf.mxu0
    %v3734 = vpop.f32.mrf.mxu0
    %v3735 = vadd.f32 %v3684, %v3734
    %v3736 = vpop.f32.mrf.mxu0
    %3737 = vdwg.mxu0
    %v3738 = vld [vmem:[%s1 + $0xa0] sm:$0xf]
    %v3739 = vld [vmem:[%s1 + $0xa4] sm:$0xf]
    %v3740 = vld [vmem:[%s1 + $0xa8] sm:$0xf]
    %v3741 = vld [vmem:[%s1 + $0xac] sm:$0xf]
    %v3742 = vld [vmem:[%s2 + $0xa] sm:$0x1]
    %v3743 = vlaneseq
    %v3744 = vshrl.u32 %v3743, 7
    %v3745 = vsub.s32 0, %v3744
    %v3746 = vrot.slane %v3742, %v3745
    %v3751 = vunpack.c.l.b16 %v3738
    %v3752 = vunpack.c.l.b16 %v3739
    %v3753 = vunpack.c.l.b16 %v3740
    %v3754 = vunpack.c.l.b16 %v3741
    %v3755 = vpack.c.b16 %v3752, %v3751
    %v3756 = vpack.c.b16 %v3754, %v3753
    %3759 = vmatprep.subr.bf16.mxu0 0
    %3760 = vmatpush1.bf16.msra.mxu0 0
    %3761 = vmatprep.subr.bf16.mxu0 0
    %3762 = vmatpush1.bf16.msra.mxu0 0
    %3763 = vmatprep.subr.bf16.mxu0 0
    %3764 = vmatpush1.bf16.msra.mxu0 0
    %3765 = vmatprep.subr.bf16.mxu0 0
    %3766 = vmatpush1.bf16.msra.mxu0 0
    %3767 = vmatprep.subr.bf16.mxu0 0
    %3768 = vmatpush1.bf16.msra.mxu0 0
    %3769 = vmatprep.subr.bf16.mxu0 0
    %3770 = vmatpush1.bf16.msra.mxu0 0
    %3771 = vmatprep.subr.bf16.mxu0 0
    %3772 = vmatpush1.bf16.msra.mxu0 %v3756
    %3773 = vmatprep.subr.bf16.mxu0 0
    %3774 = vmatpush1.bf16.msra.mxu0 %v3755
    %3775 = vmatprep.subr.bf16.mxu0 0
    %3776 = vmatpush2.bf16.msra.mxu0 0
    %3777 = vmatprep.subr.bf16.mxu0 0
    %3778 = vmatpush2.bf16.msra.mxu0 0
    %3779 = vmatprep.subr.bf16.mxu0 0
    %3780 = vmatpush2.bf16.msra.mxu0 0
    %3781 = vmatprep.subr.bf16.mxu0 0
    %3782 = vmatpush2.bf16.msra.mxu0 0
    %3783 = vmatprep.subr.bf16.mxu0 0
    %3784 = vmatpush2.bf16.msra.mxu0 0
    %3785 = vmatprep.subr.bf16.mxu0 0
    %3786 = vmatpush2.bf16.msra.mxu0 0
    %3787 = vmatprep.subr.bf16.mxu0 0
    %3788 = vmatpush2.bf16.msra.mxu0 0
    %3789 = vmatprep.subr.bf16.mxu0 0
    %3790 = vmatpush2.bf16.msra.mxu0 0
    %3791 = vmatprep.mubr.bf16.mxu0 0
    %3792 = vmatmul.mubr.bf16.gmra.mxu0 %v2519
    %v3793 = vpop.f32.mrf.mxu0
    %v3794 = vadd.f32 %v3746, %v3793
    %v3795 = vpop.f32.mrf.mxu0
    %v3796 = vpop.f32.mrf.mxu0
    %v3797 = vadd.f32 %v3746, %v3796
    %v3798 = vpop.f32.mrf.mxu0
    %3799 = vdwg.mxu0
    %v3801 = vsel %vm227, %v3670, 0
    %v3804 = vsel %vm227, %v3732, 0
    %3806 = vmatprep.subr.mxu0 0.0
    %3807 = vmatpush1.xpose.msra.mxu0 0.0
    %3808 = vmatprep.subr.mxu0 0.0
    %3809 = vmatpush1.xpose.msra.mxu0 0.0
    %3810 = vmatprep.subr.mxu0 0.0
    %3811 = vmatpush1.xpose.msra.mxu0 0.0
    %3812 = vmatprep.subr.mxu0 0.0
    %3813 = vmatpush1.xpose.msra.mxu0 0.0
    %3814 = vmatprep.subr.mxu0 0.0
    %3815 = vmatpush1.xpose.msra.mxu0 0.0
    %3816 = vmatprep.subr.mxu0 0.0
    %3817 = vmatpush1.xpose.msra.mxu0 0.0
    %3818 = vmatprep.subr.mxu0 0.0
    %3819 = vmatpush1.xpose.msra.mxu0 0.0
    %3820 = vmatprep.subr.mxu0 0.0
    %3821 = vmatpush1.xpose.msra.mxu0 0.0
    %3822 = vmatprep.subr.mxu0 0.0
    %3823 = vmatpush1.xpose.msra.mxu0 0.0
    %3824 = vmatprep.subr.mxu0 0.0
    %3825 = vmatpush1.xpose.msra.mxu0 0.0
    %3826 = vmatprep.subr.mxu0 0.0
    %3827 = vmatpush1.xpose.msra.mxu0 0.0
    %3828 = vmatprep.subr.mxu0 0.0
    %3829 = vmatpush1.xpose.msra.mxu0 0.0
    %3830 = vmatprep.subr.mxu0 0.0
    %3831 = vmatpush1.xpose.msra.mxu0 0.0
    %3832 = vmatprep.subr.mxu0 0.0
    %3833 = vmatpush1.xpose.msra.mxu0 0.0
    %3834 = vmatprep.subr.mxu0 0.0
    %3835 = vmatpush1.xpose.msra.mxu0 0.0
    %3836 = vmatprep.subr.mxu0 0.0
    %3837 = vmatpush1.xpose.msra.mxu0 %v3804
    %3838 = vmatprep.subr.mxu0 0.0
    %3839 = vmatpush2.xpose.msra.mxu0 0.0
    %3840 = vmatprep.subr.mxu0 0.0
    %3841 = vmatpush2.xpose.msra.mxu0 0.0
    %3842 = vmatprep.subr.mxu0 0.0
    %3843 = vmatpush2.xpose.msra.mxu0 0.0
    %3844 = vmatprep.subr.mxu0 0.0
    %3845 = vmatpush2.xpose.msra.mxu0 0.0
    %3846 = vmatprep.subr.mxu0 0.0
    %3847 = vmatpush2.xpose.msra.mxu0 0.0
    %3848 = vmatprep.subr.mxu0 0.0
    %3849 = vmatpush2.xpose.msra.mxu0 0.0
    %3850 = vmatprep.subr.mxu0 0.0
    %3851 = vmatpush2.xpose.msra.mxu0 0.0
    %3852 = vmatprep.subr.mxu0 0.0
    %3853 = vmatpush2.xpose.msra.mxu0 0.0
    %3854 = vmatprep.subr.mxu0 0.0
    %3855 = vmatpush2.xpose.msra.mxu0 0.0
    %3856 = vmatprep.subr.mxu0 0.0
    %3857 = vmatpush2.xpose.msra.mxu0 0.0
    %3858 = vmatprep.subr.mxu0 0.0
    %3859 = vmatpush2.xpose.msra.mxu0 0.0
    %3860 = vmatprep.subr.mxu0 0.0
    %3861 = vmatpush2.xpose.msra.mxu0 0.0
    %3862 = vmatprep.subr.mxu0 0.0
    %3863 = vmatpush2.xpose.msra.mxu0 0.0
    %3864 = vmatprep.subr.mxu0 0.0
    %3865 = vmatpush2.xpose.msra.mxu0 0.0
    %3866 = vmatprep.subr.mxu0 0.0
    %3867 = vmatpush2.xpose.msra.mxu0 0.0
    %3868 = vmatprep.subr.mxu0 0.0
    %3869 = vmatpush2.xpose.msra.mxu0 0.0
    %3870 = vmatprep.mubr.f32.mxu0 0.0
    %3871 = vmatmul.mubr.f32.gmra.mxu0 %v3801
    %v3872 = vpop.f32.mrf.mxu0
    %v3873 = vadd.f32 0.0, %v3872
    %v3874 = vpop.f32.mrf.mxu0
    %3875 = vdwg.mxu0
    %v3877 = vsel %vm227, %v3673, 0
    %v3880 = vsel %vm227, %v3735, 0
    %3882 = vmatprep.subr.mxu0 0.0
    %3883 = vmatpush1.xpose.msra.mxu0 0.0
    %3884 = vmatprep.subr.mxu0 0.0
    %3885 = vmatpush1.xpose.msra.mxu0 0.0
    %3886 = vmatprep.subr.mxu0 0.0
    %3887 = vmatpush1.xpose.msra.mxu0 0.0
    %3888 = vmatprep.subr.mxu0 0.0
    %3889 = vmatpush1.xpose.msra.mxu0 0.0
    %3890 = vmatprep.subr.mxu0 0.0
    %3891 = vmatpush1.xpose.msra.mxu0 0.0
    %3892 = vmatprep.subr.mxu0 0.0
    %3893 = vmatpush1.xpose.msra.mxu0 0.0
    %3894 = vmatprep.subr.mxu0 0.0
    %3895 = vmatpush1.xpose.msra.mxu0 0.0
    %3896 = vmatprep.subr.mxu0 0.0
    %3897 = vmatpush1.xpose.msra.mxu0 0.0
    %3898 = vmatprep.subr.mxu0 0.0
    %3899 = vmatpush1.xpose.msra.mxu0 0.0
    %3900 = vmatprep.subr.mxu0 0.0
    %3901 = vmatpush1.xpose.msra.mxu0 0.0
    %3902 = vmatprep.subr.mxu0 0.0
    %3903 = vmatpush1.xpose.msra.mxu0 0.0
    %3904 = vmatprep.subr.mxu0 0.0
    %3905 = vmatpush1.xpose.msra.mxu0 0.0
    %3906 = vmatprep.subr.mxu0 0.0
    %3907 = vmatpush1.xpose.msra.mxu0 0.0
    %3908 = vmatprep.subr.mxu0 0.0
    %3909 = vmatpush1.xpose.msra.mxu0 0.0
    %3910 = vmatprep.subr.mxu0 0.0
    %3911 = vmatpush1.xpose.msra.mxu0 0.0
    %3912 = vmatprep.subr.mxu0 0.0
    %3913 = vmatpush1.xpose.msra.mxu0 %v3880
    %3914 = vmatprep.subr.mxu0 0.0
    %3915 = vmatpush2.xpose.msra.mxu0 0.0
    %3916 = vmatprep.subr.mxu0 0.0
    %3917 = vmatpush2.xpose.msra.mxu0 0.0
    %3918 = vmatprep.subr.mxu0 0.0
    %3919 = vmatpush2.xpose.msra.mxu0 0.0
    %3920 = vmatprep.subr.mxu0 0.0
    %3921 = vmatpush2.xpose.msra.mxu0 0.0
    %3922 = vmatprep.subr.mxu0 0.0
    %3923 = vmatpush2.xpose.msra.mxu0 0.0
    %3924 = vmatprep.subr.mxu0 0.0
    %3925 = vmatpush2.xpose.msra.mxu0 0.0
    %3926 = vmatprep.subr.mxu0 0.0
    %3927 = vmatpush2.xpose.msra.mxu0 0.0
    %3928 = vmatprep.subr.mxu0 0.0
    %3929 = vmatpush2.xpose.msra.mxu0 0.0
    %3930 = vmatprep.subr.mxu0 0.0
    %3931 = vmatpush2.xpose.msra.mxu0 0.0
    %3932 = vmatprep.subr.mxu0 0.0
    %3933 = vmatpush2.xpose.msra.mxu0 0.0
    %3934 = vmatprep.subr.mxu0 0.0
    %3935 = vmatpush2.xpose.msra.mxu0 0.0
    %3936 = vmatprep.subr.mxu0 0.0
    %3937 = vmatpush2.xpose.msra.mxu0 0.0
    %3938 = vmatprep.subr.mxu0 0.0
    %3939 = vmatpush2.xpose.msra.mxu0 0.0
    %3940 = vmatprep.subr.mxu0 0.0
    %3941 = vmatpush2.xpose.msra.mxu0 0.0
    %3942 = vmatprep.subr.mxu0 0.0
    %3943 = vmatpush2.xpose.msra.mxu0 0.0
    %3944 = vmatprep.subr.mxu0 0.0
    %3945 = vmatpush2.xpose.msra.mxu0 0.0
    %3946 = vmatprep.mubr.f32.mxu0 0.0
    %3947 = vmatmul.mubr.f32.gmra.mxu0 %v3877
    %v3948 = vpop.f32.mrf.mxu0
    %v3949 = vadd.f32 0.0, %v3948
    %v3950 = vpop.f32.mrf.mxu0
    %3951 = vdwg.mxu0
    %v3952 = vsel %vm227, %v3873, -inf
    %3953 = vmax.xlane.f32.xlu0 %v3952
    %v3954 = vpop.xlane.xlu0 %3953
    %v3955 = vsel %vm227, %v3949, -inf
    %3956 = vmax.xlane.f32.xlu0 %v3955
    %v3957 = vpop.xlane.xlu0 %3956
    %v3958 = vsub.f32 %v3873, %v3954
    %v3959 = vsub.f32 %v3949, %v3957
    %v3960 = vmul.f32 %v3958, 1.442695
    %v3961 = vpow.pop %v3960
    %v3962 = vmul.f32 %v3959, 1.442695
    %v3963 = vpow.pop %v3962
    %v3964 = vsel %vm227, %v3961, 0.0
    %3965 = vadd.xlane.f32.xlu0 %v3964
    %v3966 = vpop.xlane.xlu0 %3965
    %v3967 = vsel %vm227, %v3963, 0.0
    %3968 = vadd.xlane.f32.xlu0 %v3967
    %v3969 = vpop.xlane.xlu0 %3968
    %v3970 = vrcp.pop %v3966
    %v3971 = vrcp.pop %v3969
    %v3972 = vmul.f32 %v3961, %v3970
    %v3973 = vmul.f32 %v3963, %v3971
    %v3975 = vsel %vm227, %v3972, 0
    %3977 = vmatprep.subr.mxu0 0.0
    %3978 = vmatpush1.msra.mxu0 0.0
    %3979 = vmatprep.subr.mxu0 0.0
    %3980 = vmatpush1.msra.mxu0 0.0
    %3981 = vmatprep.subr.mxu0 0.0
    %3982 = vmatpush1.msra.mxu0 0.0
    %3983 = vmatprep.subr.mxu0 0.0
    %3984 = vmatpush1.msra.mxu0 0.0
    %3985 = vmatprep.subr.mxu0 0.0
    %3986 = vmatpush1.msra.mxu0 0.0
    %3987 = vmatprep.subr.mxu0 0.0
    %3988 = vmatpush1.msra.mxu0 0.0
    %3989 = vmatprep.subr.mxu0 0.0
    %3990 = vmatpush1.msra.mxu0 0.0
    %3991 = vmatprep.subr.mxu0 0.0
    %3992 = vmatpush1.msra.mxu0 0.0
    %3993 = vmatprep.subr.mxu0 0.0
    %3994 = vmatpush1.msra.mxu0 0.0
    %3995 = vmatprep.subr.mxu0 0.0
    %3996 = vmatpush1.msra.mxu0 0.0
    %3997 = vmatprep.subr.mxu0 0.0
    %3998 = vmatpush1.msra.mxu0 0.0
    %3999 = vmatprep.subr.mxu0 0.0
    %4000 = vmatpush1.msra.mxu0 0.0
    %4001 = vmatprep.subr.mxu0 0.0
    %4002 = vmatpush1.msra.mxu0 0.0
    %4003 = vmatprep.subr.mxu0 0.0
    %4004 = vmatpush1.msra.mxu0 0.0
    %4005 = vmatprep.subr.mxu0 0.0
    %4006 = vmatpush1.msra.mxu0 0.0
    %4007 = vmatprep.subr.mxu0 0.0
    %4008 = vmatpush1.msra.mxu0 %v3794
    %4009 = vmatprep.subr.mxu0 0.0
    %4010 = vmatpush2.msra.mxu0 0.0
    %4011 = vmatprep.subr.mxu0 0.0
    %4012 = vmatpush2.msra.mxu0 0.0
    %4013 = vmatprep.subr.mxu0 0.0
    %4014 = vmatpush2.msra.mxu0 0.0
    %4015 = vmatprep.subr.mxu0 0.0
    %4016 = vmatpush2.msra.mxu0 0.0
    %4017 = vmatprep.subr.mxu0 0.0
    %4018 = vmatpush2.msra.mxu0 0.0
    %4019 = vmatprep.subr.mxu0 0.0
    %4020 = vmatpush2.msra.mxu0 0.0
    %4021 = vmatprep.subr.mxu0 0.0
    %4022 = vmatpush2.msra.mxu0 0.0
    %4023 = vmatprep.subr.mxu0 0.0
    %4024 = vmatpush2.msra.mxu0 0.0
    %4025 = vmatprep.subr.mxu0 0.0
    %4026 = vmatpush2.msra.mxu0 0.0
    %4027 = vmatprep.subr.mxu0 0.0
    %4028 = vmatpush2.msra.mxu0 0.0
    %4029 = vmatprep.subr.mxu0 0.0
    %4030 = vmatpush2.msra.mxu0 0.0
    %4031 = vmatprep.subr.mxu0 0.0
    %4032 = vmatpush2.msra.mxu0 0.0
    %4033 = vmatprep.subr.mxu0 0.0
    %4034 = vmatpush2.msra.mxu0 0.0
    %4035 = vmatprep.subr.mxu0 0.0
    %4036 = vmatpush2.msra.mxu0 0.0
    %4037 = vmatprep.subr.mxu0 0.0
    %4038 = vmatpush2.msra.mxu0 0.0
    %4039 = vmatprep.subr.mxu0 0.0
    %4040 = vmatpush2.msra.mxu0 0.0
    %4041 = vmatprep.mubr.f32.mxu0 0.0
    %4042 = vmatmul.mubr.f32.gmra.mxu0 %v3975
    %v4043 = vpop.f32.mrf.mxu0
    %v4044 = vadd.f32 0.0, %v4043
    %v4045 = vpop.f32.mrf.mxu0
    %4046 = vdwg.mxu0
    %v4048 = vsel %vm227, %v3973, 0
    %4050 = vmatprep.subr.mxu0 0.0
    %4051 = vmatpush1.msra.mxu0 0.0
    %4052 = vmatprep.subr.mxu0 0.0
    %4053 = vmatpush1.msra.mxu0 0.0
    %4054 = vmatprep.subr.mxu0 0.0
    %4055 = vmatpush1.msra.mxu0 0.0
    %4056 = vmatprep.subr.mxu0 0.0
    %4057 = vmatpush1.msra.mxu0 0.0
    %4058 = vmatprep.subr.mxu0 0.0
    %4059 = vmatpush1.msra.mxu0 0.0
    %4060 = vmatprep.subr.mxu0 0.0
    %4061 = vmatpush1.msra.mxu0 0.0
    %4062 = vmatprep.subr.mxu0 0.0
    %4063 = vmatpush1.msra.mxu0 0.0
    %4064 = vmatprep.subr.mxu0 0.0
    %4065 = vmatpush1.msra.mxu0 0.0
    %4066 = vmatprep.subr.mxu0 0.0
    %4067 = vmatpush1.msra.mxu0 0.0
    %4068 = vmatprep.subr.mxu0 0.0
    %4069 = vmatpush1.msra.mxu0 0.0
    %4070 = vmatprep.subr.mxu0 0.0
    %4071 = vmatpush1.msra.mxu0 0.0
    %4072 = vmatprep.subr.mxu0 0.0
    %4073 = vmatpush1.msra.mxu0 0.0
    %4074 = vmatprep.subr.mxu0 0.0
    %4075 = vmatpush1.msra.mxu0 0.0
    %4076 = vmatprep.subr.mxu0 0.0
    %4077 = vmatpush1.msra.mxu0 0.0
    %4078 = vmatprep.subr.mxu0 0.0
    %4079 = vmatpush1.msra.mxu0 0.0
    %4080 = vmatprep.subr.mxu0 0.0
    %4081 = vmatpush1.msra.mxu0 %v3797
    %4082 = vmatprep.subr.mxu0 0.0
    %4083 = vmatpush2.msra.mxu0 0.0
    %4084 = vmatprep.subr.mxu0 0.0
    %4085 = vmatpush2.msra.mxu0 0.0
    %4086 = vmatprep.subr.mxu0 0.0
    %4087 = vmatpush2.msra.mxu0 0.0
    %4088 = vmatprep.subr.mxu0 0.0
    %4089 = vmatpush2.msra.mxu0 0.0
    %4090 = vmatprep.subr.mxu0 0.0
    %4091 = vmatpush2.msra.mxu0 0.0
    %4092 = vmatprep.subr.mxu0 0.0
    %4093 = vmatpush2.msra.mxu0 0.0
    %4094 = vmatprep.subr.mxu0 0.0
    %4095 = vmatpush2.msra.mxu0 0.0
    %4096 = vmatprep.subr.mxu0 0.0
    %4097 = vmatpush2.msra.mxu0 0.0
    %4098 = vmatprep.subr.mxu0 0.0
    %4099 = vmatpush2.msra.mxu0 0.0
    %4100 = vmatprep.subr.mxu0 0.0
    %4101 = vmatpush2.msra.mxu0 0.0
    %4102 = vmatprep.subr.mxu0 0.0
    %4103 = vmatpush2.msra.mxu0 0.0
    %4104 = vmatprep.subr.mxu0 0.0
    %4105 = vmatpush2.msra.mxu0 0.0
    %4106 = vmatprep.subr.mxu0 0.0
    %4107 = vmatpush2.msra.mxu0 0.0
    %4108 = vmatprep.subr.mxu0 0.0
    %4109 = vmatpush2.msra.mxu0 0.0
    %4110 = vmatprep.subr.mxu0 0.0
    %4111 = vmatpush2.msra.mxu0 0.0
    %4112 = vmatprep.subr.mxu0 0.0
    %4113 = vmatpush2.msra.mxu0 0.0
    %4114 = vmatprep.mubr.f32.mxu0 0.0
    %4115 = vmatmul.mubr.f32.gmra.mxu0 %v4048
    %v4116 = vpop.f32.mrf.mxu0
    %v4117 = vadd.f32 0.0, %v4116
    %v4118 = vpop.f32.mrf.mxu0
    %4119 = vdwg.mxu0
    %v4120 = vpack.c.bf16 %v4117, %v4044
    %v4121 = vld [vmem:[%s1 + $0xe0] sm:$0xf]
    %v4123 = vsel %vm227, %v4120, 0
    %v4126 = vsel %vm553, %v4121, 0
    %4128 = vmatprep.subr.bf16.mxu0 0
    %4129 = vmatpush1.bf16.msra.mxu0 0
    %4130 = vmatprep.subr.bf16.mxu0 0
    %4131 = vmatpush1.bf16.msra.mxu0 0
    %4132 = vmatprep.subr.bf16.mxu0 0
    %4133 = vmatpush1.bf16.msra.mxu0 0
    %4134 = vmatprep.subr.bf16.mxu0 0
    %4135 = vmatpush1.bf16.msra.mxu0 0
    %4136 = vmatprep.subr.bf16.mxu0 0
    %4137 = vmatpush1.bf16.msra.mxu0 0
    %4138 = vmatprep.subr.bf16.mxu0 0
    %4139 = vmatpush1.bf16.msra.mxu0 0
    %4140 = vmatprep.subr.bf16.mxu0 0
    %4141 = vmatpush1.bf16.msra.mxu0 0
    %4142 = vmatprep.subr.bf16.mxu0 0
    %4143 = vmatpush1.bf16.msra.mxu0 %v4126
    %4144 = vmatprep.subr.bf16.mxu0 0
    %4145 = vmatpush2.bf16.msra.mxu0 0
    %4146 = vmatprep.subr.bf16.mxu0 0
    %4147 = vmatpush2.bf16.msra.mxu0 0
    %4148 = vmatprep.subr.bf16.mxu0 0
    %4149 = vmatpush2.bf16.msra.mxu0 0
    %4150 = vmatprep.subr.bf16.mxu0 0
    %4151 = vmatpush2.bf16.msra.mxu0 0
    %4152 = vmatprep.subr.bf16.mxu0 0
    %4153 = vmatpush2.bf16.msra.mxu0 0
    %4154 = vmatprep.subr.bf16.mxu0 0
    %4155 = vmatpush2.bf16.msra.mxu0 0
    %4156 = vmatprep.subr.bf16.mxu0 0
    %4157 = vmatpush2.bf16.msra.mxu0 0
    %4158 = vmatprep.subr.bf16.mxu0 0
    %4159 = vmatpush2.bf16.msra.mxu0 0
    %4160 = vmatprep.mubr.bf16.mxu0 0
    %4161 = vmatmul.mubr.bf16.gmra.mxu0 %v4123
    %v4162 = vpop.f32.mrf.mxu0
    %v4163 = vadd.f32 0.0, %v4162
    %v4164 = vpop.f32.mrf.mxu0
    %v4165 = vpop.f32.mrf.mxu0
    %v4166 = vadd.f32 0.0, %v4165
    %v4167 = vpop.f32.mrf.mxu0
    %4168 = vdwg.mxu0
    %v4169 = vadd.f32 %v3612, %v4163
    %v4170 = vadd.f32 %v3613, %v4166
    %v4171 = vld [vmem:[%s1 + $0x30] sm:$0xf]
    %v4172 = vld [vmem:[%s1 + $0x34] sm:$0xf]
    %v4173 = vld [vmem:[%s1 + $0x38] sm:$0xf]
    %v4174 = vld [vmem:[%s1 + $0x3c] sm:$0xf]
    %v4175 = vld [vmem:[%s2 + $0x3] sm:$0x1]
    %v4176 = vlaneseq
    %v4177 = vshrl.u32 %v4176, 7
    %v4178 = vsub.s32 0, %v4177
    %v4179 = vrot.slane %v4175, %v4178
    %v4184 = vunpack.c.l.b16 %v4171
    %v4185 = vunpack.c.l.b16 %v4172
    %v4186 = vunpack.c.l.b16 %v4173
    %v4187 = vunpack.c.l.b16 %v4174
    %v4188 = vpack.c.b16 %v4185, %v4184
    %v4189 = vpack.c.b16 %v4187, %v4186
    %4192 = vmatprep.subr.bf16.mxu0 0
    %4193 = vmatpush1.bf16.msra.mxu0 0
    %4194 = vmatprep.subr.bf16.mxu0 0
    %4195 = vmatpush1.bf16.msra.mxu0 0
    %4196 = vmatprep.subr.bf16.mxu0 0
    %4197 = vmatpush1.bf16.msra.mxu0 0
    %4198 = vmatprep.subr.bf16.mxu0 0
    %4199 = vmatpush1.bf16.msra.mxu0 0
    %4200 = vmatprep.subr.bf16.mxu0 0
    %4201 = vmatpush1.bf16.msra.mxu0 0
    %4202 = vmatprep.subr.bf16.mxu0 0
    %4203 = vmatpush1.bf16.msra.mxu0 0
    %4204 = vmatprep.subr.bf16.mxu0 0
    %4205 = vmatpush1.bf16.msra.mxu0 %v4189
    %4206 = vmatprep.subr.bf16.mxu0 0
    %4207 = vmatpush1.bf16.msra.mxu0 %v4188
    %4208 = vmatprep.subr.bf16.mxu0 0
    %4209 = vmatpush2.bf16.msra.mxu0 0
    %4210 = vmatprep.subr.bf16.mxu0 0
    %4211 = vmatpush2.bf16.msra.mxu0 0
    %4212 = vmatprep.subr.bf16.mxu0 0
    %4213 = vmatpush2.bf16.msra.mxu0 0
    %4214 = vmatprep.subr.bf16.mxu0 0
    %4215 = vmatpush2.bf16.msra.mxu0 0
    %4216 = vmatprep.subr.bf16.mxu0 0
    %4217 = vmatpush2.bf16.msra.mxu0 0
    %4218 = vmatprep.subr.bf16.mxu0 0
    %4219 = vmatpush2.bf16.msra.mxu0 0
    %4220 = vmatprep.subr.bf16.mxu0 0
    %4221 = vmatpush2.bf16.msra.mxu0 0
    %4222 = vmatprep.subr.bf16.mxu0 0
    %4223 = vmatpush2.bf16.msra.mxu0 0
    %4224 = vmatprep.mubr.bf16.mxu0 0
    %4225 = vmatmul.mubr.bf16.gmra.mxu0 %v2519
    %v4226 = vpop.f32.mrf.mxu0
    %v4227 = vadd.f32 %v4179, %v4226
    %v4228 = vpop.f32.mrf.mxu0
    %v4229 = vpop.f32.mrf.mxu0
    %v4230 = vadd.f32 %v4179, %v4229
    %v4231 = vpop.f32.mrf.mxu0
    %4232 = vdwg.mxu0
    %v4233 = vld [vmem:[%s1 + $0x70] sm:$0xf]
    %v4234 = vld [vmem:[%s1 + $0x74] sm:$0xf]
    %v4235 = vld [vmem:[%s1 + $0x78] sm:$0xf]
    %v4236 = vld [vmem:[%s1 + $0x7c] sm:$0xf]
    %v4237 = vld [vmem:[%s2 + $0x7] sm:$0x1]
    %v4238 = vlaneseq
    %v4239 = vshrl.u32 %v4238, 7
    %v4240 = vsub.s32 0, %v4239
    %v4241 = vrot.slane %v4237, %v4240
    %v4246 = vunpack.c.l.b16 %v4233
    %v4247 = vunpack.c.l.b16 %v4234
    %v4248 = vunpack.c.l.b16 %v4235
    %v4249 = vunpack.c.l.b16 %v4236
    %v4250 = vpack.c.b16 %v4247, %v4246
    %v4251 = vpack.c.b16 %v4249, %v4248
    %4254 = vmatprep.subr.bf16.mxu0 0
    %4255 = vmatpush1.bf16.msra.mxu0 0
    %4256 = vmatprep.subr.bf16.mxu0 0
    %4257 = vmatpush1.bf16.msra.mxu0 0
    %4258 = vmatprep.subr.bf16.mxu0 0
    %4259 = vmatpush1.bf16.msra.mxu0 0
    %4260 = vmatprep.subr.bf16.mxu0 0
    %4261 = vmatpush1.bf16.msra.mxu0 0
    %4262 = vmatprep.subr.bf16.mxu0 0
    %4263 = vmatpush1.bf16.msra.mxu0 0
    %4264 = vmatprep.subr.bf16.mxu0 0
    %4265 = vmatpush1.bf16.msra.mxu0 0
    %4266 = vmatprep.subr.bf16.mxu0 0
    %4267 = vmatpush1.bf16.msra.mxu0 %v4251
    %4268 = vmatprep.subr.bf16.mxu0 0
    %4269 = vmatpush1.bf16.msra.mxu0 %v4250
    %4270 = vmatprep.subr.bf16.mxu0 0
    %4271 = vmatpush2.bf16.msra.mxu0 0
    %4272 = vmatprep.subr.bf16.mxu0 0
    %4273 = vmatpush2.bf16.msra.mxu0 0
    %4274 = vmatprep.subr.bf16.mxu0 0
    %4275 = vmatpush2.bf16.msra.mxu0 0
    %4276 = vmatprep.subr.bf16.mxu0 0
    %4277 = vmatpush2.bf16.msra.mxu0 0
    %4278 = vmatprep.subr.bf16.mxu0 0
    %4279 = vmatpush2.bf16.msra.mxu0 0
    %4280 = vmatprep.subr.bf16.mxu0 0
    %4281 = vmatpush2.bf16.msra.mxu0 0
    %4282 = vmatprep.subr.bf16.mxu0 0
    %4283 = vmatpush2.bf16.msra.mxu0 0
    %4284 = vmatprep.subr.bf16.mxu0 0
    %4285 = vmatpush2.bf16.msra.mxu0 0
    %4286 = vmatprep.mubr.bf16.mxu0 0
    %4287 = vmatmul.mubr.bf16.gmra.mxu0 %v2519
    %v4288 = vpop.f32.mrf.mxu0
    %v4289 = vadd.f32 %v4241, %v4288
    %v4290 = vpop.f32.mrf.mxu0
    %v4291 = vpop.f32.mrf.mxu0
    %v4292 = vadd.f32 %v4241, %v4291
    %v4293 = vpop.f32.mrf.mxu0
    %4294 = vdwg.mxu0
    %v4295 = vld [vmem:[%s1 + $0xb0] sm:$0xf]
    %v4296 = vld [vmem:[%s1 + $0xb4] sm:$0xf]
    %v4297 = vld [vmem:[%s1 + $0xb8] sm:$0xf]
    %v4298 = vld [vmem:[%s1 + $0xbc] sm:$0xf]
    %v4299 = vld [vmem:[%s2 + $0xb] sm:$0x1]
    %v4300 = vlaneseq
    %v4301 = vshrl.u32 %v4300, 7
    %v4302 = vsub.s32 0, %v4301
    %v4303 = vrot.slane %v4299, %v4302
    %v4308 = vunpack.c.l.b16 %v4295
    %v4309 = vunpack.c.l.b16 %v4296
    %v4310 = vunpack.c.l.b16 %v4297
    %v4311 = vunpack.c.l.b16 %v4298
    %v4312 = vpack.c.b16 %v4309, %v4308
    %v4313 = vpack.c.b16 %v4311, %v4310
    %4316 = vmatprep.subr.bf16.mxu0 0
    %4317 = vmatpush1.bf16.msra.mxu0 0
    %4318 = vmatprep.subr.bf16.mxu0 0
    %4319 = vmatpush1.bf16.msra.mxu0 0
    %4320 = vmatprep.subr.bf16.mxu0 0
    %4321 = vmatpush1.bf16.msra.mxu0 0
    %4322 = vmatprep.subr.bf16.mxu0 0
    %4323 = vmatpush1.bf16.msra.mxu0 0
    %4324 = vmatprep.subr.bf16.mxu0 0
    %4325 = vmatpush1.bf16.msra.mxu0 0
    %4326 = vmatprep.subr.bf16.mxu0 0
    %4327 = vmatpush1.bf16.msra.mxu0 0
    %4328 = vmatprep.subr.bf16.mxu0 0
    %4329 = vmatpush1.bf16.msra.mxu0 %v4313
    %4330 = vmatprep.subr.bf16.mxu0 0
    %4331 = vmatpush1.bf16.msra.mxu0 %v4312
    %4332 = vmatprep.subr.bf16.mxu0 0
    %4333 = vmatpush2.bf16.msra.mxu0 0
    %4334 = vmatprep.subr.bf16.mxu0 0
    %4335 = vmatpush2.bf16.msra.mxu0 0
    %4336 = vmatprep.subr.bf16.mxu0 0
    %4337 = vmatpush2.bf16.msra.mxu0 0
    %4338 = vmatprep.subr.bf16.mxu0 0
    %4339 = vmatpush2.bf16.msra.mxu0 0
    %4340 = vmatprep.subr.bf16.mxu0 0
    %4341 = vmatpush2.bf16.msra.mxu0 0
    %4342 = vmatprep.subr.bf16.mxu0 0
    %4343 = vmatpush2.bf16.msra.mxu0 0
    %4344 = vmatprep.subr.bf16.mxu0 0
    %4345 = vmatpush2.bf16.msra.mxu0 0
    %4346 = vmatprep.subr.bf16.mxu0 0
    %4347 = vmatpush2.bf16.msra.mxu0 0
    %4348 = vmatprep.mubr.bf16.mxu0 0
    %4349 = vmatmul.mubr.bf16.gmra.mxu0 %v2519
    %v4350 = vpop.f32.mrf.mxu0
    %v4351 = vadd.f32 %v4303, %v4350
    %v4352 = vpop.f32.mrf.mxu0
    %v4353 = vpop.f32.mrf.mxu0
    %v4354 = vadd.f32 %v4303, %v4353
    %v4355 = vpop.f32.mrf.mxu0
    %4356 = vdwg.mxu0
    %v4358 = vsel %vm227, %v4227, 0
    %v4361 = vsel %vm227, %v4289, 0
    %4363 = vmatprep.subr.mxu0 0.0
    %4364 = vmatpush1.xpose.msra.mxu0 0.0
    %4365 = vmatprep.subr.mxu0 0.0
    %4366 = vmatpush1.xpose.msra.mxu0 0.0
    %4367 = vmatprep.subr.mxu0 0.0
    %4368 = vmatpush1.xpose.msra.mxu0 0.0
    %4369 = vmatprep.subr.mxu0 0.0
    %4370 = vmatpush1.xpose.msra.mxu0 0.0
    %4371 = vmatprep.subr.mxu0 0.0
    %4372 = vmatpush1.xpose.msra.mxu0 0.0
    %4373 = vmatprep.subr.mxu0 0.0
    %4374 = vmatpush1.xpose.msra.mxu0 0.0
    %4375 = vmatprep.subr.mxu0 0.0
    %4376 = vmatpush1.xpose.msra.mxu0 0.0
    %4377 = vmatprep.subr.mxu0 0.0
    %4378 = vmatpush1.xpose.msra.mxu0 0.0
    %4379 = vmatprep.subr.mxu0 0.0
    %4380 = vmatpush1.xpose.msra.mxu0 0.0
    %4381 = vmatprep.subr.mxu0 0.0
    %4382 = vmatpush1.xpose.msra.mxu0 0.0
    %4383 = vmatprep.subr.mxu0 0.0
    %4384 = vmatpush1.xpose.msra.mxu0 0.0
    %4385 = vmatprep.subr.mxu0 0.0
    %4386 = vmatpush1.xpose.msra.mxu0 0.0
    %4387 = vmatprep.subr.mxu0 0.0
    %4388 = vmatpush1.xpose.msra.mxu0 0.0
    %4389 = vmatprep.subr.mxu0 0.0
    %4390 = vmatpush1.xpose.msra.mxu0 0.0
    %4391 = vmatprep.subr.mxu0 0.0
    %4392 = vmatpush1.xpose.msra.mxu0 0.0
    %4393 = vmatprep.subr.mxu0 0.0
    %4394 = vmatpush1.xpose.msra.mxu0 %v4361
    %4395 = vmatprep.subr.mxu0 0.0
    %4396 = vmatpush2.xpose.msra.mxu0 0.0
    %4397 = vmatprep.subr.mxu0 0.0
    %4398 = vmatpush2.xpose.msra.mxu0 0.0
    %4399 = vmatprep.subr.mxu0 0.0
    %4400 = vmatpush2.xpose.msra.mxu0 0.0
    %4401 = vmatprep.subr.mxu0 0.0
    %4402 = vmatpush2.xpose.msra.mxu0 0.0
    %4403 = vmatprep.subr.mxu0 0.0
    %4404 = vmatpush2.xpose.msra.mxu0 0.0
    %4405 = vmatprep.subr.mxu0 0.0
    %4406 = vmatpush2.xpose.msra.mxu0 0.0
    %4407 = vmatprep.subr.mxu0 0.0
    %4408 = vmatpush2.xpose.msra.mxu0 0.0
    %4409 = vmatprep.subr.mxu0 0.0
    %4410 = vmatpush2.xpose.msra.mxu0 0.0
    %4411 = vmatprep.subr.mxu0 0.0
    %4412 = vmatpush2.xpose.msra.mxu0 0.0
    %4413 = vmatprep.subr.mxu0 0.0
    %4414 = vmatpush2.xpose.msra.mxu0 0.0
    %4415 = vmatprep.subr.mxu0 0.0
    %4416 = vmatpush2.xpose.msra.mxu0 0.0
    %4417 = vmatprep.subr.mxu0 0.0
    %4418 = vmatpush2.xpose.msra.mxu0 0.0
    %4419 = vmatprep.subr.mxu0 0.0
    %4420 = vmatpush2.xpose.msra.mxu0 0.0
    %4421 = vmatprep.subr.mxu0 0.0
    %4422 = vmatpush2.xpose.msra.mxu0 0.0
    %4423 = vmatprep.subr.mxu0 0.0
    %4424 = vmatpush2.xpose.msra.mxu0 0.0
    %4425 = vmatprep.subr.mxu0 0.0
    %4426 = vmatpush2.xpose.msra.mxu0 0.0
    %4427 = vmatprep.mubr.f32.mxu0 0.0
    %4428 = vmatmul.mubr.f32.gmra.mxu0 %v4358
    %v4429 = vpop.f32.mrf.mxu0
    %v4430 = vadd.f32 0.0, %v4429
    %v4431 = vpop.f32.mrf.mxu0
    %4432 = vdwg.mxu0
    %v4434 = vsel %vm227, %v4230, 0
    %v4437 = vsel %vm227, %v4292, 0
    %4439 = vmatprep.subr.mxu0 0.0
    %4440 = vmatpush1.xpose.msra.mxu0 0.0
    %4441 = vmatprep.subr.mxu0 0.0
    %4442 = vmatpush1.xpose.msra.mxu0 0.0
    %4443 = vmatprep.subr.mxu0 0.0
    %4444 = vmatpush1.xpose.msra.mxu0 0.0
    %4445 = vmatprep.subr.mxu0 0.0
    %4446 = vmatpush1.xpose.msra.mxu0 0.0
    %4447 = vmatprep.subr.mxu0 0.0
    %4448 = vmatpush1.xpose.msra.mxu0 0.0
    %4449 = vmatprep.subr.mxu0 0.0
    %4450 = vmatpush1.xpose.msra.mxu0 0.0
    %4451 = vmatprep.subr.mxu0 0.0
    %4452 = vmatpush1.xpose.msra.mxu0 0.0
    %4453 = vmatprep.subr.mxu0 0.0
    %4454 = vmatpush1.xpose.msra.mxu0 0.0
    %4455 = vmatprep.subr.mxu0 0.0
    %4456 = vmatpush1.xpose.msra.mxu0 0.0
    %4457 = vmatprep.subr.mxu0 0.0
    %4458 = vmatpush1.xpose.msra.mxu0 0.0
    %4459 = vmatprep.subr.mxu0 0.0
    %4460 = vmatpush1.xpose.msra.mxu0 0.0
    %4461 = vmatprep.subr.mxu0 0.0
    %4462 = vmatpush1.xpose.msra.mxu0 0.0
    %4463 = vmatprep.subr.mxu0 0.0
    %4464 = vmatpush1.xpose.msra.mxu0 0.0
    %4465 = vmatprep.subr.mxu0 0.0
    %4466 = vmatpush1.xpose.msra.mxu0 0.0
    %4467 = vmatprep.subr.mxu0 0.0
    %4468 = vmatpush1.xpose.msra.mxu0 0.0
    %4469 = vmatprep.subr.mxu0 0.0
    %4470 = vmatpush1.xpose.msra.mxu0 %v4437
    %4471 = vmatprep.subr.mxu0 0.0
    %4472 = vmatpush2.xpose.msra.mxu0 0.0
    %4473 = vmatprep.subr.mxu0 0.0
    %4474 = vmatpush2.xpose.msra.mxu0 0.0
    %4475 = vmatprep.subr.mxu0 0.0
    %4476 = vmatpush2.xpose.msra.mxu0 0.0
    %4477 = vmatprep.subr.mxu0 0.0
    %4478 = vmatpush2.xpose.msra.mxu0 0.0
    %4479 = vmatprep.subr.mxu0 0.0
    %4480 = vmatpush2.xpose.msra.mxu0 0.0
    %4481 = vmatprep.subr.mxu0 0.0
    %4482 = vmatpush2.xpose.msra.mxu0 0.0
    %4483 = vmatprep.subr.mxu0 0.0
    %4484 = vmatpush2.xpose.msra.mxu0 0.0
    %4485 = vmatprep.subr.mxu0 0.0
    %4486 = vmatpush2.xpose.msra.mxu0 0.0
    %4487 = vmatprep.subr.mxu0 0.0
    %4488 = vmatpush2.xpose.msra.mxu0 0.0
    %4489 = vmatprep.subr.mxu0 0.0
    %4490 = vmatpush2.xpose.msra.mxu0 0.0
    %4491 = vmatprep.subr.mxu0 0.0
    %4492 = vmatpush2.xpose.msra.mxu0 0.0
    %4493 = vmatprep.subr.mxu0 0.0
    %4494 = vmatpush2.xpose.msra.mxu0 0.0
    %4495 = vmatprep.subr.mxu0 0.0
    %4496 = vmatpush2.xpose.msra.mxu0 0.0
    %4497 = vmatprep.subr.mxu0 0.0
    %4498 = vmatpush2.xpose.msra.mxu0 0.0
    %4499 = vmatprep.subr.mxu0 0.0
    %4500 = vmatpush2.xpose.msra.mxu0 0.0
    %4501 = vmatprep.subr.mxu0 0.0
    %4502 = vmatpush2.xpose.msra.mxu0 0.0
    %4503 = vmatprep.mubr.f32.mxu0 0.0
    %4504 = vmatmul.mubr.f32.gmra.mxu0 %v4434
    %v4505 = vpop.f32.mrf.mxu0
    %v4506 = vadd.f32 0.0, %v4505
    %v4507 = vpop.f32.mrf.mxu0
    %4508 = vdwg.mxu0
    %v4509 = vsel %vm227, %v4430, -inf
    %4510 = vmax.xlane.f32.xlu0 %v4509
    %v4511 = vpop.xlane.xlu0 %4510
    %v4512 = vsel %vm227, %v4506, -inf
    %4513 = vmax.xlane.f32.xlu0 %v4512
    %v4514 = vpop.xlane.xlu0 %4513
    %v4515 = vsub.f32 %v4430, %v4511
    %v4516 = vsub.f32 %v4506, %v4514
    %v4517 = vmul.f32 %v4515, 1.442695
    %v4518 = vpow.pop %v4517
    %v4519 = vmul.f32 %v4516, 1.442695
    %v4520 = vpow.pop %v4519
    %v4521 = vsel %vm227, %v4518, 0.0
    %4522 = vadd.xlane.f32.xlu0 %v4521
    %v4523 = vpop.xlane.xlu0 %4522
    %v4524 = vsel %vm227, %v4520, 0.0
    %4525 = vadd.xlane.f32.xlu0 %v4524
    %v4526 = vpop.xlane.xlu0 %4525
    %v4527 = vrcp.pop %v4523
    %v4528 = vrcp.pop %v4526
    %v4529 = vmul.f32 %v4518, %v4527
    %v4530 = vmul.f32 %v4520, %v4528
    %v4532 = vsel %vm227, %v4529, 0
    %4534 = vmatprep.subr.mxu0 0.0
    %4535 = vmatpush1.msra.mxu0 0.0
    %4536 = vmatprep.subr.mxu0 0.0
    %4537 = vmatpush1.msra.mxu0 0.0
    %4538 = vmatprep.subr.mxu0 0.0
    %4539 = vmatpush1.msra.mxu0 0.0
    %4540 = vmatprep.subr.mxu0 0.0
    %4541 = vmatpush1.msra.mxu0 0.0
    %4542 = vmatprep.subr.mxu0 0.0
    %4543 = vmatpush1.msra.mxu0 0.0
    %4544 = vmatprep.subr.mxu0 0.0
    %4545 = vmatpush1.msra.mxu0 0.0
    %4546 = vmatprep.subr.mxu0 0.0
    %4547 = vmatpush1.msra.mxu0 0.0
    %4548 = vmatprep.subr.mxu0 0.0
    %4549 = vmatpush1.msra.mxu0 0.0
    %4550 = vmatprep.subr.mxu0 0.0
    %4551 = vmatpush1.msra.mxu0 0.0
    %4552 = vmatprep.subr.mxu0 0.0
    %4553 = vmatpush1.msra.mxu0 0.0
    %4554 = vmatprep.subr.mxu0 0.0
    %4555 = vmatpush1.msra.mxu0 0.0
    %4556 = vmatprep.subr.mxu0 0.0
    %4557 = vmatpush1.msra.mxu0 0.0
    %4558 = vmatprep.subr.mxu0 0.0
    %4559 = vmatpush1.msra.mxu0 0.0
    %4560 = vmatprep.subr.mxu0 0.0
    %4561 = vmatpush1.msra.mxu0 0.0
    %4562 = vmatprep.subr.mxu0 0.0
    %4563 = vmatpush1.msra.mxu0 0.0
    %4564 = vmatprep.subr.mxu0 0.0
    %4565 = vmatpush1.msra.mxu0 %v4351
    %4566 = vmatprep.subr.mxu0 0.0
    %4567 = vmatpush2.msra.mxu0 0.0
    %4568 = vmatprep.subr.mxu0 0.0
    %4569 = vmatpush2.msra.mxu0 0.0
    %4570 = vmatprep.subr.mxu0 0.0
    %4571 = vmatpush2.msra.mxu0 0.0
    %4572 = vmatprep.subr.mxu0 0.0
    %4573 = vmatpush2.msra.mxu0 0.0
    %4574 = vmatprep.subr.mxu0 0.0
    %4575 = vmatpush2.msra.mxu0 0.0
    %4576 = vmatprep.subr.mxu0 0.0
    %4577 = vmatpush2.msra.mxu0 0.0
    %4578 = vmatprep.subr.mxu0 0.0
    %4579 = vmatpush2.msra.mxu0 0.0
    %4580 = vmatprep.subr.mxu0 0.0
    %4581 = vmatpush2.msra.mxu0 0.0
    %4582 = vmatprep.subr.mxu0 0.0
    %4583 = vmatpush2.msra.mxu0 0.0
    %4584 = vmatprep.subr.mxu0 0.0
    %4585 = vmatpush2.msra.mxu0 0.0
    %4586 = vmatprep.subr.mxu0 0.0
    %4587 = vmatpush2.msra.mxu0 0.0
    %4588 = vmatprep.subr.mxu0 0.0
    %4589 = vmatpush2.msra.mxu0 0.0
    %4590 = vmatprep.subr.mxu0 0.0
    %4591 = vmatpush2.msra.mxu0 0.0
    %4592 = vmatprep.subr.mxu0 0.0
    %4593 = vmatpush2.msra.mxu0 0.0
    %4594 = vmatprep.subr.mxu0 0.0
    %4595 = vmatpush2.msra.mxu0 0.0
    %4596 = vmatprep.subr.mxu0 0.0
    %4597 = vmatpush2.msra.mxu0 0.0
    %4598 = vmatprep.mubr.f32.mxu0 0.0
    %4599 = vmatmul.mubr.f32.gmra.mxu0 %v4532
    %v4600 = vpop.f32.mrf.mxu0
    %v4601 = vadd.f32 0.0, %v4600
    %v4602 = vpop.f32.mrf.mxu0
    %4603 = vdwg.mxu0
    %v4605 = vsel %vm227, %v4530, 0
    %4607 = vmatprep.subr.mxu0 0.0
    %4608 = vmatpush1.msra.mxu0 0.0
    %4609 = vmatprep.subr.mxu0 0.0
    %4610 = vmatpush1.msra.mxu0 0.0
    %4611 = vmatprep.subr.mxu0 0.0
    %4612 = vmatpush1.msra.mxu0 0.0
    %4613 = vmatprep.subr.mxu0 0.0
    %4614 = vmatpush1.msra.mxu0 0.0
    %4615 = vmatprep.subr.mxu0 0.0
    %4616 = vmatpush1.msra.mxu0 0.0
    %4617 = vmatprep.subr.mxu0 0.0
    %4618 = vmatpush1.msra.mxu0 0.0
    %4619 = vmatprep.subr.mxu0 0.0
    %4620 = vmatpush1.msra.mxu0 0.0
    %4621 = vmatprep.subr.mxu0 0.0
    %4622 = vmatpush1.msra.mxu0 0.0
    %4623 = vmatprep.subr.mxu0 0.0
    %4624 = vmatpush1.msra.mxu0 0.0
    %4625 = vmatprep.subr.mxu0 0.0
    %4626 = vmatpush1.msra.mxu0 0.0
    %4627 = vmatprep.subr.mxu0 0.0
    %4628 = vmatpush1.msra.mxu0 0.0
    %4629 = vmatprep.subr.mxu0 0.0
    %4630 = vmatpush1.msra.mxu0 0.0
    %4631 = vmatprep.subr.mxu0 0.0
    %4632 = vmatpush1.msra.mxu0 0.0
    %4633 = vmatprep.subr.mxu0 0.0
    %4634 = vmatpush1.msra.mxu0 0.0
    %4635 = vmatprep.subr.mxu0 0.0
    %4636 = vmatpush1.msra.mxu0 0.0
    %4637 = vmatprep.subr.mxu0 0.0
    %4638 = vmatpush1.msra.mxu0 %v4354
    %4639 = vmatprep.subr.mxu0 0.0
    %4640 = vmatpush2.msra.mxu0 0.0
    %4641 = vmatprep.subr.mxu0 0.0
    %4642 = vmatpush2.msra.mxu0 0.0
    %4643 = vmatprep.subr.mxu0 0.0
    %4644 = vmatpush2.msra.mxu0 0.0
    %4645 = vmatprep.subr.mxu0 0.0
    %4646 = vmatpush2.msra.mxu0 0.0
    %4647 = vmatprep.subr.mxu0 0.0
    %4648 = vmatpush2.msra.mxu0 0.0
    %4649 = vmatprep.subr.mxu0 0.0
    %4650 = vmatpush2.msra.mxu0 0.0
    %4651 = vmatprep.subr.mxu0 0.0
    %4652 = vmatpush2.msra.mxu0 0.0
    %4653 = vmatprep.subr.mxu0 0.0
    %4654 = vmatpush2.msra.mxu0 0.0
    %4655 = vmatprep.subr.mxu0 0.0
    %4656 = vmatpush2.msra.mxu0 0.0
    %4657 = vmatprep.subr.mxu0 0.0
    %4658 = vmatpush2.msra.mxu0 0.0
    %4659 = vmatprep.subr.mxu0 0.0
    %4660 = vmatpush2.msra.mxu0 0.0
    %4661 = vmatprep.subr.mxu0 0.0
    %4662 = vmatpush2.msra.mxu0 0.0
    %4663 = vmatprep.subr.mxu0 0.0
    %4664 = vmatpush2.msra.mxu0 0.0
    %4665 = vmatprep.subr.mxu0 0.0
    %4666 = vmatpush2.msra.mxu0 0.0
    %4667 = vmatprep.subr.mxu0 0.0
    %4668 = vmatpush2.msra.mxu0 0.0
    %4669 = vmatprep.subr.mxu0 0.0
    %4670 = vmatpush2.msra.mxu0 0.0
    %4671 = vmatprep.mubr.f32.mxu0 0.0
    %4672 = vmatmul.mubr.f32.gmra.mxu0 %v4605
    %v4673 = vpop.f32.mrf.mxu0
    %v4674 = vadd.f32 0.0, %v4673
    %v4675 = vpop.f32.mrf.mxu0
    %4676 = vdwg.mxu0
    %v4677 = vpack.c.bf16 %v4674, %v4601
    %v4678 = vld [vmem:[%s1 + $0xf0] sm:$0xf]
    %v4680 = vsel %vm227, %v4677, 0
    %v4683 = vsel %vm553, %v4678, 0
    %4685 = vmatprep.subr.bf16.mxu0 0
    %4686 = vmatpush1.bf16.msra.mxu0 0
    %4687 = vmatprep.subr.bf16.mxu0 0
    %4688 = vmatpush1.bf16.msra.mxu0 0
    %4689 = vmatprep.subr.bf16.mxu0 0
    %4690 = vmatpush1.bf16.msra.mxu0 0
    %4691 = vmatprep.subr.bf16.mxu0 0
    %4692 = vmatpush1.bf16.msra.mxu0 0
    %4693 = vmatprep.subr.bf16.mxu0 0
    %4694 = vmatpush1.bf16.msra.mxu0 0
    %4695 = vmatprep.subr.bf16.mxu0 0
    %4696 = vmatpush1.bf16.msra.mxu0 0
    %4697 = vmatprep.subr.bf16.mxu0 0
    %4698 = vmatpush1.bf16.msra.mxu0 0
    %4699 = vmatprep.subr.bf16.mxu0 0
    %4700 = vmatpush1.bf16.msra.mxu0 %v4683
    %4701 = vmatprep.subr.bf16.mxu0 0
    %4702 = vmatpush2.bf16.msra.mxu0 0
    %4703 = vmatprep.subr.bf16.mxu0 0
    %4704 = vmatpush2.bf16.msra.mxu0 0
    %4705 = vmatprep.subr.bf16.mxu0 0
    %4706 = vmatpush2.bf16.msra.mxu0 0
    %4707 = vmatprep.subr.bf16.mxu0 0
    %4708 = vmatpush2.bf16.msra.mxu0 0
    %4709 = vmatprep.subr.bf16.mxu0 0
    %4710 = vmatpush2.bf16.msra.mxu0 0
    %4711 = vmatprep.subr.bf16.mxu0 0
    %4712 = vmatpush2.bf16.msra.mxu0 0
    %4713 = vmatprep.subr.bf16.mxu0 0
    %4714 = vmatpush2.bf16.msra.mxu0 0
    %4715 = vmatprep.subr.bf16.mxu0 0
    %4716 = vmatpush2.bf16.msra.mxu0 0
    %4717 = vmatprep.mubr.bf16.mxu0 0
    %4718 = vmatmul.mubr.bf16.gmra.mxu0 %v4680
    %v4719 = vpop.f32.mrf.mxu0
    %v4720 = vadd.f32 0.0, %v4719
    %v4721 = vpop.f32.mrf.mxu0
    %v4722 = vpop.f32.mrf.mxu0
    %v4723 = vadd.f32 0.0, %v4722
    %v4724 = vpop.f32.mrf.mxu0
    %4725 = vdwg.mxu0
    %v4726 = vadd.f32 %v4169, %v4720
    %v4727 = vadd.f32 %v4170, %v4723
    %v4728 = vadd.f32 %v2494, %v4726
    %v4729 = vadd.f32 %v2495, %v4727
    %v4730 = vsel %vm58, %v4728, 0.0
    %4731 = vadd.xlane.f32.xlu0 %v4730
    %v4732 = vpop.xlane.xlu0 %4731
    %v4733 = vsel %vm58, %v4729, 0.0
    %4734 = vadd.xlane.f32.xlu0 %v4733
    %v4735 = vpop.xlane.xlu0 %4734
    %v4736 = vmul.f32 %v4732, %v2283
    %v4737 = vmul.f32 %v4735, %v2283
    %v4738 = vsub.f32 %v4728, %v4736
    %v4739 = vsub.f32 %v4729, %v4737
    %v4740 = vmul.f32 %v4738, %v4738
    %v4741 = vmul.f32 %v4739, %v4739
    %v4742 = vsel %vm58, %v4740, 0.0
    %4743 = vadd.xlane.f32.xlu0 %v4742
    %v4744 = vpop.xlane.xlu0 %4743
    %v4745 = vsel %vm58, %v4741, 0.0
    %4746 = vadd.xlane.f32.xlu0 %v4745
    %v4747 = vpop.xlane.xlu0 %4746
    %v4748 = vmul.f32 %v4744, %v2283
    %v4749 = vmul.f32 %v4747, %v2283
    %v4750 = vadd.f32 %v4748, 1e-05
    %v4751 = vadd.f32 %v4749, 1e-05
    %v4752 = vrsqrt.pop %v4750
    %v4753 = vrsqrt.pop %v4751
    %v4754 = vmul.f32 %v4738, %v4752
    %v4755 = vmul.f32 %v4739, %v4753
    %v4756 = vmul.f32 %v4754, %v2307
    %v4757 = vmul.f32 %v4755, %v2307
    %v4758 = vadd.f32 %v4756, %v2313
    %v4759 = vadd.f32 %v4757, %v2313
    %v4760 = vpack.c.bf16 %v4759, %v4758
    %v4762 = vsel %vm58, %v4760, 0
    %4764 = vmatprep.subr.bf16.mxu0 0
    %4765 = vmatpush1.bf16.msra.mxu0 0
    %4766 = vmatprep.subr.bf16.mxu0 0
    %4767 = vmatpush1.bf16.msra.mxu0 0
    %4768 = vmatprep.subr.bf16.mxu0 0
    %4769 = vmatpush1.bf16.msra.mxu0 0
    %4770 = vmatprep.subr.bf16.mxu0 0
    %4771 = vmatpush1.bf16.msra.mxu0 0
    %4772 = vmatprep.subr.bf16.mxu0 0
    %4773 = vmatpush1.bf16.msra.mxu0 0
    %4774 = vmatprep.subr.bf16.mxu0 0
    %4775 = vmatpush1.bf16.msra.mxu0 0
    %4776 = vmatprep.subr.bf16.mxu0 0
    %4777 = vmatpush1.bf16.msra.mxu0 %v2330
    %4778 = vmatprep.subr.bf16.mxu0 0
    %4779 = vmatpush1.bf16.msra.mxu0 %v2329
    %4780 = vmatprep.subr.bf16.mxu0 0
    %4781 = vmatpush2.bf16.msra.mxu0 0
    %4782 = vmatprep.subr.bf16.mxu0 0
    %4783 = vmatpush2.bf16.msra.mxu0 0
    %4784 = vmatprep.subr.bf16.mxu0 0
    %4785 = vmatpush2.bf16.msra.mxu0 0
    %4786 = vmatprep.subr.bf16.mxu0 0
    %4787 = vmatpush2.bf16.msra.mxu0 0
    %4788 = vmatprep.subr.bf16.mxu0 0
    %4789 = vmatpush2.bf16.msra.mxu0 0
    %4790 = vmatprep.subr.bf16.mxu0 0
    %4791 = vmatpush2.bf16.msra.mxu0 0
    %4792 = vmatprep.subr.bf16.mxu0 0
    %4793 = vmatpush2.bf16.msra.mxu0 0
    %4794 = vmatprep.subr.bf16.mxu0 0
    %4795 = vmatpush2.bf16.msra.mxu0 0
    %4796 = vmatprep.mubr.bf16.mxu0 0
    %4797 = vmatmul.mubr.bf16.gmra.mxu0 %v4762
    %v4798 = vpop.f32.mrf.mxu0
    %v4799 = vadd.f32 %v2320, %v4798
    %v4800 = vpop.f32.mrf.mxu0
    %v4801 = vpop.f32.mrf.mxu0
    %v4802 = vadd.f32 %v2320, %v4801
    %v4803 = vpop.f32.mrf.mxu0
    %4804 = vdwg.mxu0
    %v4805 = vmul.f32 %v4799, 0.5
    %v4806 = vmul.f32 %v4802, 0.5
    %v4807 = vmul.f32 %v4799, 0.044715
    %v4808 = vmul.f32 %v4802, 0.044715
    %v4809 = vmul.f32 %v4807, %v4799
    %v4810 = vmul.f32 %v4808, %v4802
    %v4811 = vmul.f32 %v4809, %v4799
    %v4812 = vmul.f32 %v4810, %v4802
    %v4813 = vadd.f32 %v4799, %v4811
    %v4814 = vadd.f32 %v4802, %v4812
    %v4815 = vmul.f32 %v4813, 0.7978846
    %v4816 = vmul.f32 %v4814, 0.7978846
    %v4817 = vtanh.pop %v4815
    %v4818 = vtanh.pop %v4816
    %v4819 = vadd.f32 %v4817, 1.0
    %v4820 = vadd.f32 %v4818, 1.0
    %v4821 = vmul.f32 %v4805, %v4819
    %v4822 = vmul.f32 %v4806, %v4820
    %v4823 = vpack.c.bf16 %v4822, %v4821
    %v4825 = vsel %vm58, %v4823, 0
    %4827 = vmatprep.subr.bf16.mxu0 0
    %4828 = vmatpush1.bf16.msra.mxu0 0
    %4829 = vmatprep.subr.bf16.mxu0 0
    %4830 = vmatpush1.bf16.msra.mxu0 0
    %4831 = vmatprep.subr.bf16.mxu0 0
    %4832 = vmatpush1.bf16.msra.mxu0 0
    %4833 = vmatprep.subr.bf16.mxu0 0
    %4834 = vmatpush1.bf16.msra.mxu0 0
    %4835 = vmatprep.subr.bf16.mxu0 0
    %4836 = vmatpush1.bf16.msra.mxu0 0
    %4837 = vmatprep.subr.bf16.mxu0 0
    %4838 = vmatpush1.bf16.msra.mxu0 0
    %4839 = vmatprep.subr.bf16.mxu0 0
    %4840 = vmatpush1.bf16.msra.mxu0 %v2409
    %4841 = vmatprep.subr.bf16.mxu0 0
    %4842 = vmatpush1.bf16.msra.mxu0 %v2408
    %4843 = vmatprep.subr.bf16.mxu0 0
    %4844 = vmatpush2.bf16.msra.mxu0 0
    %4845 = vmatprep.subr.bf16.mxu0 0
    %4846 = vmatpush2.bf16.msra.mxu0 0
    %4847 = vmatprep.subr.bf16.mxu0 0
    %4848 = vmatpush2.bf16.msra.mxu0 0
    %4849 = vmatprep.subr.bf16.mxu0 0
    %4850 = vmatpush2.bf16.msra.mxu0 0
    %4851 = vmatprep.subr.bf16.mxu0 0
    %4852 = vmatpush2.bf16.msra.mxu0 0
    %4853 = vmatprep.subr.bf16.mxu0 0
    %4854 = vmatpush2.bf16.msra.mxu0 0
    %4855 = vmatprep.subr.bf16.mxu0 0
    %4856 = vmatpush2.bf16.msra.mxu0 0
    %4857 = vmatprep.subr.bf16.mxu0 0
    %4858 = vmatpush2.bf16.msra.mxu0 0
    %4859 = vmatprep.mubr.bf16.mxu0 0
    %4860 = vmatmul.mubr.bf16.gmra.mxu0 %v4825
    %v4861 = vpop.f32.mrf.mxu0
    %v4862 = vadd.f32 %v2399, %v4861
    %v4863 = vpop.f32.mrf.mxu0
    %v4864 = vpop.f32.mrf.mxu0
    %v4865 = vadd.f32 %v2399, %v4864
    %v4866 = vpop.f32.mrf.mxu0
    %4867 = vdwg.mxu0
    %v4868 = vadd.f32 %v4758, %v4862
    %v4869 = vadd.f32 %v4759, %v4865
    %v4870 = vsel %vm58, %v4868, 0.0
    %4871 = vadd.xlane.f32.xlu0 %v4870
    %v4872 = vpop.xlane.xlu0 %4871
    %v4873 = vsel %vm58, %v4869, 0.0
    %4874 = vadd.xlane.f32.xlu0 %v4873
    %v4875 = vpop.xlane.xlu0 %4874
    %v4876 = vmul.f32 %v4872, %v2283
    %v4877 = vmul.f32 %v4875, %v2283
    %v4878 = vsub.f32 %v4868, %v4876
    %v4879 = vsub.f32 %v4869, %v4877
    %v4880 = vmul.f32 %v4878, %v4878
    %v4881 = vmul.f32 %v4879, %v4879
    %v4882 = vsel %vm58, %v4880, 0.0
    %4883 = vadd.xlane.f32.xlu0 %v4882
    %v4884 = vpop.xlane.xlu0 %4883
    %v4885 = vsel %vm58, %v4881, 0.0
    %4886 = vadd.xlane.f32.xlu0 %v4885
    %v4887 = vpop.xlane.xlu0 %4886
    %v4888 = vmul.f32 %v4884, %v2283
    %v4889 = vmul.f32 %v4887, %v2283
    %v4890 = vadd.f32 %v4888, 1e-05
    %v4891 = vadd.f32 %v4889, 1e-05
    %v4892 = vrsqrt.pop %v4890
    %v4893 = vrsqrt.pop %v4891
    %v4894 = vmul.f32 %v4878, %v4892
    %v4895 = vmul.f32 %v4879, %v4893
    %v4896 = vmul.f32 %v4894, %v2487
    %v4897 = vmul.f32 %v4895, %v2487
    %v4898 = vadd.f32 %v4896, %v2493
    %v4899 = vadd.f32 %v4897, %v2493
    %4900 = vst.msk [vmem:[#allocation2] sm:$0xff] %vm58, %v4898
    %4901 = vst.msk [vmem:[#allocation2 + $0x8] sm:$0xff] %vm58, %v4899
    %v4902 = vsel %vm58, %v4898, 0.0
    %v4903 = vrot.slane %v4902, 4
    %v4904 = vadd.f32 %v4902, %v4903
    %v4905 = vrot.slane %v4904, 2
    %v4906 = vadd.f32 %v4904, %v4905
    %v4907 = vrot.slane %v4906, 1
    %v4908 = vadd.f32 %v4906, %v4907
    %v4909 = vsel %vm58, %v4899, 0.0
    %v4910 = vrot.slane %v4909, 4
    %v4911 = vadd.f32 %v4909, %v4910
    %v4912 = vrot.slane %v4911, 2
    %v4913 = vadd.f32 %v4911, %v4912
    %v4914 = vrot.slane %v4913, 1
    %v4915 = vadd.f32 %v4913, %v4914
    %v4916 = vrcp.pop 8.0
    %v4917 = vmul.f32 %v4908, %v4916
    %v4918 = vmul.f32 %v4915, %v4916
    %v4919 = vpack.c.bf16 %v4917, %v4917
    %v4920 = vpack.c.bf16 %v4918, %v4918
    %v4921 = vld [vmem:[%s1 + $0x120] sm:$0xf]
    %v4922 = vld [vmem:[%s1 + $0x124] sm:$0xf]
    %v4923 = vld [vmem:[%s1 + $0x128] sm:$0xf]
    %v4924 = vld [vmem:[%s1 + $0x12c] sm:$0xf]
    %v4925 = vld [vmem:[%s2 + $0x13] sm:$0x1]
    %v4926 = vlaneseq
    %v4927 = vshrl.u32 %v4926, 7
    %v4928 = vsub.s32 0, %v4927
    %v4929 = vrot.slane %v4925, %v4928
    %v4932 = vunpack.c.l.b16 %v4919
    %v4933 = vunpack.c.l.b16 %v4920
    %vm4934 = vcmask 1041409
    %v4935 = vsel %vm4934, %v4933, %v4932
    %v4936 = vpack.c.b16 %v4935, %v4935
    %v4941 = vunpack.c.l.b16 %v4921
    %v4942 = vunpack.c.l.b16 %v4922
    %v4943 = vunpack.c.l.b16 %v4923
    %v4944 = vunpack.c.l.b16 %v4924
    %v4945 = vpack.c.b16 %v4942, %v4941
    %v4946 = vpack.c.b16 %v4944, %v4943
    %v4950 = vsel %vm58, %v4936, 0
    %4952 = vmatprep.subr.bf16.mxu0 0
    %4953 = vmatpush1.bf16.msra.mxu0 0
    %4954 = vmatprep.subr.bf16.mxu0 0
    %4955 = vmatpush1.bf16.msra.mxu0 0
    %4956 = vmatprep.subr.bf16.mxu0 0
    %4957 = vmatpush1.bf16.msra.mxu0 0
    %4958 = vmatprep.subr.bf16.mxu0 0
    %4959 = vmatpush1.bf16.msra.mxu0 0
    %4960 = vmatprep.subr.bf16.mxu0 0
    %4961 = vmatpush1.bf16.msra.mxu0 0
    %4962 = vmatprep.subr.bf16.mxu0 0
    %4963 = vmatpush1.bf16.msra.mxu0 0
    %4964 = vmatprep.subr.bf16.mxu0 0
    %4965 = vmatpush1.bf16.msra.mxu0 %v4946
    %4966 = vmatprep.subr.bf16.mxu0 0
    %4967 = vmatpush1.bf16.msra.mxu0 %v4945
    %4968 = vmatprep.subr.bf16.mxu0 0
    %4969 = vmatpush2.bf16.msra.mxu0 0
    %4970 = vmatprep.subr.bf16.mxu0 0
    %4971 = vmatpush2.bf16.msra.mxu0 0
    %4972 = vmatprep.subr.bf16.mxu0 0
    %4973 = vmatpush2.bf16.msra.mxu0 0
    %4974 = vmatprep.subr.bf16.mxu0 0
    %4975 = vmatpush2.bf16.msra.mxu0 0
    %4976 = vmatprep.subr.bf16.mxu0 0
    %4977 = vmatpush2.bf16.msra.mxu0 0
    %4978 = vmatprep.subr.bf16.mxu0 0
    %4979 = vmatpush2.bf16.msra.mxu0 0
    %4980 = vmatprep.subr.bf16.mxu0 0
    %4981 = vmatpush2.bf16.msra.mxu0 0
    %4982 = vmatprep.subr.bf16.mxu0 0
    %4983 = vmatpush2.bf16.msra.mxu0 0
    %4984 = vmatprep.mubr.bf16.mxu0 0
    %4985 = vmatmul.mubr.bf16.gmra.mxu0 %v4950
    %v4986 = vpop.f32.mrf.mxu0
    %v4987 = vadd.f32 %v4929, %v4986
    %v4988 = vpop.f32.mrf.mxu0
    %v4989 = vpop.f32.mrf.mxu0
    %v4990 = vpop.f32.mrf.mxu0
    %4991 = vdwg.mxu0
    %vm4992 = vcmask 254976
    %4993 = vst.msk [vmem:[#allocation4] sm:$0x3] %vm4992, %v4987
    // Predicated region
    $region14: #{tpu_custom_call.1} parent=1 // pred_check
      _
    $region15: #{tpu_custom_call.1} parent=1 // pred_check_branch
      %4995 = sbr.rel (0) target = $region17
    $region16: #{tpu_custom_call.1} parent=1 // pred_region
      %s4997 = ssub.s32 256, 256
      %4998 = vsyncadd [#allocation3], %s4997
      %s4999 = sshll.u32 [#allocation2], 4
      %s5000 = int_to_ptr.vmem [resolvable:$true] %s4999
      %5005 = dma.vmem_to_hbm [thread:$0]  %s5000, 256, %s3, [#allocation3], 128, 128, 8
    $region17: #{tpu_custom_call.1} parent=1 // pred_fallthru
      _
    // Predicated region
    $region18: #{tpu_custom_call.1} parent=1 // pred_check
      _
    $region19: #{tpu_custom_call.1} parent=1 // pred_check_branch
      %5007 = sbr.rel (0) target = $region21
    $region20: #{tpu_custom_call.1} parent=1 // pred_region
      %s5009 = ssub.s32 32, 32
      %5010 = vsyncadd [#allocation5], %s5009
      %s5012 = sshll.u32 [#allocation4], 4
      %s5013 = int_to_ptr.vmem [resolvable:$true] %s5012
      %5015 = dma.vmem_to_hbm [thread:$0]  %s5013, 32, %s4, [#allocation5]
    $region21: #{tpu_custom_call.1} parent=1 // pred_fallthru
      _
    // Predicated region
    $region22: #{tpu_custom_call.1} parent=1 // pred_check
      _
    $region23: #{tpu_custom_call.1} parent=1 // pred_check_branch
      %5017 = sbr.rel (0) target = $region25
    $region24: #{tpu_custom_call.1} parent=1 // pred_region
      %5018 = dma.done [#allocation3], 256
    $region25: #{tpu_custom_call.1} parent=1 // pred_fallthru
      _
    // Predicated region
    $region26: #{tpu_custom_call.1} parent=1 // pred_check
      _
    $region27: #{tpu_custom_call.1} parent=1 // pred_check_branch
      %5020 = sbr.rel (0) target = $region29
    $region28: #{tpu_custom_call.1} parent=1 // pred_region
      %5021 = dma.done [#allocation5], 32
    $region29: #{tpu_custom_call.1} parent=1 // pred_fallthru
      _
    %5022 = vsyncpa [#allocation3], 1
    %5023 = vsyncpa [#allocation5], 1

</llo_original>
